<compile_context>
chip_gen: v6e
topology: v6e:2x2x1
jax: 0.10.0
libtpu: 0.0.40
codegen_flags: <defaults>
</compile_context>

<pallas_src>
import functools

import jax
import jax.numpy as jnp
from jax.experimental import pallas as pl
from jax.experimental.pallas import tpu as pltpu


def _adaptive_attention_kernel(x_ref, gamma_ref, beta_ref, wqkv_ref, bias_ref,
                               wout_ref, o_ref, *, heads, dim_head, dim, n_tok,
                               bblk, eps, mm_dtype, exp_dtype):
    N = n_tok
    dh = dim_head
    T = bblk * N

    # --- LayerNorm over the flattened (Bblk*N, D) slab (f32, PyTorch semantics) ---
    x = x_ref[...].reshape(T, dim)
    mean = jnp.mean(x, axis=-1, keepdims=True)
    mean_sq = jnp.mean(x * x, axis=-1, keepdims=True)
    var = mean_sq - mean * mean                       # two independent reduces
    xn = (x - mean) * jax.lax.rsqrt(var + eps)
    xn = xn * gamma_ref[0] + beta_ref[0]
    xn_mm = xn.astype(mm_dtype)                       # MXU operand dtype

    # --- Fused QKV projection: ONE (T, D) @ (D, 3D) matmul (q-scale folded in Wq) ---
    qkv = jnp.dot(xn_mm, wqkv_ref[...], preferred_element_type=jnp.float32)   # (T, 3D)
    qkv = qkv.astype(mm_dtype)

    pv_heads = []
    # heads is a small static int -> unrolled; vreg pressure fine at heads=2.
    for h in range(heads):
        base = 3 * dh * h
        q3 = qkv[:, base:base + dh].reshape(bblk, N, dh)
        k3 = qkv[:, base + dh:base + 2 * dh].reshape(bblk, N, dh)
        v3 = qkv[:, base + 2 * dh:base + 3 * dh].reshape(bblk, N, dh)

        # Contraction on the last dims -> no explicit transpose feeding the MXU.
        sim = jnp.einsum("bnd,bmd->bnm", q3, k3,
                         preferred_element_type=jnp.float32)          # (Bblk, N, N) f32
        sim = sim + bias_ref[h]                                       # rel-pos bias, f32

        # Stable softmax; normalization deferred until after p @ v.
        m = jnp.max(sim, axis=-1, keepdims=True)
        p = jnp.exp((sim - m).astype(exp_dtype))       # bf16 EUP on v6e/v7x, f32 on v5e
        l = jnp.sum(p.astype(jnp.float32), axis=-1, keepdims=True)    # f32 row-sum

        pv = jnp.einsum("bnm,bmd->bnd", p.astype(mm_dtype), v3,
                        preferred_element_type=jnp.float32)           # (Bblk, N, dh) f32
        pv_heads.append(pv * pl.reciprocal(l, approx=True))           # EUP reciprocal

    # --- Fused output projection: lane-concat heads, ONE (T, D) @ (D, D) matmul ---
    pvcat = jnp.concatenate(pv_heads, axis=-1) if heads > 1 else pv_heads[0]
    pvcat = pvcat.reshape(T, dim).astype(mm_dtype)
    out = jnp.dot(pvcat, wout_ref[...], preferred_element_type=jnp.float32)   # (T, D)

    o_ref[...] = out.reshape(bblk, N, dim).astype(o_ref.dtype)


def _rel_pos_bias(emb_table, window_height, window_width):
    """(heads, N, N) relative-position bias, N = wh * ww.  Plain-JAX glue."""
    pos_h = jnp.arange(window_height)
    pos_w = jnp.arange(window_width)
    gh, gw = jnp.meshgrid(pos_h, pos_w, indexing="ij")
    grid = jnp.stack([gh, gw], axis=-1).reshape(-1, 2)                 # (N, 2)
    rel = grid[:, None, :] - grid[None, :, :]
    rel = rel + jnp.array([window_height - 1, window_width - 1])
    idx = (rel * jnp.array([2 * window_width - 1, 1])).sum(-1)         # (N, N)
    bias = emb_table[idx]                                              # (N, N, heads)
    return jnp.transpose(bias, (2, 0, 1)).astype(jnp.float32)          # (heads, N, N)


def _choose_window_block(B, N, target_rows=4096):
    """Windows per grid step.  Big tiles (amortize ~0.35us/step, fill MXU rows),
    >= 2 grid steps and an even grid (v7x 2-TC sharding) when B allows.
    The caller pads B up to bblk * grid instead of shrinking bblk."""
    bblk = max(1, min(B, target_rows // max(N, 1)))
    if B > 1:
        bblk = min(bblk, pl.cdiv(B, 2))     # keep at least 2 grid steps
    grid = pl.cdiv(B, bblk)
    if B > 1 and grid % 2:
        grid += 1                           # even grid for balanced v7x TC split
    return bblk, grid


def _softmax_exp_dtype(mm_dtype):
    """bf16 exp only where the EUP supports bf16 (v6e / v7x); f32 elsewhere."""
    if jnp.dtype(mm_dtype) != jnp.dtype(jnp.bfloat16):
        return jnp.float32
    try:
        kind = jax.devices()[0].device_kind.lower()
    except Exception:
        return jnp.float32
    if "v6" in kind or "v7" in kind:
        return jnp.bfloat16
    return jnp.float32


def adaptive_attention(x, params, window_height, window_width,
                       mm_dtype=jnp.bfloat16):
    b, nx, ny, w1, w2, d = x.shape
    heads = params["heads"]
    dh = d // heads
    scale = dh ** -0.5
    N = w1 * w2
    B = b * nx * ny
    bblk, grid_len = _choose_window_block(B, N)
    B_pad = bblk * grid_len

    xf = x.reshape(B, N, d).astype(jnp.float32)
    if B_pad > B:
        # Windows are independent -> zero-pad and discard after the call.
        xf = jnp.pad(xf, ((0, B_pad - B), (0, 0), (0, 0)))

    bias = _rel_pos_bias(params["emb"], window_height, window_width)   # (heads, N, N)

    # PyTorch Linear: y = x @ W.T.  W_qkv is (3D, D), rows ordered [q | k | v],
    # head-major within each chunk.  Build ONE fused (D, 3D) weight laid out head-major
    # as [q_h | k_h | v_h] per head; fold the q-scale into the q columns.
    wqkv_t = params["w_qkv"].T.astype(jnp.float32)                     # (D, 3D)
    wq = wqkv_t[:, 0 * d:1 * d].reshape(d, heads, dh) * scale
    wk = wqkv_t[:, 1 * d:2 * d].reshape(d, heads, dh)
    wv = wqkv_t[:, 2 * d:3 * d].reshape(d, heads, dh)
    w_qkv_fused = jnp.stack([wq, wk, wv], axis=2).reshape(d, 3 * d).astype(mm_dtype)

    # Out projection: full W_out.T — heads are lane-concatenated (head-major) in-kernel,
    # matching PyTorch's 'b h n d -> b n (h d)' before to_out.
    wout = params["w_out"].T.astype(mm_dtype)                          # (D, D)

    gamma = params["ln_w"].reshape(1, d).astype(jnp.float32)
    beta = params["ln_b"].reshape(1, d).astype(jnp.float32)

    exp_dtype = _softmax_exp_dtype(mm_dtype)

    kernel = functools.partial(
        _adaptive_attention_kernel, heads=heads, dim_head=dh, dim=d,
        n_tok=N, bblk=bblk, eps=1e-5, mm_dtype=mm_dtype, exp_dtype=exp_dtype)

    out = pl.pallas_call(
        kernel,
        out_shape=jax.ShapeDtypeStruct((B_pad, N, d), jnp.float32),
        grid_spec=pltpu.PrefetchScalarGridSpec(
            num_scalar_prefetch=0,
            grid=(grid_len,),
            in_specs=[
                pl.BlockSpec((bblk, N, d), lambda i: (i, 0, 0)),       # x (Bblk windows)
                pl.BlockSpec((1, d), lambda i: (0, 0)),                # LN gamma
                pl.BlockSpec((1, d), lambda i: (0, 0)),                # LN beta
                pl.BlockSpec((d, 3 * d), lambda i: (0, 0)),            # fused W_qkv
                pl.BlockSpec((heads, N, N), lambda i: (0, 0, 0)),      # rel-pos bias
                pl.BlockSpec((d, d), lambda i: (0, 0)),                # W_out.T
            ],
            out_specs=pl.BlockSpec((bblk, N, d), lambda i: (i, 0, 0)),
        ),
        compiler_params=pltpu.CompilerParams(
            dimension_semantics=("parallel",),
            vmem_limit_bytes=32 * 1024 * 1024),
    )(xf, gamma, beta, w_qkv_fused, bias, wout)

    if B_pad > B:
        out = out[:B]
    return out.reshape(b, nx, ny, w1, w2, d)


def adaptive_attention_reference(x, params, window_height, window_width):
    """Pure-JAX f32 reference mirroring the PyTorch forward (dropout p=0)."""
    b, nx, ny, w1, w2, d = x.shape
    heads = params["heads"]
    dh = d // heads
    scale = dh ** -0.5

    mean = x.mean(-1, keepdims=True)
    var = ((x - mean) ** 2).mean(-1, keepdims=True)
    xn = (x - mean) / jnp.sqrt(var + 1e-5) * params["ln_w"] + params["ln_b"]

    xf = xn.reshape(b * nx * ny, w1 * w2, d)
    qkv = xf @ params["w_qkv"].T
    q, k, v = jnp.split(qkv, 3, axis=-1)

    def to_heads(t):
        B, N, _ = t.shape
        return t.reshape(B, N, heads, dh).transpose(0, 2, 1, 3)

    q, k, v = map(to_heads, (q, k, v))
    q = q * scale
    sim = jnp.einsum("bhid,bhjd->bhij", q, k)
    sim = sim + _rel_pos_bias(params["emb"], window_height, window_width)[None]
    attn = jax.nn.softmax(sim, axis=-1)
    out = jnp.einsum("bhij,bhjd->bhid", attn, v)
    out = out.transpose(0, 2, 1, 3).reshape(b * nx * ny, w1 * w2, d)
    out = out @ params["w_out"].T
    return out.reshape(b, nx, ny, w1, w2, d)


if __name__ == "__main__":
    # Shapes consistent with the module: dim=64, dim_head=32 -> heads=2,
    # x: (batch=2, n_win_x=2, n_win_y=2, w1=8, w2=8, dim=64), window = 8x8.
    b, nx, ny, w1, w2, dim = 2, 2, 2, 8, 8, 64
    dim_head = 32
    heads = dim // dim_head
    window_height, window_width = w1, w2

    key = jax.random.PRNGKey(0)
    kx, kq, ko, kg, kb, ke = jax.random.split(key, 6)

    x = jax.random.normal(kx, (b, nx, ny, w1, w2, dim), dtype=jnp.float32)

    params = {
        "heads": heads,
        # PyTorch Linear weights are (out_features, in_features)
        "w_qkv": jax.random.normal(kq, (3 * dim, dim), dtype=jnp.float32) * 0.05,
        "w_out": jax.random.normal(ko, (dim, dim), dtype=jnp.float32) * 0.05,
        "ln_w": 1.0 + 0.1 * jax.random.normal(kg, (dim,), dtype=jnp.float32),
        "ln_b": 0.1 * jax.random.normal(kb, (dim,), dtype=jnp.float32),
        # nn.Embedding((2*wh-1)*(2*ww-1), heads) table
        "emb": jax.random.normal(
            ke, ((2 * window_height - 1) * (2 * window_width - 1), heads),
            dtype=jnp.float32),
    }

    out = adaptive_attention(x, params, window_height, window_width)
    out = jax.block_until_ready(out)

    ref = adaptive_attention_reference(x, params, window_height, window_width)
    assert out.shape == (b, nx, ny, w1, w2, dim)
    # bf16 MXU operands (f32 accumulate / f32 LN & softmax stats) -> loosened tolerance.
    assert jnp.allclose(out, ref, rtol=2e-2, atol=2e-2), (
        float(jnp.max(jnp.abs(out - ref))))

    print("KERNEL_OK")
</pallas_src>

<mosaic_0001>
module attributes {stable_mosaic.version = 11 : i64} {
  func.func @_adaptive_attention_kernel(%arg0: i32, %arg1: memref<4x64x64xf32, #tpu.memory_space<vmem>>, %arg2: memref<1x64xf32, #tpu.memory_space<vmem>>, %arg3: memref<1x64xf32, #tpu.memory_space<vmem>>, %arg4: memref<64x192xbf16, #tpu.memory_space<vmem>>, %arg5: memref<2x64x64xf32, #tpu.memory_space<vmem>>, %arg6: memref<64x64xbf16, #tpu.memory_space<vmem>>, %arg7: memref<4x64x64xf32, #tpu.memory_space<vmem>>) attributes {dimension_semantics = [#tpu.dimension_semantics<parallel>], iteration_bounds = array<i64: 2>, scalar_prefetch = 0 : i64, scratch_operands = 0 : i64, tpu.core_type = #tpu.core_type<tc>, window_params = [{transform_indices = @transform_0, window_bounds = array<i64: 4, 64, 64>}, {pipeline_mode = #tpu.pipeline_mode<synchronous>, transform_indices = @transform_1, window_bounds = array<i64: 1, 64>}, {pipeline_mode = #tpu.pipeline_mode<synchronous>, transform_indices = @transform_2, window_bounds = array<i64: 1, 64>}, {pipeline_mode = #tpu.pipeline_mode<synchronous>, transform_indices = @transform_3, window_bounds = array<i64: 64, 192>}, {pipeline_mode = #tpu.pipeline_mode<synchronous>, transform_indices = @transform_4, window_bounds = array<i64: 2, 64, 64>}, {pipeline_mode = #tpu.pipeline_mode<synchronous>, transform_indices = @transform_5, window_bounds = array<i64: 64, 64>}, {transform_indices = @transform_6, window_bounds = array<i64: 4, 64, 64>}]} {
    %c0 = arith.constant 0 : index
    %c0_0 = arith.constant 0 : index
    %c0_1 = arith.constant 0 : index
    %0 = vector.load %arg1[%c0, %c0_0, %c0_1] : memref<4x64x64xf32, #tpu.memory_space<vmem>>, vector<4x64x64xf32>
    %1 = vector.shape_cast %0 : vector<4x64x64xf32> to vector<256x64xf32>
    %cst = arith.constant dense<0.000000e+00> : vector<256xf32>
    %2 = vector.multi_reduction <add>, %1, %cst [1] : vector<256x64xf32> to vector<256xf32>
    %3 = vector.shape_cast %2 : vector<256xf32> to vector<256x1xf32>
    %cst_2 = arith.constant 6.400000e+01 : f32
    %4 = vector.broadcast %cst_2 : f32 to vector<256x1xf32>
    %5 = arith.divf %3, %4 : vector<256x1xf32>
    %6 = arith.mulf %1, %1 : vector<256x64xf32>
    %cst_3 = arith.constant dense<0.000000e+00> : vector<256xf32>
    %7 = vector.multi_reduction <add>, %6, %cst_3 [1] : vector<256x64xf32> to vector<256xf32>
    %8 = vector.shape_cast %7 : vector<256xf32> to vector<256x1xf32>
    %cst_4 = arith.constant 6.400000e+01 : f32
    %9 = vector.broadcast %cst_4 : f32 to vector<256x1xf32>
    %10 = arith.divf %8, %9 : vector<256x1xf32>
    %11 = arith.mulf %5, %5 : vector<256x1xf32>
    %12 = arith.subf %10, %11 : vector<256x1xf32>
    %13 = vector.broadcast %5 : vector<256x1xf32> to vector<256x64xf32>
    %14 = arith.subf %1, %13 : vector<256x64xf32>
    %cst_5 = arith.constant 9.99999974E-6 : f32
    %15 = vector.broadcast %cst_5 : f32 to vector<256x1xf32>
    %16 = arith.addf %12, %15 : vector<256x1xf32>
    %17 = math.rsqrt %16 : vector<256x1xf32>
    %18 = vector.broadcast %17 : vector<256x1xf32> to vector<256x64xf32>
    %19 = arith.mulf %14, %18 : vector<256x64xf32>
    %c0_6 = arith.constant 0 : index
    %c0_7 = arith.constant 0 : index
    %20 = vector.load %arg2[%c0_6, %c0_7] : memref<1x64xf32, #tpu.memory_space<vmem>>, vector<1x64xf32>
    %21 = vector.shape_cast %20 : vector<1x64xf32> to vector<64xf32>
    %22 = vector.shape_cast %21 : vector<64xf32> to vector<1x64xf32>
    %23 = vector.broadcast %22 : vector<1x64xf32> to vector<256x64xf32>
    %24 = arith.mulf %19, %23 : vector<256x64xf32>
    %c0_8 = arith.constant 0 : index
    %c0_9 = arith.constant 0 : index
    %25 = vector.load %arg3[%c0_8, %c0_9] : memref<1x64xf32, #tpu.memory_space<vmem>>, vector<1x64xf32>
    %26 = vector.shape_cast %25 : vector<1x64xf32> to vector<64xf32>
    %27 = vector.shape_cast %26 : vector<64xf32> to vector<1x64xf32>
    %28 = vector.broadcast %27 : vector<1x64xf32> to vector<256x64xf32>
    %29 = arith.addf %24, %28 : vector<256x64xf32>
    %30 = arith.truncf %29 : vector<256x64xf32> to vector<256x64xbf16>
    %c0_10 = arith.constant 0 : index
    %c0_11 = arith.constant 0 : index
    %31 = vector.load %arg4[%c0_10, %c0_11] : memref<64x192xbf16, #tpu.memory_space<vmem>>, vector<64x192xbf16>
    %cst_12 = arith.constant dense<0.000000e+00> : vector<256x192xf32>
    %32 = tpu.matmul %30, %31, %cst_12 {dimension_numbers = #tpu.dot_dimension_numbers<[1], [0], [0], [1], [0, 0, 1, 1], [], []>} : vector<256x64xbf16>, vector<64x192xbf16>, vector<256x192xf32> -> vector<256x192xf32>
    %33 = arith.truncf %32 : vector<256x192xf32> to vector<256x192xbf16>
    %34 = vector.extract_strided_slice %33 {offsets = [0, 0], sizes = [256, 32], strides = [1, 1]} : vector<256x192xbf16> to vector<256x32xbf16>
    %35 = vector.shape_cast %34 : vector<256x32xbf16> to vector<4x64x32xbf16>
    %36 = vector.extract_strided_slice %33 {offsets = [0, 32], sizes = [256, 32], strides = [1, 1]} : vector<256x192xbf16> to vector<256x32xbf16>
    %37 = vector.shape_cast %36 : vector<256x32xbf16> to vector<4x64x32xbf16>
    %38 = vector.extract_strided_slice %33 {offsets = [0, 64], sizes = [256, 32], strides = [1, 1]} : vector<256x192xbf16> to vector<256x32xbf16>
    %39 = vector.shape_cast %38 : vector<256x32xbf16> to vector<4x64x32xbf16>
    "tpu.trace_start"() <{level = 10 : i32, message = "bnd,bmd->bnm"}> : () -> ()
    %cst_13 = arith.constant dense<0.000000e+00> : vector<4x64x64xf32>
    %40 = tpu.matmul %35, %37, %cst_13 {dimension_numbers = #tpu.dot_dimension_numbers<[2], [2], [1], [1], [0, 0, 0, 1, 1, 1], [0], [0]>} : vector<4x64x32xbf16>, vector<4x64x32xbf16>, vector<4x64x64xf32> -> vector<4x64x64xf32>
    "tpu.trace_stop"() : () -> ()
    %c0_14 = arith.constant 0 : index
    %c0_15 = arith.constant 0 : index
    %c0_16 = arith.constant 0 : index
    %41 = vector.load %arg5[%c0_14, %c0_15, %c0_16] : memref<2x64x64xf32, #tpu.memory_space<vmem>>, vector<1x64x64xf32>
    %42 = vector.shape_cast %41 : vector<1x64x64xf32> to vector<64x64xf32>
    %43 = vector.shape_cast %42 : vector<64x64xf32> to vector<1x64x64xf32>
    %44 = vector.broadcast %43 : vector<1x64x64xf32> to vector<4x64x64xf32>
    %45 = arith.addf %40, %44 : vector<4x64x64xf32>
    %cst_17 = arith.constant dense<0xFF800000> : vector<4x64xf32>
    %46 = vector.multi_reduction <maximumf>, %45, %cst_17 [2] : vector<4x64x64xf32> to vector<4x64xf32>
    %47 = vector.shape_cast %46 : vector<4x64xf32> to vector<4x64x1xf32>
    %48 = vector.broadcast %47 : vector<4x64x1xf32> to vector<4x64x64xf32>
    %49 = arith.subf %45, %48 : vector<4x64x64xf32>
    %50 = math.exp %49 : vector<4x64x64xf32>
    %cst_18 = arith.constant dense<0.000000e+00> : vector<4x64xf32>
    %51 = vector.multi_reduction <add>, %50, %cst_18 [2] : vector<4x64x64xf32> to vector<4x64xf32>
    %52 = vector.shape_cast %51 : vector<4x64xf32> to vector<4x64x1xf32>
    %53 = arith.truncf %50 : vector<4x64x64xf32> to vector<4x64x64xbf16>
    "tpu.trace_start"() <{level = 10 : i32, message = "bnm,bmd->bnd"}> : () -> ()
    %cst_19 = arith.constant dense<0.000000e+00> : vector<4x64x32xf32>
    %54 = tpu.matmul %53, %39, %cst_19 {dimension_numbers = #tpu.dot_dimension_numbers<[2], [1], [1], [2], [0, 0, 0, 1, 1, 2], [0], [0]>} : vector<4x64x64xbf16>, vector<4x64x32xbf16>, vector<4x64x32xf32> -> vector<4x64x32xf32>
    "tpu.trace_stop"() : () -> ()
    %55 = tpu.reciprocal %52 {approx = true} : vector<4x64x1xf32> -> vector<4x64x1xf32>
    %56 = vector.broadcast %55 : vector<4x64x1xf32> to vector<4x64x32xf32>
    %57 = arith.mulf %54, %56 : vector<4x64x32xf32>
    %58 = vector.extract_strided_slice %33 {offsets = [0, 96], sizes = [256, 32], strides = [1, 1]} : vector<256x192xbf16> to vector<256x32xbf16>
    %59 = vector.shape_cast %58 : vector<256x32xbf16> to vector<4x64x32xbf16>
    %60 = vector.extract_strided_slice %33 {offsets = [0, 128], sizes = [256, 32], strides = [1, 1]} : vector<256x192xbf16> to vector<256x32xbf16>
    %61 = vector.shape_cast %60 : vector<256x32xbf16> to vector<4x64x32xbf16>
    %62 = vector.extract_strided_slice %33 {offsets = [0, 160], sizes = [256, 32], strides = [1, 1]} : vector<256x192xbf16> to vector<256x32xbf16>
    %63 = vector.shape_cast %62 : vector<256x32xbf16> to vector<4x64x32xbf16>
    "tpu.trace_start"() <{level = 10 : i32, message = "bnd,bmd->bnm"}> : () -> ()
    %cst_20 = arith.constant dense<0.000000e+00> : vector<4x64x64xf32>
    %64 = tpu.matmul %59, %61, %cst_20 {dimension_numbers = #tpu.dot_dimension_numbers<[2], [2], [1], [1], [0, 0, 0, 1, 1, 1], [0], [0]>} : vector<4x64x32xbf16>, vector<4x64x32xbf16>, vector<4x64x64xf32> -> vector<4x64x64xf32>
    "tpu.trace_stop"() : () -> ()
    %c1 = arith.constant 1 : index
    %c0_21 = arith.constant 0 : index
    %c0_22 = arith.constant 0 : index
    %65 = vector.load %arg5[%c1, %c0_21, %c0_22] : memref<2x64x64xf32, #tpu.memory_space<vmem>>, vector<1x64x64xf32>
    %66 = vector.shape_cast %65 : vector<1x64x64xf32> to vector<64x64xf32>
    %67 = vector.shape_cast %66 : vector<64x64xf32> to vector<1x64x64xf32>
    %68 = vector.broadcast %67 : vector<1x64x64xf32> to vector<4x64x64xf32>
    %69 = arith.addf %64, %68 : vector<4x64x64xf32>
    %cst_23 = arith.constant dense<0xFF800000> : vector<4x64xf32>
    %70 = vector.multi_reduction <maximumf>, %69, %cst_23 [2] : vector<4x64x64xf32> to vector<4x64xf32>
    %71 = vector.shape_cast %70 : vector<4x64xf32> to vector<4x64x1xf32>
    %72 = vector.broadcast %71 : vector<4x64x1xf32> to vector<4x64x64xf32>
    %73 = arith.subf %69, %72 : vector<4x64x64xf32>
    %74 = math.exp %73 : vector<4x64x64xf32>
    %cst_24 = arith.constant dense<0.000000e+00> : vector<4x64xf32>
    %75 = vector.multi_reduction <add>, %74, %cst_24 [2] : vector<4x64x64xf32> to vector<4x64xf32>
    %76 = vector.shape_cast %75 : vector<4x64xf32> to vector<4x64x1xf32>
    %77 = arith.truncf %74 : vector<4x64x64xf32> to vector<4x64x64xbf16>
    "tpu.trace_start"() <{level = 10 : i32, message = "bnm,bmd->bnd"}> : () -> ()
    %cst_25 = arith.constant dense<0.000000e+00> : vector<4x64x32xf32>
    %78 = tpu.matmul %77, %63, %cst_25 {dimension_numbers = #tpu.dot_dimension_numbers<[2], [1], [1], [2], [0, 0, 0, 1, 1, 2], [0], [0]>} : vector<4x64x64xbf16>, vector<4x64x32xbf16>, vector<4x64x32xf32> -> vector<4x64x32xf32>
    "tpu.trace_stop"() : () -> ()
    %79 = tpu.reciprocal %76 {approx = true} : vector<4x64x1xf32> -> vector<4x64x1xf32>
    %80 = vector.broadcast %79 : vector<4x64x1xf32> to vector<4x64x32xf32>
    %81 = arith.mulf %78, %80 : vector<4x64x32xf32>
    %82 = tpu.concatenate %57, %81 in 2 : vector<4x64x32xf32>, vector<4x64x32xf32> -> vector<4x64x64xf32>
    %83 = vector.shape_cast %82 : vector<4x64x64xf32> to vector<256x64xf32>
    %84 = arith.truncf %83 : vector<256x64xf32> to vector<256x64xbf16>
    %c0_26 = arith.constant 0 : index
    %c0_27 = arith.constant 0 : index
    %85 = vector.load %arg6[%c0_26, %c0_27] : memref<64x64xbf16, #tpu.memory_space<vmem>>, vector<64x64xbf16>
    %cst_28 = arith.constant dense<0.000000e+00> : vector<256x64xf32>
    %86 = tpu.matmul %84, %85, %cst_28 {dimension_numbers = #tpu.dot_dimension_numbers<[1], [0], [0], [1], [0, 0, 1, 1], [], []>} : vector<256x64xbf16>, vector<64x64xbf16>, vector<256x64xf32> -> vector<256x64xf32>
    %87 = vector.shape_cast %86 : vector<256x64xf32> to vector<4x64x64xf32>
    %c0_29 = arith.constant 0 : index
    %c0_30 = arith.constant 0 : index
    %c0_31 = arith.constant 0 : index
    %88 = vector.load %arg7[%c0_29, %c0_30, %c0_31] : memref<4x64x64xf32, #tpu.memory_space<vmem>>, vector<4x64x64xf32>
    tpu.vector_store %arg7[%c0_29, %c0_30, %c0_31], %87 {strides = array<i32>} : memref<4x64x64xf32, #tpu.memory_space<vmem>>, vector<4x64x64xf32>,
    return
  }
  func.func @transform_0(%arg0: i32) -> (i32, i32, i32) {
    %c0_i32 = arith.constant 0 : i32
    %c0_i32_0 = arith.constant 0 : i32
    %c0_i32_1 = arith.constant 0 : i32
    return %arg0, %c0_i32, %c0_i32_0 : i32, i32, i32
  }
  func.func @transform_1(%arg0: i32) -> (i32, i32) {
    %c0_i32 = arith.constant 0 : i32
    %c0_i32_0 = arith.constant 0 : i32
    %c0_i32_1 = arith.constant 0 : i32
    return %c0_i32, %c0_i32_0 : i32, i32
  }
  func.func @transform_2(%arg0: i32) -> (i32, i32) {
    %c0_i32 = arith.constant 0 : i32
    %c0_i32_0 = arith.constant 0 : i32
    %c0_i32_1 = arith.constant 0 : i32
    return %c0_i32, %c0_i32_0 : i32, i32
  }
  func.func @transform_3(%arg0: i32) -> (i32, i32) {
    %c0_i32 = arith.constant 0 : i32
    %c0_i32_0 = arith.constant 0 : i32
    %c0_i32_1 = arith.constant 0 : i32
    return %c0_i32, %c0_i32_0 : i32, i32
  }
  func.func @transform_4(%arg0: i32) -> (i32, i32, i32) {
    %c0_i32 = arith.constant 0 : i32
    %c0_i32_0 = arith.constant 0 : i32
    %c0_i32_1 = arith.constant 0 : i32
    %c0_i32_2 = arith.constant 0 : i32
    return %c0_i32, %c0_i32_0, %c0_i32_1 : i32, i32, i32
  }
  func.func @transform_5(%arg0: i32) -> (i32, i32) {
    %c0_i32 = arith.constant 0 : i32
    %c0_i32_0 = arith.constant 0 : i32
    %c0_i32_1 = arith.constant 0 : i32
    return %c0_i32, %c0_i32_0 : i32, i32
  }
  func.func @transform_6(%arg0: i32) -> (i32, i32, i32) {
    %c0_i32 = arith.constant 0 : i32
    %c0_i32_0 = arith.constant 0 : i32
    %c0_i32_1 = arith.constant 0 : i32
    return %arg0, %c0_i32, %c0_i32_0 : i32, i32, i32
  }
}

</mosaic_0001>

<llo_original>
// kernel: tpu_custom_call.1
$region0: #{tpu_custom_call.1}
  #allocation0 [shape = 'u32[]', space=smem, size = 0x4, offset = 0x4, fixed_abs, tag = 'smem constant byte address 0x4 - core index']
  #allocation1 [shape = 'u32[144,128]{1,0:T(1,128)}', space=vmem, size = 0x12000, scoped, tag = 'internal scratch']
  %s0 = inlined_call_operand.hbm [shape: f32[8,64,64], index: 0, kind: input, shape index: {}]
  %s1 = inlined_call_operand.vmem [shape: f32[1,64], index: 1, kind: input, shape index: {}]
  %s2 = inlined_call_operand.vmem [shape: f32[1,64], index: 2, kind: input, shape index: {}]
  %s3 = inlined_call_operand.hbm [shape: bf16[64,192], index: 3, kind: input, shape index: {}]
  %s4 = inlined_call_operand.hbm [shape: f32[2,64,64], index: 4, kind: input, shape index: {}]
  %s5 = inlined_call_operand.hbm [shape: bf16[64,64], index: 5, kind: input, shape index: {}]
  %s6 = inlined_call_operand.hbm [shape: f32[8,64,64], index: 6, kind: output, shape index: {}]
  %s7 = sld [smem:[#allocation0]]
  $region73: #{tpu_custom_call.1} parent=0
    _
  %s9 = ssub.s32 1, %s7
  %s10 = scalar_select 0, %s9, %s7
  $region1: #{tpu_custom_call.1} parent=0
    #allocation2 [shape = 'u8[262144]{0}', space=vmem, size = 0x40000, scoped, tag = 'input window, operand 0']
    #allocation3 [shape = 's32[2]{0}', space=sflag, size = 0x8, scoped, tag = 'scoped memory for tpu_custom_call.1']
    #allocation4 [shape = 's32[2]{0}', space=sflag, size = 0x8, scoped, tag = 'scoped memory for tpu_custom_call.1']
    #allocation5 [shape = 'u8[32768]{0}', space=vmem, size = 0x8000, scoped, tag = 'input window, operand 3, single buffered']
    #allocation6 [shape = 's32[1]{0}', space=sflag, size = 0x4, scoped, tag = 'scoped memory for tpu_custom_call.1']
    #allocation7 [shape = 'u8[65536]{0}', space=vmem, size = 0x10000, scoped, tag = 'input window, operand 4, single buffered']
    #allocation8 [shape = 'u8[16384]{0}', space=vmem, size = 0x4000, scoped, tag = 'input window, operand 5, single buffered']
    #allocation9 [shape = 's32[1]{0}', space=sflag, size = 0x4, scoped, tag = 'scoped memory for tpu_custom_call.1']
    #allocation10 [shape = 'u8[262144]{0}', space=vmem, size = 0x40000, scoped, tag = 'output window, operand 0']
    %11 = vsyncpa [#allocation3], 0
    %s12 = scalar_lea.sflag [#allocation3], 1
    %13 = vsyncpa %s12, 0
    %14 = vsyncpa [#allocation6], 0
    %15 = vsyncpa [#allocation9], 0
    %16 = vsyncpa [#allocation4], 0
    %s17 = scalar_lea.sflag [#allocation4], 1
    %18 = vsyncpa %s17, 0
    loop: start=0, step=1, limit=4
    $region2: #{tpu_custom_call.1} parent=1 // loop_pre_header
      _
    $region3: #{tpu_custom_call.1} parent=1 // loop_header
      %s20 = sphi 0, %s24
      %p21 = scmp.ge.s32.totalorder %s20, 4
      %s30 = sphi 0, %s32
      %s33 = sphi 0, %s30
      %s34 = sphi 0, %s33
      %s50 = sphi 0, %s34
      %s54 = sphi 0, %s54
      %s56 = sphi 0, %s54
      %s57 = sphi 0, %s56
      %s71 = sphi 0, %s57
      %s75 = sphi 0, %s75
      %s77 = sphi 0, %s75
      %s78 = sphi 0, %s77
      %s92 = sphi 0, %s78
      %s96 = sphi 0, %s96
      %s98 = sphi 0, %s96
      %s99 = sphi 0, %s98
      %s113 = sphi 0, %s99
      %s117 = sphi 0, %s117
      %s119 = sphi 0, %s117
      %s120 = sphi 0, %s119
      %s134 = sphi 0, %s120
      %s138 = sphi 0, %s138
      %s140 = sphi 0, %s138
      %s141 = sphi 0, %s140
      %s155 = sphi 0, %s141
      %s161 = sphi 0, %s163
      %s164 = sphi 0, %s161
      %s165 = sphi 0, %s164
      %s181 = sphi 0, %s165
    $region4: #{tpu_custom_call.1} parent=1 // loop_header_branch
      %23 = sbr.rel (%p21) target = $region8
    $region5: #{tpu_custom_call.1} parent=1 // loop_body
      %s25 = ssub.s32 %s20, 1
      %s26 = ssub.s32 %s20, 2
      %s27 = sadd.s32 %s20, 1
      %s28 = ssub.s32 %s20, %s27
      %p29 = scmp.eq.s32.totalorder %s28, 0
      %s31 = sadd.s32 %s30, 1
      %s32 = scalar_select %p29, %s30, %s31
      %p35 = pneg %p29
      %p36 = scmp.eq.s32.totalorder %s20, 1
      %p37 = por %p35, %p36
      %p38 = scmp.ne.s32.totalorder %s30, %s33
      %p39 = scmp.eq.s32.totalorder %s20, 0
      %p40 = por %p38, %p39
      %p41 = scmp.ne.s32.totalorder %s30, %s33
      %p42 = scmp.eq.s32.totalorder %s25, 1
      %p43 = por %p41, %p42
      %p44 = scmp.ne.s32.totalorder %s33, %s34
      %p45 = scmp.eq.s32.totalorder %s25, 0
      %p46 = por %p44, %p45
      %p47 = scmp.ne.s32.totalorder %s33, %s34
      %p48 = scmp.eq.s32.totalorder %s26, 1
      %p49 = por %p47, %p48
      %p51 = scmp.ne.s32.totalorder %s34, %s50
      %p52 = scmp.eq.s32.totalorder %s26, 0
      %p53 = por %p51, %p52
      %s55 = sadd.s32 %s54, 1
      %p58 = scmp.eq.s32.totalorder %s20, 1
      %p59 = scmp.ne.s32.totalorder %s54, %s56
      %p60 = scmp.eq.s32.totalorder %s20, 0
      %p61 = por %p59, %p60
      %p62 = scmp.ne.s32.totalorder %s54, %s56
      %p63 = scmp.eq.s32.totalorder %s25, 1
      %p64 = por %p62, %p63
      %p65 = scmp.ne.s32.totalorder %s56, %s57
      %p66 = scmp.eq.s32.totalorder %s25, 0
      %p67 = por %p65, %p66
      %p68 = scmp.ne.s32.totalorder %s56, %s57
      %p69 = scmp.eq.s32.totalorder %s26, 1
      %p70 = por %p68, %p69
      %p72 = scmp.ne.s32.totalorder %s57, %s71
      %p73 = scmp.eq.s32.totalorder %s26, 0
      %p74 = por %p72, %p73
      %s76 = sadd.s32 %s75, 1
      %p79 = scmp.eq.s32.totalorder %s20, 1
      %p80 = scmp.ne.s32.totalorder %s75, %s77
      %p81 = scmp.eq.s32.totalorder %s20, 0
      %p82 = por %p80, %p81
      %p83 = scmp.ne.s32.totalorder %s75, %s77
      %p84 = scmp.eq.s32.totalorder %s25, 1
      %p85 = por %p83, %p84
      %p86 = scmp.ne.s32.totalorder %s77, %s78
      %p87 = scmp.eq.s32.totalorder %s25, 0
      %p88 = por %p86, %p87
      %p89 = scmp.ne.s32.totalorder %s77, %s78
      %p90 = scmp.eq.s32.totalorder %s26, 1
      %p91 = por %p89, %p90
      %p93 = scmp.ne.s32.totalorder %s78, %s92
      %p94 = scmp.eq.s32.totalorder %s26, 0
      %p95 = por %p93, %p94
      %s97 = sadd.s32 %s96, 1
      %p100 = scmp.eq.s32.totalorder %s20, 1
      %p101 = scmp.ne.s32.totalorder %s96, %s98
      %p102 = scmp.eq.s32.totalorder %s20, 0
      %p103 = por %p101, %p102
      %p104 = scmp.ne.s32.totalorder %s96, %s98
      %p105 = scmp.eq.s32.totalorder %s25, 1
      %p106 = por %p104, %p105
      %p107 = scmp.ne.s32.totalorder %s98, %s99
      %p108 = scmp.eq.s32.totalorder %s25, 0
      %p109 = por %p107, %p108
      %p110 = scmp.ne.s32.totalorder %s98, %s99
      %p111 = scmp.eq.s32.totalorder %s26, 1
      %p112 = por %p110, %p111
      %p114 = scmp.ne.s32.totalorder %s99, %s113
      %p115 = scmp.eq.s32.totalorder %s26, 0
      %p116 = por %p114, %p115
      %s118 = sadd.s32 %s117, 1
      %p121 = scmp.eq.s32.totalorder %s20, 1
      %p122 = scmp.ne.s32.totalorder %s117, %s119
      %p123 = scmp.eq.s32.totalorder %s20, 0
      %p124 = por %p122, %p123
      %p125 = scmp.ne.s32.totalorder %s117, %s119
      %p126 = scmp.eq.s32.totalorder %s25, 1
      %p127 = por %p125, %p126
      %p128 = scmp.ne.s32.totalorder %s119, %s120
      %p129 = scmp.eq.s32.totalorder %s25, 0
      %p130 = por %p128, %p129
      %p131 = scmp.ne.s32.totalorder %s119, %s120
      %p132 = scmp.eq.s32.totalorder %s26, 1
      %p133 = por %p131, %p132
      %p135 = scmp.ne.s32.totalorder %s120, %s134
      %p136 = scmp.eq.s32.totalorder %s26, 0
      %p137 = por %p135, %p136
      %s139 = sadd.s32 %s138, 1
      %p142 = scmp.eq.s32.totalorder %s20, 1
      %p143 = scmp.ne.s32.totalorder %s138, %s140
      %p144 = scmp.eq.s32.totalorder %s20, 0
      %p145 = por %p143, %p144
      %p146 = scmp.ne.s32.totalorder %s138, %s140
      %p147 = scmp.eq.s32.totalorder %s25, 1
      %p148 = por %p146, %p147
      %p149 = scmp.ne.s32.totalorder %s140, %s141
      %p150 = scmp.eq.s32.totalorder %s25, 0
      %p151 = por %p149, %p150
      %p152 = scmp.ne.s32.totalorder %s140, %s141
      %p153 = scmp.eq.s32.totalorder %s26, 1
      %p154 = por %p152, %p153
      %p156 = scmp.ne.s32.totalorder %s141, %s155
      %p157 = scmp.eq.s32.totalorder %s26, 0
      %p158 = por %p156, %p157
      %s159 = ssub.s32 %s20, %s27
      %p160 = scmp.eq.s32.totalorder %s159, 0
      %s162 = sadd.s32 %s161, 1
      %s163 = scalar_select %p160, %s161, %s162
      %p166 = pneg %p160
      %p167 = scmp.eq.s32.totalorder %s20, 1
      %p168 = por %p166, %p167
      %p169 = scmp.ne.s32.totalorder %s161, %s164
      %p170 = scmp.eq.s32.totalorder %s20, 0
      %p171 = por %p169, %p170
      %p172 = scmp.ne.s32.totalorder %s161, %s164
      %p173 = scmp.eq.s32.totalorder %s25, 1
      %p174 = por %p172, %p173
      %p175 = scmp.ne.s32.totalorder %s164, %s165
      %p176 = scmp.eq.s32.totalorder %s25, 0
      %p177 = por %p175, %p176
      %p178 = scmp.ne.s32.totalorder %s164, %s165
      %p179 = scmp.eq.s32.totalorder %s26, 1
      %p180 = por %p178, %p179
      %p182 = scmp.ne.s32.totalorder %s165, %s181
      %p183 = scmp.eq.s32.totalorder %s26, 0
      %p184 = por %p182, %p183
      %p185 = scmp.le.s32.totalorder 1, %s20
      %p186 = scmp.lt.s32.totalorder %s20, 3
      %p187 = pnand %p185, %p186
      %p188 = pneg %p187
      // Predicated region
      $region9: #{tpu_custom_call.1} parent=5 // pred_check
        _
      $region10: #{tpu_custom_call.1} parent=5 // pred_check_branch
        %190 = sbr.rel (%p187) target = $region12
      $region11: #{tpu_custom_call.1} parent=5 // pred_region
        %s191 = ssub.s32 %s20, 1
        // Predicated region
        $region13: #{tpu_custom_call.1} parent=11 // pred_check
          %p192 = pneg %p67
        $region14: #{tpu_custom_call.1} parent=11 // pred_check_branch
          %194 = sbr.rel (%p192) target = $region16
        $region15: #{tpu_custom_call.1} parent=11 // pred_region
          _
        $region16: #{tpu_custom_call.1} parent=11 // pred_fallthru
          _
        // Predicated region
        $region17: #{tpu_custom_call.1} parent=11 // pred_check
          %p195 = pneg %p88
        $region18: #{tpu_custom_call.1} parent=11 // pred_check_branch
          %197 = sbr.rel (%p195) target = $region20
        $region19: #{tpu_custom_call.1} parent=11 // pred_region
          _
        $region20: #{tpu_custom_call.1} parent=11 // pred_fallthru
          _
        // Predicated region
        $region21: #{tpu_custom_call.1} parent=11 // pred_check
          %p198 = pneg %p109
        $region22: #{tpu_custom_call.1} parent=11 // pred_check_branch
          %200 = sbr.rel (%p198) target = $region24
        $region23: #{tpu_custom_call.1} parent=11 // pred_region
          %s202 = ssub.s32 1024, 1024
          %203 = vsyncadd [#allocation6], %s202
          %s204 = sshll.u32 [#allocation5], 4
          %s205 = int_to_ptr.vmem [resolvable:$true] %s204
          %210 = dma.hbm_to_vmem [thread:$0]  %s3, 1024, %s205, [#allocation6], 128, 128, 8
        $region24: #{tpu_custom_call.1} parent=11 // pred_fallthru
          _
        // Predicated region
        $region25: #{tpu_custom_call.1} parent=11 // pred_check
          %p211 = pneg %p130
        $region26: #{tpu_custom_call.1} parent=11 // pred_check_branch
          %213 = sbr.rel (%p211) target = $region28
        $region27: #{tpu_custom_call.1} parent=11 // pred_region
          %s215 = ssub.s32 2048, 2048
          %216 = vsyncadd [#allocation6], %s215
          %s217 = sshll.u32 [#allocation7], 4
          %s218 = int_to_ptr.vmem [resolvable:$true] %s217
          %223 = dma.hbm_to_vmem [thread:$0]  %s4, 2048, %s218, [#allocation6], 128, 128, 8
        $region28: #{tpu_custom_call.1} parent=11 // pred_fallthru
          _
        // Predicated region
        $region29: #{tpu_custom_call.1} parent=11 // pred_check
          %p224 = pneg %p151
        $region30: #{tpu_custom_call.1} parent=11 // pred_check_branch
          %226 = sbr.rel (%p224) target = $region32
        $region31: #{tpu_custom_call.1} parent=11 // pred_region
          %s228 = ssub.s32 512, 512
          %229 = vsyncadd [#allocation9], %s228
          %s230 = sshll.u32 [#allocation8], 4
          %s231 = int_to_ptr.vmem [resolvable:$true] %s230
          %236 = dma.hbm_to_vmem [thread:$0]  %s5, 512, %s231, [#allocation9], 64, 64, 4
        $region32: #{tpu_custom_call.1} parent=11 // pred_fallthru
          _
      $region12: #{tpu_custom_call.1} parent=5 // pred_fallthru
        _
      %p237 = scmp.lt.s32.totalorder %s20, 2
      // Predicated region
      $region33: #{tpu_custom_call.1} parent=5 // pred_check
        %p238 = pneg %p237
      $region34: #{tpu_custom_call.1} parent=5 // pred_check_branch
        %240 = sbr.rel (%p238) target = $region36
      $region35: #{tpu_custom_call.1} parent=5 // pred_region
        // Predicated region
        $region37: #{tpu_custom_call.1} parent=35 // pred_check
          %p241 = pneg %p40
        $region38: #{tpu_custom_call.1} parent=35 // pred_check_branch
          %243 = sbr.rel (%p241) target = $region40
        $region39: #{tpu_custom_call.1} parent=35 // pred_region
          %s244 = sand.u32 %s30, 1
          %s245 = scalar_lea.sflag [#allocation3], %s244
          %s246 = sand.u32 %s30, 1
          %s247 = smul.addr %s246, 256
          %s248 = scalar_lea.vmem [#allocation2], %s247
          %s249 = smul.u32 4, %s20
          %s251 = ssub.s32 4096, 4096
          %252 = vsyncadd %s245, %s251
          %s253 = smul.addr %s249, 8
          %s254 = smul.addr %s253, 128
          %s255 = scalar_lea.hbm %s0, %s254
          %s256 = sshll.u32 %s248, 4
          %s257 = int_to_ptr.vmem [resolvable:$true] %s256
          %262 = dma.hbm_to_vmem [thread:$0]  %s255, 4096, %s257, %s245, 128, 128, 8
        $region40: #{tpu_custom_call.1} parent=35 // pred_fallthru
          _
      $region36: #{tpu_custom_call.1} parent=5 // pred_fallthru
        _
      %p263 = scmp.le.s32.totalorder 1, %s20
      %p264 = scmp.lt.s32.totalorder %s20, 3
      %p265 = pnand %p263, %p264
      %p266 = pneg %p265
      // Predicated region
      $region41: #{tpu_custom_call.1} parent=5 // pred_check
        _
      $region42: #{tpu_custom_call.1} parent=5 // pred_check_branch
        %268 = sbr.rel (%p265) target = $region44
      $region43: #{tpu_custom_call.1} parent=5 // pred_region
        %s269 = ssub.s32 %s20, 1
        %s270 = sand.u32 %s33, 1
        %s271 = scalar_lea.sflag [#allocation3], %s270
        %s272 = sand.u32 %s33, 1
        %s273 = smul.addr %s272, 256
        %s274 = scalar_lea.vmem [#allocation2], %s273
        // Predicated region
        $region45: #{tpu_custom_call.1} parent=43 // pred_check
          %p275 = pneg %p46
        $region46: #{tpu_custom_call.1} parent=43 // pred_check_branch
          %277 = sbr.rel (%p275) target = $region48
        $region47: #{tpu_custom_call.1} parent=43 // pred_region
          %278 = dma.done %s271, 4096
        $region48: #{tpu_custom_call.1} parent=43 // pred_fallthru
          _
        // Predicated region
        $region49: #{tpu_custom_call.1} parent=43 // pred_check
          %p279 = pneg %p109
        $region50: #{tpu_custom_call.1} parent=43 // pred_check_branch
          %281 = sbr.rel (%p279) target = $region52
        $region51: #{tpu_custom_call.1} parent=43 // pred_region
          %282 = dma.done [#allocation6], 1024
        $region52: #{tpu_custom_call.1} parent=43 // pred_fallthru
          _
        // Predicated region
        $region53: #{tpu_custom_call.1} parent=43 // pred_check
          %p283 = pneg %p130
        $region54: #{tpu_custom_call.1} parent=43 // pred_check_branch
          %285 = sbr.rel (%p283) target = $region56
        $region55: #{tpu_custom_call.1} parent=43 // pred_region
          %286 = dma.done [#allocation6], 2048
        $region56: #{tpu_custom_call.1} parent=43 // pred_fallthru
          _
        // Predicated region
        $region57: #{tpu_custom_call.1} parent=43 // pred_check
          %p287 = pneg %p151
        $region58: #{tpu_custom_call.1} parent=43 // pred_check_branch
          %289 = sbr.rel (%p287) target = $region60
        $region59: #{tpu_custom_call.1} parent=43 // pred_region
          %290 = dma.done [#allocation9], 512
        $region60: #{tpu_custom_call.1} parent=43 // pred_fallthru
          _
        %s291 = sand.u32 %s33, 1
        %s292 = scalar_lea.sflag [#allocation3], %s291
        %s293 = sand.u32 %s33, 1
        %s294 = smul.addr %s293, 256
        %s295 = scalar_lea.vmem [#allocation2], %s294
        %p296 = pneg %p46
        %p297 = pneg %p43
        %p298 = pneg %p67
        %p299 = pneg %p64
        %p300 = pneg %p88
        %p301 = pneg %p85
        %p302 = pneg %p109
        %p303 = pneg %p106
        %p304 = pneg %p130
        %p305 = pneg %p127
        %p306 = pneg %p151
        %p307 = pneg %p148
        %p308 = pneg %p177
        %p309 = pneg %p174
        %s310 = sand.u32 %s164, 1
        %s311 = scalar_lea.sflag [#allocation4], %s310
        %s312 = sand.u32 %s164, 1
        %s313 = smul.addr %s312, 256
        %s314 = scalar_lea.vmem [#allocation10], %s313
        %s315 = smul.u32 4, %s25
        %s316 = smul.u32 4, %s25
        %v318 = vld [vmem:[%s274] sm:$0xff]
        %v319 = vld [vmem:[%s274 + $0x8] sm:$0xff]
        %v320 = vld [vmem:[%s274 + $0x10] sm:$0xff]
        %v321 = vld [vmem:[%s274 + $0x18] sm:$0xff]
        %v322 = vld [vmem:[%s274 + $0x20] sm:$0xff]
        %v323 = vld [vmem:[%s274 + $0x28] sm:$0xff]
        %v324 = vld [vmem:[%s274 + $0x30] sm:$0xff]
        %v325 = vld [vmem:[%s274 + $0x38] sm:$0xff]
        %v326 = vld [vmem:[%s274 + $0x40] sm:$0xff]
        %v327 = vld [vmem:[%s274 + $0x48] sm:$0xff]
        %v328 = vld [vmem:[%s274 + $0x50] sm:$0xff]
        %v329 = vld [vmem:[%s274 + $0x58] sm:$0xff]
        %v330 = vld [vmem:[%s274 + $0x60] sm:$0xff]
        %v331 = vld [vmem:[%s274 + $0x68] sm:$0xff]
        %v332 = vld [vmem:[%s274 + $0x70] sm:$0xff]
        %v333 = vld [vmem:[%s274 + $0x78] sm:$0xff]
        %v334 = vld [vmem:[%s274 + $0x80] sm:$0xff]
        %v335 = vld [vmem:[%s274 + $0x88] sm:$0xff]
        %v336 = vld [vmem:[%s274 + $0x90] sm:$0xff]
        %v337 = vld [vmem:[%s274 + $0x98] sm:$0xff]
        %v338 = vld [vmem:[%s274 + $0xa0] sm:$0xff]
        %v339 = vld [vmem:[%s274 + $0xa8] sm:$0xff]
        %v340 = vld [vmem:[%s274 + $0xb0] sm:$0xff]
        %v341 = vld [vmem:[%s274 + $0xb8] sm:$0xff]
        %v342 = vld [vmem:[%s274 + $0xc0] sm:$0xff]
        %v343 = vld [vmem:[%s274 + $0xc8] sm:$0xff]
        %v344 = vld [vmem:[%s274 + $0xd0] sm:$0xff]
        %v345 = vld [vmem:[%s274 + $0xd8] sm:$0xff]
        %v346 = vld [vmem:[%s274 + $0xe0] sm:$0xff]
        %v347 = vld [vmem:[%s274 + $0xe8] sm:$0xff]
        %v348 = vld [vmem:[%s274 + $0xf0] sm:$0xff]
        %v349 = vld [vmem:[%s274 + $0xf8] sm:$0xff]
        %vm350 = vcmask 523264
        %v351 = vsel %vm350, %v318, 0.0
        %352 = vadd.xlane.f32.xlu0 %v351
        %v353 = vpop.xlane.xlu0 %352
        %v354 = vsel %vm350, %v319, 0.0
        %355 = vadd.xlane.f32.xlu0 %v354
        %v356 = vpop.xlane.xlu0 %355
        %v357 = vsel %vm350, %v320, 0.0
        %358 = vadd.xlane.f32.xlu0 %v357
        %v359 = vpop.xlane.xlu0 %358
        %v360 = vsel %vm350, %v321, 0.0
        %361 = vadd.xlane.f32.xlu0 %v360
        %v362 = vpop.xlane.xlu0 %361
        %v363 = vsel %vm350, %v322, 0.0
        %364 = vadd.xlane.f32.xlu0 %v363
        %v365 = vpop.xlane.xlu0 %364
        %v366 = vsel %vm350, %v323, 0.0
        %367 = vadd.xlane.f32.xlu0 %v366
        %v368 = vpop.xlane.xlu0 %367
        %v369 = vsel %vm350, %v324, 0.0
        %370 = vadd.xlane.f32.xlu0 %v369
        %v371 = vpop.xlane.xlu0 %370
        %v372 = vsel %vm350, %v325, 0.0
        %373 = vadd.xlane.f32.xlu0 %v372
        %v374 = vpop.xlane.xlu0 %373
        %v375 = vsel %vm350, %v326, 0.0
        %376 = vadd.xlane.f32.xlu0 %v375
        %v377 = vpop.xlane.xlu0 %376
        %v378 = vsel %vm350, %v327, 0.0
        %379 = vadd.xlane.f32.xlu0 %v378
        %v380 = vpop.xlane.xlu0 %379
        %v381 = vsel %vm350, %v328, 0.0
        %382 = vadd.xlane.f32.xlu0 %v381
        %v383 = vpop.xlane.xlu0 %382
        %v384 = vsel %vm350, %v329, 0.0
        %385 = vadd.xlane.f32.xlu0 %v384
        %v386 = vpop.xlane.xlu0 %385
        %v387 = vsel %vm350, %v330, 0.0
        %388 = vadd.xlane.f32.xlu0 %v387
        %v389 = vpop.xlane.xlu0 %388
        %v390 = vsel %vm350, %v331, 0.0
        %391 = vadd.xlane.f32.xlu0 %v390
        %v392 = vpop.xlane.xlu0 %391
        %v393 = vsel %vm350, %v332, 0.0
        %394 = vadd.xlane.f32.xlu0 %v393
        %v395 = vpop.xlane.xlu0 %394
        %v396 = vsel %vm350, %v333, 0.0
        %397 = vadd.xlane.f32.xlu0 %v396
        %v398 = vpop.xlane.xlu0 %397
        %v399 = vsel %vm350, %v334, 0.0
        %400 = vadd.xlane.f32.xlu0 %v399
        %v401 = vpop.xlane.xlu0 %400
        %v402 = vsel %vm350, %v335, 0.0
        %403 = vadd.xlane.f32.xlu0 %v402
        %v404 = vpop.xlane.xlu0 %403
        %v405 = vsel %vm350, %v336, 0.0
        %406 = vadd.xlane.f32.xlu0 %v405
        %v407 = vpop.xlane.xlu0 %406
        %v408 = vsel %vm350, %v337, 0.0
        %409 = vadd.xlane.f32.xlu0 %v408
        %v410 = vpop.xlane.xlu0 %409
        %v411 = vsel %vm350, %v338, 0.0
        %412 = vadd.xlane.f32.xlu0 %v411
        %v413 = vpop.xlane.xlu0 %412
        %v414 = vsel %vm350, %v339, 0.0
        %415 = vadd.xlane.f32.xlu0 %v414
        %v416 = vpop.xlane.xlu0 %415
        %v417 = vsel %vm350, %v340, 0.0
        %418 = vadd.xlane.f32.xlu0 %v417
        %v419 = vpop.xlane.xlu0 %418
        %v420 = vsel %vm350, %v341, 0.0
        %421 = vadd.xlane.f32.xlu0 %v420
        %v422 = vpop.xlane.xlu0 %421
        %v423 = vsel %vm350, %v342, 0.0
        %424 = vadd.xlane.f32.xlu0 %v423
        %v425 = vpop.xlane.xlu0 %424
        %v426 = vsel %vm350, %v343, 0.0
        %427 = vadd.xlane.f32.xlu0 %v426
        %v428 = vpop.xlane.xlu0 %427
        %v429 = vsel %vm350, %v344, 0.0
        %430 = vadd.xlane.f32.xlu0 %v429
        %v431 = vpop.xlane.xlu0 %430
        %v432 = vsel %vm350, %v345, 0.0
        %433 = vadd.xlane.f32.xlu0 %v432
        %v434 = vpop.xlane.xlu0 %433
        %v435 = vsel %vm350, %v346, 0.0
        %436 = vadd.xlane.f32.xlu0 %v435
        %v437 = vpop.xlane.xlu0 %436
        %v438 = vsel %vm350, %v347, 0.0
        %439 = vadd.xlane.f32.xlu0 %v438
        %v440 = vpop.xlane.xlu0 %439
        %v441 = vsel %vm350, %v348, 0.0
        %442 = vadd.xlane.f32.xlu0 %v441
        %v443 = vpop.xlane.xlu0 %442
        %v444 = vsel %vm350, %v349, 0.0
        %445 = vadd.xlane.f32.xlu0 %v444
        %v446 = vpop.xlane.xlu0 %445
        %v447 = vrcp.pop 64.0
        %v448 = vmul.f32 %v353, %v447
        %v449 = vmul.f32 %v356, %v447
        %v450 = vmul.f32 %v359, %v447
        %v451 = vmul.f32 %v362, %v447
        %v452 = vmul.f32 %v365, %v447
        %v453 = vmul.f32 %v368, %v447
        %v454 = vmul.f32 %v371, %v447
        %v455 = vmul.f32 %v374, %v447
        %v456 = vmul.f32 %v377, %v447
        %v457 = vmul.f32 %v380, %v447
        %v458 = vmul.f32 %v383, %v447
        %v459 = vmul.f32 %v386, %v447
        %v460 = vmul.f32 %v389, %v447
        %v461 = vmul.f32 %v392, %v447
        %v462 = vmul.f32 %v395, %v447
        %v463 = vmul.f32 %v398, %v447
        %v464 = vmul.f32 %v401, %v447
        %v465 = vmul.f32 %v404, %v447
        %v466 = vmul.f32 %v407, %v447
        %v467 = vmul.f32 %v410, %v447
        %v468 = vmul.f32 %v413, %v447
        %v469 = vmul.f32 %v416, %v447
        %v470 = vmul.f32 %v419, %v447
        %v471 = vmul.f32 %v422, %v447
        %v472 = vmul.f32 %v425, %v447
        %v473 = vmul.f32 %v428, %v447
        %v474 = vmul.f32 %v431, %v447
        %v475 = vmul.f32 %v434, %v447
        %v476 = vmul.f32 %v437, %v447
        %v477 = vmul.f32 %v440, %v447
        %v478 = vmul.f32 %v443, %v447
        %v479 = vmul.f32 %v446, %v447
        %v480 = vmul.f32 %v318, %v318
        %v481 = vmul.f32 %v319, %v319
        %v482 = vmul.f32 %v320, %v320
        %v483 = vmul.f32 %v321, %v321
        %v484 = vmul.f32 %v322, %v322
        %v485 = vmul.f32 %v323, %v323
        %v486 = vmul.f32 %v324, %v324
        %v487 = vmul.f32 %v325, %v325
        %v488 = vmul.f32 %v326, %v326
        %v489 = vmul.f32 %v327, %v327
        %v490 = vmul.f32 %v328, %v328
        %v491 = vmul.f32 %v329, %v329
        %v492 = vmul.f32 %v330, %v330
        %v493 = vmul.f32 %v331, %v331
        %v494 = vmul.f32 %v332, %v332
        %v495 = vmul.f32 %v333, %v333
        %v496 = vmul.f32 %v334, %v334
        %v497 = vmul.f32 %v335, %v335
        %v498 = vmul.f32 %v336, %v336
        %v499 = vmul.f32 %v337, %v337
        %v500 = vmul.f32 %v338, %v338
        %v501 = vmul.f32 %v339, %v339
        %v502 = vmul.f32 %v340, %v340
        %v503 = vmul.f32 %v341, %v341
        %v504 = vmul.f32 %v342, %v342
        %v505 = vmul.f32 %v343, %v343
        %v506 = vmul.f32 %v344, %v344
        %v507 = vmul.f32 %v345, %v345
        %v508 = vmul.f32 %v346, %v346
        %v509 = vmul.f32 %v347, %v347
        %v510 = vmul.f32 %v348, %v348
        %v511 = vmul.f32 %v349, %v349
        %v512 = vsel %vm350, %v480, 0.0
        %513 = vadd.xlane.f32.xlu0 %v512
        %v514 = vpop.xlane.xlu0 %513
        %v515 = vsel %vm350, %v481, 0.0
        %516 = vadd.xlane.f32.xlu0 %v515
        %v517 = vpop.xlane.xlu0 %516
        %v518 = vsel %vm350, %v482, 0.0
        %519 = vadd.xlane.f32.xlu0 %v518
        %v520 = vpop.xlane.xlu0 %519
        %v521 = vsel %vm350, %v483, 0.0
        %522 = vadd.xlane.f32.xlu0 %v521
        %v523 = vpop.xlane.xlu0 %522
        %v524 = vsel %vm350, %v484, 0.0
        %525 = vadd.xlane.f32.xlu0 %v524
        %v526 = vpop.xlane.xlu0 %525
        %v527 = vsel %vm350, %v485, 0.0
        %528 = vadd.xlane.f32.xlu0 %v527
        %v529 = vpop.xlane.xlu0 %528
        %v530 = vsel %vm350, %v486, 0.0
        %531 = vadd.xlane.f32.xlu0 %v530
        %v532 = vpop.xlane.xlu0 %531
        %v533 = vsel %vm350, %v487, 0.0
        %534 = vadd.xlane.f32.xlu0 %v533
        %v535 = vpop.xlane.xlu0 %534
        %v536 = vsel %vm350, %v488, 0.0
        %537 = vadd.xlane.f32.xlu0 %v536
        %v538 = vpop.xlane.xlu0 %537
        %v539 = vsel %vm350, %v489, 0.0
        %540 = vadd.xlane.f32.xlu0 %v539
        %v541 = vpop.xlane.xlu0 %540
        %v542 = vsel %vm350, %v490, 0.0
        %543 = vadd.xlane.f32.xlu0 %v542
        %v544 = vpop.xlane.xlu0 %543
        %v545 = vsel %vm350, %v491, 0.0
        %546 = vadd.xlane.f32.xlu0 %v545
        %v547 = vpop.xlane.xlu0 %546
        %v548 = vsel %vm350, %v492, 0.0
        %549 = vadd.xlane.f32.xlu0 %v548
        %v550 = vpop.xlane.xlu0 %549
        %v551 = vsel %vm350, %v493, 0.0
        %552 = vadd.xlane.f32.xlu0 %v551
        %v553 = vpop.xlane.xlu0 %552
        %v554 = vsel %vm350, %v494, 0.0
        %555 = vadd.xlane.f32.xlu0 %v554
        %v556 = vpop.xlane.xlu0 %555
        %v557 = vsel %vm350, %v495, 0.0
        %558 = vadd.xlane.f32.xlu0 %v557
        %v559 = vpop.xlane.xlu0 %558
        %v560 = vsel %vm350, %v496, 0.0
        %561 = vadd.xlane.f32.xlu0 %v560
        %v562 = vpop.xlane.xlu0 %561
        %v563 = vsel %vm350, %v497, 0.0
        %564 = vadd.xlane.f32.xlu0 %v563
        %v565 = vpop.xlane.xlu0 %564
        %v566 = vsel %vm350, %v498, 0.0
        %567 = vadd.xlane.f32.xlu0 %v566
        %v568 = vpop.xlane.xlu0 %567
        %v569 = vsel %vm350, %v499, 0.0
        %570 = vadd.xlane.f32.xlu0 %v569
        %v571 = vpop.xlane.xlu0 %570
        %v572 = vsel %vm350, %v500, 0.0
        %573 = vadd.xlane.f32.xlu0 %v572
        %v574 = vpop.xlane.xlu0 %573
        %v575 = vsel %vm350, %v501, 0.0
        %576 = vadd.xlane.f32.xlu0 %v575
        %v577 = vpop.xlane.xlu0 %576
        %v578 = vsel %vm350, %v502, 0.0
        %579 = vadd.xlane.f32.xlu0 %v578
        %v580 = vpop.xlane.xlu0 %579
        %v581 = vsel %vm350, %v503, 0.0
        %582 = vadd.xlane.f32.xlu0 %v581
        %v583 = vpop.xlane.xlu0 %582
        %v584 = vsel %vm350, %v504, 0.0
        %585 = vadd.xlane.f32.xlu0 %v584
        %v586 = vpop.xlane.xlu0 %585
        %v587 = vsel %vm350, %v505, 0.0
        %588 = vadd.xlane.f32.xlu0 %v587
        %v589 = vpop.xlane.xlu0 %588
        %v590 = vsel %vm350, %v506, 0.0
        %591 = vadd.xlane.f32.xlu0 %v590
        %v592 = vpop.xlane.xlu0 %591
        %v593 = vsel %vm350, %v507, 0.0
        %594 = vadd.xlane.f32.xlu0 %v593
        %v595 = vpop.xlane.xlu0 %594
        %v596 = vsel %vm350, %v508, 0.0
        %597 = vadd.xlane.f32.xlu0 %v596
        %v598 = vpop.xlane.xlu0 %597
        %v599 = vsel %vm350, %v509, 0.0
        %600 = vadd.xlane.f32.xlu0 %v599
        %v601 = vpop.xlane.xlu0 %600
        %v602 = vsel %vm350, %v510, 0.0
        %603 = vadd.xlane.f32.xlu0 %v602
        %v604 = vpop.xlane.xlu0 %603
        %v605 = vsel %vm350, %v511, 0.0
        %606 = vadd.xlane.f32.xlu0 %v605
        %v607 = vpop.xlane.xlu0 %606
        %v608 = vmul.f32 %v514, %v447
        %v609 = vmul.f32 %v517, %v447
        %v610 = vmul.f32 %v520, %v447
        %v611 = vmul.f32 %v523, %v447
        %v612 = vmul.f32 %v526, %v447
        %v613 = vmul.f32 %v529, %v447
        %v614 = vmul.f32 %v532, %v447
        %v615 = vmul.f32 %v535, %v447
        %v616 = vmul.f32 %v538, %v447
        %v617 = vmul.f32 %v541, %v447
        %v618 = vmul.f32 %v544, %v447
        %v619 = vmul.f32 %v547, %v447
        %v620 = vmul.f32 %v550, %v447
        %v621 = vmul.f32 %v553, %v447
        %v622 = vmul.f32 %v556, %v447
        %v623 = vmul.f32 %v559, %v447
        %v624 = vmul.f32 %v562, %v447
        %v625 = vmul.f32 %v565, %v447
        %v626 = vmul.f32 %v568, %v447
        %v627 = vmul.f32 %v571, %v447
        %v628 = vmul.f32 %v574, %v447
        %v629 = vmul.f32 %v577, %v447
        %v630 = vmul.f32 %v580, %v447
        %v631 = vmul.f32 %v583, %v447
        %v632 = vmul.f32 %v586, %v447
        %v633 = vmul.f32 %v589, %v447
        %v634 = vmul.f32 %v592, %v447
        %v635 = vmul.f32 %v595, %v447
        %v636 = vmul.f32 %v598, %v447
        %v637 = vmul.f32 %v601, %v447
        %v638 = vmul.f32 %v604, %v447
        %v639 = vmul.f32 %v607, %v447
        %v640 = vmul.f32 %v448, %v448
        %v641 = vmul.f32 %v449, %v449
        %v642 = vmul.f32 %v450, %v450
        %v643 = vmul.f32 %v451, %v451
        %v644 = vmul.f32 %v452, %v452
        %v645 = vmul.f32 %v453, %v453
        %v646 = vmul.f32 %v454, %v454
        %v647 = vmul.f32 %v455, %v455
        %v648 = vmul.f32 %v456, %v456
        %v649 = vmul.f32 %v457, %v457
        %v650 = vmul.f32 %v458, %v458
        %v651 = vmul.f32 %v459, %v459
        %v652 = vmul.f32 %v460, %v460
        %v653 = vmul.f32 %v461, %v461
        %v654 = vmul.f32 %v462, %v462
        %v655 = vmul.f32 %v463, %v463
        %v656 = vmul.f32 %v464, %v464
        %v657 = vmul.f32 %v465, %v465
        %v658 = vmul.f32 %v466, %v466
        %v659 = vmul.f32 %v467, %v467
        %v660 = vmul.f32 %v468, %v468
        %v661 = vmul.f32 %v469, %v469
        %v662 = vmul.f32 %v470, %v470
        %v663 = vmul.f32 %v471, %v471
        %v664 = vmul.f32 %v472, %v472
        %v665 = vmul.f32 %v473, %v473
        %v666 = vmul.f32 %v474, %v474
        %v667 = vmul.f32 %v475, %v475
        %v668 = vmul.f32 %v476, %v476
        %v669 = vmul.f32 %v477, %v477
        %v670 = vmul.f32 %v478, %v478
        %v671 = vmul.f32 %v479, %v479
        %v672 = vsub.f32 %v608, %v640
        %v673 = vsub.f32 %v609, %v641
        %v674 = vsub.f32 %v610, %v642
        %v675 = vsub.f32 %v611, %v643
        %v676 = vsub.f32 %v612, %v644
        %v677 = vsub.f32 %v613, %v645
        %v678 = vsub.f32 %v614, %v646
        %v679 = vsub.f32 %v615, %v647
        %v680 = vsub.f32 %v616, %v648
        %v681 = vsub.f32 %v617, %v649
        %v682 = vsub.f32 %v618, %v650
        %v683 = vsub.f32 %v619, %v651
        %v684 = vsub.f32 %v620, %v652
        %v685 = vsub.f32 %v621, %v653
        %v686 = vsub.f32 %v622, %v654
        %v687 = vsub.f32 %v623, %v655
        %v688 = vsub.f32 %v624, %v656
        %v689 = vsub.f32 %v625, %v657
        %v690 = vsub.f32 %v626, %v658
        %v691 = vsub.f32 %v627, %v659
        %v692 = vsub.f32 %v628, %v660
        %v693 = vsub.f32 %v629, %v661
        %v694 = vsub.f32 %v630, %v662
        %v695 = vsub.f32 %v631, %v663
        %v696 = vsub.f32 %v632, %v664
        %v697 = vsub.f32 %v633, %v665
        %v698 = vsub.f32 %v634, %v666
        %v699 = vsub.f32 %v635, %v667
        %v700 = vsub.f32 %v636, %v668
        %v701 = vsub.f32 %v637, %v669
        %v702 = vsub.f32 %v638, %v670
        %v703 = vsub.f32 %v639, %v671
        %v704 = vsub.f32 %v318, %v448
        %v705 = vsub.f32 %v319, %v449
        %v706 = vsub.f32 %v320, %v450
        %v707 = vsub.f32 %v321, %v451
        %v708 = vsub.f32 %v322, %v452
        %v709 = vsub.f32 %v323, %v453
        %v710 = vsub.f32 %v324, %v454
        %v711 = vsub.f32 %v325, %v455
        %v712 = vsub.f32 %v326, %v456
        %v713 = vsub.f32 %v327, %v457
        %v714 = vsub.f32 %v328, %v458
        %v715 = vsub.f32 %v329, %v459
        %v716 = vsub.f32 %v330, %v460
        %v717 = vsub.f32 %v331, %v461
        %v718 = vsub.f32 %v332, %v462
        %v719 = vsub.f32 %v333, %v463
        %v720 = vsub.f32 %v334, %v464
        %v721 = vsub.f32 %v335, %v465
        %v722 = vsub.f32 %v336, %v466
        %v723 = vsub.f32 %v337, %v467
        %v724 = vsub.f32 %v338, %v468
        %v725 = vsub.f32 %v339, %v469
        %v726 = vsub.f32 %v340, %v470
        %v727 = vsub.f32 %v341, %v471
        %v728 = vsub.f32 %v342, %v472
        %v729 = vsub.f32 %v343, %v473
        %v730 = vsub.f32 %v344, %v474
        %v731 = vsub.f32 %v345, %v475
        %v732 = vsub.f32 %v346, %v476
        %v733 = vsub.f32 %v347, %v477
        %v734 = vsub.f32 %v348, %v478
        %v735 = vsub.f32 %v349, %v479
        %v736 = vadd.f32 %v672, 1e-05
        %v737 = vadd.f32 %v673, 1e-05
        %v738 = vadd.f32 %v674, 1e-05
        %v739 = vadd.f32 %v675, 1e-05
        %v740 = vadd.f32 %v676, 1e-05
        %v741 = vadd.f32 %v677, 1e-05
        %v742 = vadd.f32 %v678, 1e-05
        %v743 = vadd.f32 %v679, 1e-05
        %v744 = vadd.f32 %v680, 1e-05
        %v745 = vadd.f32 %v681, 1e-05
        %v746 = vadd.f32 %v682, 1e-05
        %v747 = vadd.f32 %v683, 1e-05
        %v748 = vadd.f32 %v684, 1e-05
        %v749 = vadd.f32 %v685, 1e-05
        %v750 = vadd.f32 %v686, 1e-05
        %v751 = vadd.f32 %v687, 1e-05
        %v752 = vadd.f32 %v688, 1e-05
        %v753 = vadd.f32 %v689, 1e-05
        %v754 = vadd.f32 %v690, 1e-05
        %v755 = vadd.f32 %v691, 1e-05
        %v756 = vadd.f32 %v692, 1e-05
        %v757 = vadd.f32 %v693, 1e-05
        %v758 = vadd.f32 %v694, 1e-05
        %v759 = vadd.f32 %v695, 1e-05
        %v760 = vadd.f32 %v696, 1e-05
        %v761 = vadd.f32 %v697, 1e-05
        %v762 = vadd.f32 %v698, 1e-05
        %v763 = vadd.f32 %v699, 1e-05
        %v764 = vadd.f32 %v700, 1e-05
        %v765 = vadd.f32 %v701, 1e-05
        %v766 = vadd.f32 %v702, 1e-05
        %v767 = vadd.f32 %v703, 1e-05
        %v768 = vrsqrt.pop %v736
        %v769 = vrsqrt.pop %v737
        %v770 = vrsqrt.pop %v738
        %v771 = vrsqrt.pop %v739
        %v772 = vrsqrt.pop %v740
        %v773 = vrsqrt.pop %v741
        %v774 = vrsqrt.pop %v742
        %v775 = vrsqrt.pop %v743
        %v776 = vrsqrt.pop %v744
        %v777 = vrsqrt.pop %v745
        %v778 = vrsqrt.pop %v746
        %v779 = vrsqrt.pop %v747
        %v780 = vrsqrt.pop %v748
        %v781 = vrsqrt.pop %v749
        %v782 = vrsqrt.pop %v750
        %v783 = vrsqrt.pop %v751
        %v784 = vrsqrt.pop %v752
        %v785 = vrsqrt.pop %v753
        %v786 = vrsqrt.pop %v754
        %v787 = vrsqrt.pop %v755
        %v788 = vrsqrt.pop %v756
        %v789 = vrsqrt.pop %v757
        %v790 = vrsqrt.pop %v758
        %v791 = vrsqrt.pop %v759
        %v792 = vrsqrt.pop %v760
        %v793 = vrsqrt.pop %v761
        %v794 = vrsqrt.pop %v762
        %v795 = vrsqrt.pop %v763
        %v796 = vrsqrt.pop %v764
        %v797 = vrsqrt.pop %v765
        %v798 = vrsqrt.pop %v766
        %v799 = vrsqrt.pop %v767
        %v800 = vmul.f32 %v704, %v768
        %v801 = vmul.f32 %v705, %v769
        %v802 = vmul.f32 %v706, %v770
        %v803 = vmul.f32 %v707, %v771
        %v804 = vmul.f32 %v708, %v772
        %v805 = vmul.f32 %v709, %v773
        %v806 = vmul.f32 %v710, %v774
        %v807 = vmul.f32 %v711, %v775
        %v808 = vmul.f32 %v712, %v776
        %v809 = vmul.f32 %v713, %v777
        %v810 = vmul.f32 %v714, %v778
        %v811 = vmul.f32 %v715, %v779
        %v812 = vmul.f32 %v716, %v780
        %v813 = vmul.f32 %v717, %v781
        %v814 = vmul.f32 %v718, %v782
        %v815 = vmul.f32 %v719, %v783
        %v816 = vmul.f32 %v720, %v784
        %v817 = vmul.f32 %v721, %v785
        %v818 = vmul.f32 %v722, %v786
        %v819 = vmul.f32 %v723, %v787
        %v820 = vmul.f32 %v724, %v788
        %v821 = vmul.f32 %v725, %v789
        %v822 = vmul.f32 %v726, %v790
        %v823 = vmul.f32 %v727, %v791
        %v824 = vmul.f32 %v728, %v792
        %v825 = vmul.f32 %v729, %v793
        %v826 = vmul.f32 %v730, %v794
        %v827 = vmul.f32 %v731, %v795
        %v828 = vmul.f32 %v732, %v796
        %v829 = vmul.f32 %v733, %v797
        %v830 = vmul.f32 %v734, %v798
        %v831 = vmul.f32 %v735, %v799
        %v832 = vld [vmem:[%s1] sm:$0x1]
        %v834 = vlaneseq
        %v835 = vshrl.u32 %v834, 7
        %v836 = vsub.s32 0, %v835
        %v837 = vrot.slane %v832, %v836
        %v839 = vmul.f32 %v800, %v837
        %v840 = vmul.f32 %v801, %v837
        %v841 = vmul.f32 %v802, %v837
        %v842 = vmul.f32 %v803, %v837
        %v843 = vmul.f32 %v804, %v837
        %v844 = vmul.f32 %v805, %v837
        %v845 = vmul.f32 %v806, %v837
        %v846 = vmul.f32 %v807, %v837
        %v847 = vmul.f32 %v808, %v837
        %v848 = vmul.f32 %v809, %v837
        %v849 = vmul.f32 %v810, %v837
        %v850 = vmul.f32 %v811, %v837
        %v851 = vmul.f32 %v812, %v837
        %v852 = vmul.f32 %v813, %v837
        %v853 = vmul.f32 %v814, %v837
        %v854 = vmul.f32 %v815, %v837
        %v855 = vmul.f32 %v816, %v837
        %v856 = vmul.f32 %v817, %v837
        %v857 = vmul.f32 %v818, %v837
        %v858 = vmul.f32 %v819, %v837
        %v859 = vmul.f32 %v820, %v837
        %v860 = vmul.f32 %v821, %v837
        %v861 = vmul.f32 %v822, %v837
        %v862 = vmul.f32 %v823, %v837
        %v863 = vmul.f32 %v824, %v837
        %v864 = vmul.f32 %v825, %v837
        %v865 = vmul.f32 %v826, %v837
        %v866 = vmul.f32 %v827, %v837
        %v867 = vmul.f32 %v828, %v837
        %v868 = vmul.f32 %v829, %v837
        %v869 = vmul.f32 %v830, %v837
        %v870 = vmul.f32 %v831, %v837
        %v871 = vld [vmem:[%s2] sm:$0x1]
        %v873 = vlaneseq
        %v874 = vshrl.u32 %v873, 7
        %v875 = vsub.s32 0, %v874
        %v876 = vrot.slane %v871, %v875
        %v878 = vadd.f32 %v839, %v876
        %v879 = vadd.f32 %v840, %v876
        %v880 = vadd.f32 %v841, %v876
        %v881 = vadd.f32 %v842, %v876
        %v882 = vadd.f32 %v843, %v876
        %v883 = vadd.f32 %v844, %v876
        %v884 = vadd.f32 %v845, %v876
        %v885 = vadd.f32 %v846, %v876
        %v886 = vadd.f32 %v847, %v876
        %v887 = vadd.f32 %v848, %v876
        %v888 = vadd.f32 %v849, %v876
        %v889 = vadd.f32 %v850, %v876
        %v890 = vadd.f32 %v851, %v876
        %v891 = vadd.f32 %v852, %v876
        %v892 = vadd.f32 %v853, %v876
        %v893 = vadd.f32 %v854, %v876
        %v894 = vadd.f32 %v855, %v876
        %v895 = vadd.f32 %v856, %v876
        %v896 = vadd.f32 %v857, %v876
        %v897 = vadd.f32 %v858, %v876
        %v898 = vadd.f32 %v859, %v876
        %v899 = vadd.f32 %v860, %v876
        %v900 = vadd.f32 %v861, %v876
        %v901 = vadd.f32 %v862, %v876
        %v902 = vadd.f32 %v863, %v876
        %v903 = vadd.f32 %v864, %v876
        %v904 = vadd.f32 %v865, %v876
        %v905 = vadd.f32 %v866, %v876
        %v906 = vadd.f32 %v867, %v876
        %v907 = vadd.f32 %v868, %v876
        %v908 = vadd.f32 %v869, %v876
        %v909 = vadd.f32 %v870, %v876
        %v910 = vpack.c.bf16 %v879, %v878
        %v911 = vpack.c.bf16 %v881, %v880
        %v912 = vpack.c.bf16 %v883, %v882
        %v913 = vpack.c.bf16 %v885, %v884
        %v914 = vpack.c.bf16 %v887, %v886
        %v915 = vpack.c.bf16 %v889, %v888
        %v916 = vpack.c.bf16 %v891, %v890
        %v917 = vpack.c.bf16 %v893, %v892
        %v918 = vpack.c.bf16 %v895, %v894
        %v919 = vpack.c.bf16 %v897, %v896
        %v920 = vpack.c.bf16 %v899, %v898
        %v921 = vpack.c.bf16 %v901, %v900
        %v922 = vpack.c.bf16 %v903, %v902
        %v923 = vpack.c.bf16 %v905, %v904
        %v924 = vpack.c.bf16 %v907, %v906
        %v925 = vpack.c.bf16 %v909, %v908
        %v926 = vld [vmem:[#allocation5] sm:$0xff]
        %v927 = vld [vmem:[#allocation5 + $0x8] sm:$0xff]
        %v928 = vld [vmem:[#allocation5 + $0x10] sm:$0xff]
        %v929 = vld [vmem:[#allocation5 + $0x18] sm:$0xff]
        %v930 = vld [vmem:[#allocation5 + $0x20] sm:$0xff]
        %v931 = vld [vmem:[#allocation5 + $0x28] sm:$0xff]
        %v932 = vld [vmem:[#allocation5 + $0x30] sm:$0xff]
        %v933 = vld [vmem:[#allocation5 + $0x38] sm:$0xff]
        %v942 = vunpack.c.l.b16 %v926
        %v943 = vunpack.c.h.b16 %v926
        %v944 = vunpack.c.l.b16 %v927
        %v945 = vunpack.c.h.b16 %v927
        %v946 = vunpack.c.l.b16 %v928
        %v947 = vunpack.c.h.b16 %v928
        %v948 = vunpack.c.l.b16 %v929
        %v949 = vunpack.c.h.b16 %v929
        %v950 = vunpack.c.l.b16 %v930
        %v951 = vunpack.c.h.b16 %v930
        %v952 = vunpack.c.l.b16 %v931
        %v953 = vunpack.c.h.b16 %v931
        %v954 = vunpack.c.l.b16 %v932
        %v955 = vunpack.c.h.b16 %v932
        %v956 = vunpack.c.l.b16 %v933
        %v957 = vunpack.c.h.b16 %v933
        %v958 = vpack.c.b16 %v944, %v942
        %v959 = vpack.c.b16 %v945, %v943
        %v960 = vpack.c.b16 %v948, %v946
        %v961 = vpack.c.b16 %v949, %v947
        %v962 = vpack.c.b16 %v952, %v950
        %v963 = vpack.c.b16 %v953, %v951
        %v964 = vpack.c.b16 %v956, %v954
        %v965 = vpack.c.b16 %v957, %v955
        %v975 = vsel %vm350, %v910, 0
        %v978 = vsel %vm350, %v911, 0
        %v981 = vsel %vm350, %v912, 0
        %v984 = vsel %vm350, %v913, 0
        %v987 = vsel %vm350, %v914, 0
        %v990 = vsel %vm350, %v915, 0
        %v993 = vsel %vm350, %v916, 0
        %v996 = vsel %vm350, %v917, 0
        %v999 = vsel %vm350, %v918, 0
        %v1002 = vsel %vm350, %v919, 0
        %v1005 = vsel %vm350, %v920, 0
        %v1008 = vsel %vm350, %v921, 0
        %v1011 = vsel %vm350, %v922, 0
        %v1014 = vsel %vm350, %v923, 0
        %v1017 = vsel %vm350, %v924, 0
        %v1020 = vsel %vm350, %v925, 0
        %1022 = vmatprep.subr.bf16.mxu0 0
        %1023 = vmatpush1.bf16.msra.mxu0 0
        %1024 = vmatprep.subr.bf16.mxu0 0
        %1025 = vmatpush1.bf16.msra.mxu0 0
        %1026 = vmatprep.subr.bf16.mxu0 0
        %1027 = vmatpush1.bf16.msra.mxu0 0
        %1028 = vmatprep.subr.bf16.mxu0 0
        %1029 = vmatpush1.bf16.msra.mxu0 0
        %1030 = vmatprep.subr.bf16.mxu0 %v965
        %1031 = vmatpush1.bf16.msra.mxu0 %v964
        %1032 = vmatprep.subr.bf16.mxu0 %v963
        %1033 = vmatpush1.bf16.msra.mxu0 %v962
        %1034 = vmatprep.subr.bf16.mxu0 %v961
        %1035 = vmatpush1.bf16.msra.mxu0 %v960
        %1036 = vmatprep.subr.bf16.mxu0 %v959
        %1037 = vmatpush1.bf16.msra.mxu0 %v958
        %1038 = vmatprep.subr.bf16.mxu0 0
        %1039 = vmatpush2.bf16.msra.mxu0 0
        %1040 = vmatprep.subr.bf16.mxu0 0
        %1041 = vmatpush2.bf16.msra.mxu0 0
        %1042 = vmatprep.subr.bf16.mxu0 0
        %1043 = vmatpush2.bf16.msra.mxu0 0
        %1044 = vmatprep.subr.bf16.mxu0 0
        %1045 = vmatpush2.bf16.msra.mxu0 0
        %1046 = vmatprep.subr.bf16.mxu0 0
        %1047 = vmatpush2.bf16.msra.mxu0 0
        %1048 = vmatprep.subr.bf16.mxu0 0
        %1049 = vmatpush2.bf16.msra.mxu0 0
        %1050 = vmatprep.subr.bf16.mxu0 0
        %1051 = vmatpush2.bf16.msra.mxu0 0
        %1052 = vmatprep.subr.bf16.mxu0 0
        %1053 = vmatpush2.bf16.msra.mxu0 0
        %1054 = vmatprep.mubr.bf16.mxu0 0
        %1055 = vmatmul.mubr.bf16.gmra.mxu0 %v975
        %v1056 = vpop.f32.mrf.mxu0
        %v1057 = vadd.f32 0.0, %v1056
        %v1058 = vpop.f32.mrf.mxu0
        %v1059 = vadd.f32 0.0, %v1058
        %v1060 = vpop.f32.mrf.mxu0
        %v1061 = vadd.f32 0.0, %v1060
        %v1062 = vpop.f32.mrf.mxu0
        %v1063 = vadd.f32 0.0, %v1062
        %1064 = vmatprep.mubr.bf16.mxu0 0
        %1065 = vmatmul.mubr.bf16.gmra.mxu0 %v978
        %v1066 = vpop.f32.mrf.mxu0
        %v1067 = vadd.f32 0.0, %v1066
        %v1068 = vpop.f32.mrf.mxu0
        %v1069 = vadd.f32 0.0, %v1068
        %v1070 = vpop.f32.mrf.mxu0
        %v1071 = vadd.f32 0.0, %v1070
        %v1072 = vpop.f32.mrf.mxu0
        %v1073 = vadd.f32 0.0, %v1072
        %1074 = vmatprep.mubr.bf16.mxu0 0
        %1075 = vmatmul.mubr.bf16.gmra.mxu0 %v981
        %v1076 = vpop.f32.mrf.mxu0
        %v1077 = vadd.f32 0.0, %v1076
        %v1078 = vpop.f32.mrf.mxu0
        %v1079 = vadd.f32 0.0, %v1078
        %v1080 = vpop.f32.mrf.mxu0
        %v1081 = vadd.f32 0.0, %v1080
        %v1082 = vpop.f32.mrf.mxu0
        %v1083 = vadd.f32 0.0, %v1082
        %1084 = vmatprep.mubr.bf16.mxu0 0
        %1085 = vmatmul.mubr.bf16.gmra.mxu0 %v984
        %v1086 = vpop.f32.mrf.mxu0
        %v1087 = vadd.f32 0.0, %v1086
        %v1088 = vpop.f32.mrf.mxu0
        %v1089 = vadd.f32 0.0, %v1088
        %v1090 = vpop.f32.mrf.mxu0
        %v1091 = vadd.f32 0.0, %v1090
        %v1092 = vpop.f32.mrf.mxu0
        %v1093 = vadd.f32 0.0, %v1092
        %1094 = vmatprep.mubr.bf16.mxu0 0
        %1095 = vmatmul.mubr.bf16.gmra.mxu0 %v987
        %v1096 = vpop.f32.mrf.mxu0
        %v1097 = vadd.f32 0.0, %v1096
        %v1098 = vpop.f32.mrf.mxu0
        %v1099 = vadd.f32 0.0, %v1098
        %v1100 = vpop.f32.mrf.mxu0
        %v1101 = vadd.f32 0.0, %v1100
        %v1102 = vpop.f32.mrf.mxu0
        %v1103 = vadd.f32 0.0, %v1102
        %1104 = vmatprep.mubr.bf16.mxu0 0
        %1105 = vmatmul.mubr.bf16.gmra.mxu0 %v990
        %v1106 = vpop.f32.mrf.mxu0
        %v1107 = vadd.f32 0.0, %v1106
        %v1108 = vpop.f32.mrf.mxu0
        %v1109 = vadd.f32 0.0, %v1108
        %v1110 = vpop.f32.mrf.mxu0
        %v1111 = vadd.f32 0.0, %v1110
        %v1112 = vpop.f32.mrf.mxu0
        %v1113 = vadd.f32 0.0, %v1112
        %1114 = vmatprep.mubr.bf16.mxu0 0
        %1115 = vmatmul.mubr.bf16.gmra.mxu0 %v993
        %v1116 = vpop.f32.mrf.mxu0
        %v1117 = vadd.f32 0.0, %v1116
        %v1118 = vpop.f32.mrf.mxu0
        %v1119 = vadd.f32 0.0, %v1118
        %v1120 = vpop.f32.mrf.mxu0
        %v1121 = vadd.f32 0.0, %v1120
        %v1122 = vpop.f32.mrf.mxu0
        %v1123 = vadd.f32 0.0, %v1122
        %1124 = vmatprep.mubr.bf16.mxu0 0
        %1125 = vmatmul.mubr.bf16.gmra.mxu0 %v996
        %v1126 = vpop.f32.mrf.mxu0
        %v1127 = vadd.f32 0.0, %v1126
        %v1128 = vpop.f32.mrf.mxu0
        %v1129 = vadd.f32 0.0, %v1128
        %v1130 = vpop.f32.mrf.mxu0
        %v1131 = vadd.f32 0.0, %v1130
        %v1132 = vpop.f32.mrf.mxu0
        %v1133 = vadd.f32 0.0, %v1132
        %1134 = vmatprep.mubr.bf16.mxu0 0
        %1135 = vmatmul.mubr.bf16.gmra.mxu0 %v999
        %v1136 = vpop.f32.mrf.mxu0
        %v1137 = vadd.f32 0.0, %v1136
        %v1138 = vpop.f32.mrf.mxu0
        %v1139 = vadd.f32 0.0, %v1138
        %v1140 = vpop.f32.mrf.mxu0
        %v1141 = vadd.f32 0.0, %v1140
        %v1142 = vpop.f32.mrf.mxu0
        %v1143 = vadd.f32 0.0, %v1142
        %1144 = vmatprep.mubr.bf16.mxu0 0
        %1145 = vmatmul.mubr.bf16.gmra.mxu0 %v1002
        %v1146 = vpop.f32.mrf.mxu0
        %v1147 = vadd.f32 0.0, %v1146
        %v1148 = vpop.f32.mrf.mxu0
        %v1149 = vadd.f32 0.0, %v1148
        %v1150 = vpop.f32.mrf.mxu0
        %v1151 = vadd.f32 0.0, %v1150
        %v1152 = vpop.f32.mrf.mxu0
        %v1153 = vadd.f32 0.0, %v1152
        %1154 = vmatprep.mubr.bf16.mxu0 0
        %1155 = vmatmul.mubr.bf16.gmra.mxu0 %v1005
        %v1156 = vpop.f32.mrf.mxu0
        %v1157 = vadd.f32 0.0, %v1156
        %v1158 = vpop.f32.mrf.mxu0
        %v1159 = vadd.f32 0.0, %v1158
        %v1160 = vpop.f32.mrf.mxu0
        %v1161 = vadd.f32 0.0, %v1160
        %v1162 = vpop.f32.mrf.mxu0
        %v1163 = vadd.f32 0.0, %v1162
        %1164 = vmatprep.mubr.bf16.mxu0 0
        %1165 = vmatmul.mubr.bf16.gmra.mxu0 %v1008
        %v1166 = vpop.f32.mrf.mxu0
        %v1167 = vadd.f32 0.0, %v1166
        %v1168 = vpop.f32.mrf.mxu0
        %v1169 = vadd.f32 0.0, %v1168
        %v1170 = vpop.f32.mrf.mxu0
        %v1171 = vadd.f32 0.0, %v1170
        %v1172 = vpop.f32.mrf.mxu0
        %v1173 = vadd.f32 0.0, %v1172
        %1174 = vmatprep.mubr.bf16.mxu0 0
        %1175 = vmatmul.mubr.bf16.gmra.mxu0 %v1011
        %v1176 = vpop.f32.mrf.mxu0
        %v1177 = vadd.f32 0.0, %v1176
        %v1178 = vpop.f32.mrf.mxu0
        %v1179 = vadd.f32 0.0, %v1178
        %v1180 = vpop.f32.mrf.mxu0
        %v1181 = vadd.f32 0.0, %v1180
        %v1182 = vpop.f32.mrf.mxu0
        %v1183 = vadd.f32 0.0, %v1182
        %1184 = vmatprep.mubr.bf16.mxu0 0
        %1185 = vmatmul.mubr.bf16.gmra.mxu0 %v1014
        %v1186 = vpop.f32.mrf.mxu0
        %v1187 = vadd.f32 0.0, %v1186
        %v1188 = vpop.f32.mrf.mxu0
        %v1189 = vadd.f32 0.0, %v1188
        %v1190 = vpop.f32.mrf.mxu0
        %v1191 = vadd.f32 0.0, %v1190
        %v1192 = vpop.f32.mrf.mxu0
        %v1193 = vadd.f32 0.0, %v1192
        %1194 = vmatprep.mubr.bf16.mxu0 0
        %1195 = vmatmul.mubr.bf16.gmra.mxu0 %v1017
        %v1196 = vpop.f32.mrf.mxu0
        %v1197 = vadd.f32 0.0, %v1196
        %v1198 = vpop.f32.mrf.mxu0
        %v1199 = vadd.f32 0.0, %v1198
        %v1200 = vpop.f32.mrf.mxu0
        %v1201 = vadd.f32 0.0, %v1200
        %v1202 = vpop.f32.mrf.mxu0
        %v1203 = vadd.f32 0.0, %v1202
        %1204 = vmatprep.mubr.bf16.mxu0 0
        %1205 = vmatmul.mubr.bf16.gmra.mxu0 %v1020
        %v1206 = vpop.f32.mrf.mxu0
        %v1207 = vadd.f32 0.0, %v1206
        %v1208 = vpop.f32.mrf.mxu0
        %v1209 = vadd.f32 0.0, %v1208
        %v1210 = vpop.f32.mrf.mxu0
        %v1211 = vadd.f32 0.0, %v1210
        %v1212 = vpop.f32.mrf.mxu0
        %v1213 = vadd.f32 0.0, %v1212
        %1214 = vdwg.mxu0
        %v1215 = vpack.c.bf16 %v1061, %v1057
        %v1216 = vpack.c.bf16 %v1063, %v1059
        %v1217 = vpack.c.bf16 %v1071, %v1067
        %v1218 = vpack.c.bf16 %v1073, %v1069
        %v1219 = vpack.c.bf16 %v1081, %v1077
        %v1220 = vpack.c.bf16 %v1083, %v1079
        %v1221 = vpack.c.bf16 %v1091, %v1087
        %v1222 = vpack.c.bf16 %v1093, %v1089
        %v1223 = vpack.c.bf16 %v1101, %v1097
        %v1224 = vpack.c.bf16 %v1103, %v1099
        %v1225 = vpack.c.bf16 %v1111, %v1107
        %v1226 = vpack.c.bf16 %v1113, %v1109
        %v1227 = vpack.c.bf16 %v1121, %v1117
        %v1228 = vpack.c.bf16 %v1123, %v1119
        %v1229 = vpack.c.bf16 %v1131, %v1127
        %v1230 = vpack.c.bf16 %v1133, %v1129
        %v1231 = vpack.c.bf16 %v1141, %v1137
        %v1232 = vpack.c.bf16 %v1143, %v1139
        %v1233 = vpack.c.bf16 %v1151, %v1147
        %v1234 = vpack.c.bf16 %v1153, %v1149
        %v1235 = vpack.c.bf16 %v1161, %v1157
        %v1236 = vpack.c.bf16 %v1163, %v1159
        %v1237 = vpack.c.bf16 %v1171, %v1167
        %v1238 = vpack.c.bf16 %v1173, %v1169
        %v1239 = vpack.c.bf16 %v1181, %v1177
        %v1240 = vpack.c.bf16 %v1183, %v1179
        %v1241 = vpack.c.bf16 %v1191, %v1187
        %v1242 = vpack.c.bf16 %v1193, %v1189
        %v1243 = vpack.c.bf16 %v1201, %v1197
        %v1244 = vpack.c.bf16 %v1203, %v1199
        %v1245 = vpack.c.bf16 %v1211, %v1207
        %v1246 = vpack.c.bf16 %v1213, %v1209
        %v1247 = vld [vmem:[#allocation7] sm:$0xff]
        %v1248 = vld [vmem:[#allocation7 + $0x8] sm:$0xff]
        %v1249 = vld [vmem:[#allocation7 + $0x10] sm:$0xff]
        %v1250 = vld [vmem:[#allocation7 + $0x18] sm:$0xff]
        %v1251 = vld [vmem:[#allocation7 + $0x20] sm:$0xff]
        %v1252 = vld [vmem:[#allocation7 + $0x28] sm:$0xff]
        %v1253 = vld [vmem:[#allocation7 + $0x30] sm:$0xff]
        %v1254 = vld [vmem:[#allocation7 + $0x38] sm:$0xff]
        %1259 = vrot.lane.b32.xlu0 %v1215, 96
        %v1260 = vpop.permute.xlu0 %1259
        %1261 = vrot.lane.b32.xlu0 %v1217, 96
        %v1262 = vpop.permute.xlu0 %1261
        %1263 = vrot.lane.b32.xlu0 %v1219, 96
        %v1264 = vpop.permute.xlu0 %1263
        %1265 = vrot.lane.b32.xlu0 %v1221, 96
        %v1266 = vpop.permute.xlu0 %1265
        %vm1267 = vcmask 261120
        %v1269 = vsel %vm1267, %v1215, 0
        %v1272 = vsel %vm1267, %v1217, 0
        %v1275 = vsel %vm1267, %v1219, 0
        %v1278 = vsel %vm1267, %v1221, 0
        %v1281 = vsel %vm1267, %v1260, 0
        %v1284 = vsel %vm1267, %v1262, 0
        %v1287 = vsel %vm1267, %v1264, 0
        %v1290 = vsel %vm1267, %v1266, 0
        %1292 = vmatprep.subr.bf16.mxu0 0
        %1293 = vmatpush1.bf16.xpose.msra.mxu0 0
        %1294 = vmatprep.subr.bf16.mxu0 0
        %1295 = vmatpush1.bf16.xpose.msra.mxu0 0
        %1296 = vmatprep.subr.bf16.mxu0 0
        %1297 = vmatpush1.bf16.xpose.msra.mxu0 0
        %1298 = vmatprep.subr.bf16.mxu0 0
        %1299 = vmatpush1.bf16.xpose.msra.mxu0 0
        %1300 = vmatprep.subr.bf16.mxu0 0
        %1301 = vmatpush1.bf16.xpose.msra.mxu0 %v1290
        %1302 = vmatprep.subr.bf16.mxu0 0
        %1303 = vmatpush1.bf16.xpose.msra.mxu0 %v1287
        %1304 = vmatprep.subr.bf16.mxu0 0
        %1305 = vmatpush1.bf16.xpose.msra.mxu0 %v1284
        %1306 = vmatprep.subr.bf16.mxu0 0
        %1307 = vmatpush1.bf16.xpose.msra.mxu0 %v1281
        %1308 = vmatprep.subr.bf16.mxu0 0
        %1309 = vmatpush2.bf16.xpose.msra.mxu0 0
        %1310 = vmatprep.subr.bf16.mxu0 0
        %1311 = vmatpush2.bf16.xpose.msra.mxu0 0
        %1312 = vmatprep.subr.bf16.mxu0 0
        %1313 = vmatpush2.bf16.xpose.msra.mxu0 0
        %1314 = vmatprep.subr.bf16.mxu0 0
        %1315 = vmatpush2.bf16.xpose.msra.mxu0 0
        %1316 = vmatprep.subr.bf16.mxu0 0
        %1317 = vmatpush2.bf16.xpose.msra.mxu0 0
        %1318 = vmatprep.subr.bf16.mxu0 0
        %1319 = vmatpush2.bf16.xpose.msra.mxu0 0
        %1320 = vmatprep.subr.bf16.mxu0 0
        %1321 = vmatpush2.bf16.xpose.msra.mxu0 0
        %1322 = vmatprep.subr.bf16.mxu0 0
        %1323 = vmatpush2.bf16.xpose.msra.mxu0 0
        %1324 = vmatprep.mubr.bf16.mxu0 0
        %1325 = vmatmul.mubr.bf16.gmra.mxu0 %v1269
        %v1326 = vpop.f32.mrf.mxu0
        %v1327 = vadd.f32 %v1247, %v1326
        %v1328 = vpop.f32.mrf.mxu0
        %v1329 = vpop.f32.mrf.mxu0
        %v1330 = vadd.f32 %v1248, %v1329
        %v1331 = vpop.f32.mrf.mxu0
        %1332 = vmatprep.mubr.bf16.mxu0 0
        %1333 = vmatmul.mubr.bf16.gmra.mxu0 %v1272
        %v1334 = vpop.f32.mrf.mxu0
        %v1335 = vadd.f32 %v1249, %v1334
        %v1336 = vpop.f32.mrf.mxu0
        %v1337 = vpop.f32.mrf.mxu0
        %v1338 = vadd.f32 %v1250, %v1337
        %v1339 = vpop.f32.mrf.mxu0
        %1340 = vmatprep.mubr.bf16.mxu0 0
        %1341 = vmatmul.mubr.bf16.gmra.mxu0 %v1275
        %v1342 = vpop.f32.mrf.mxu0
        %v1343 = vadd.f32 %v1251, %v1342
        %v1344 = vpop.f32.mrf.mxu0
        %v1345 = vpop.f32.mrf.mxu0
        %v1346 = vadd.f32 %v1252, %v1345
        %v1347 = vpop.f32.mrf.mxu0
        %1348 = vmatprep.mubr.bf16.mxu0 0
        %1349 = vmatmul.mubr.bf16.gmra.mxu0 %v1278
        %v1350 = vpop.f32.mrf.mxu0
        %v1351 = vadd.f32 %v1253, %v1350
        %v1352 = vpop.f32.mrf.mxu0
        %v1353 = vpop.f32.mrf.mxu0
        %v1354 = vadd.f32 %v1254, %v1353
        %v1355 = vpop.f32.mrf.mxu0
        %1356 = vdwg.mxu0
        %1361 = vrot.lane.b32.xlu0 %v1223, 96
        %v1362 = vpop.permute.xlu0 %1361
        %1363 = vrot.lane.b32.xlu0 %v1225, 96
        %v1364 = vpop.permute.xlu0 %1363
        %1365 = vrot.lane.b32.xlu0 %v1227, 96
        %v1366 = vpop.permute.xlu0 %1365
        %1367 = vrot.lane.b32.xlu0 %v1229, 96
        %v1368 = vpop.permute.xlu0 %1367
        %v1370 = vsel %vm1267, %v1223, 0
        %v1373 = vsel %vm1267, %v1225, 0
        %v1376 = vsel %vm1267, %v1227, 0
        %v1379 = vsel %vm1267, %v1229, 0
        %v1382 = vsel %vm1267, %v1362, 0
        %v1385 = vsel %vm1267, %v1364, 0
        %v1388 = vsel %vm1267, %v1366, 0
        %v1391 = vsel %vm1267, %v1368, 0
        %1393 = vmatprep.subr.bf16.mxu0 0
        %1394 = vmatpush1.bf16.xpose.msra.mxu0 0
        %1395 = vmatprep.subr.bf16.mxu0 0
        %1396 = vmatpush1.bf16.xpose.msra.mxu0 0
        %1397 = vmatprep.subr.bf16.mxu0 0
        %1398 = vmatpush1.bf16.xpose.msra.mxu0 0
        %1399 = vmatprep.subr.bf16.mxu0 0
        %1400 = vmatpush1.bf16.xpose.msra.mxu0 0
        %1401 = vmatprep.subr.bf16.mxu0 0
        %1402 = vmatpush1.bf16.xpose.msra.mxu0 %v1391
        %1403 = vmatprep.subr.bf16.mxu0 0
        %1404 = vmatpush1.bf16.xpose.msra.mxu0 %v1388
        %1405 = vmatprep.subr.bf16.mxu0 0
        %1406 = vmatpush1.bf16.xpose.msra.mxu0 %v1385
        %1407 = vmatprep.subr.bf16.mxu0 0
        %1408 = vmatpush1.bf16.xpose.msra.mxu0 %v1382
        %1409 = vmatprep.subr.bf16.mxu0 0
        %1410 = vmatpush2.bf16.xpose.msra.mxu0 0
        %1411 = vmatprep.subr.bf16.mxu0 0
        %1412 = vmatpush2.bf16.xpose.msra.mxu0 0
        %1413 = vmatprep.subr.bf16.mxu0 0
        %1414 = vmatpush2.bf16.xpose.msra.mxu0 0
        %1415 = vmatprep.subr.bf16.mxu0 0
        %1416 = vmatpush2.bf16.xpose.msra.mxu0 0
        %1417 = vmatprep.subr.bf16.mxu0 0
        %1418 = vmatpush2.bf16.xpose.msra.mxu0 0
        %1419 = vmatprep.subr.bf16.mxu0 0
        %1420 = vmatpush2.bf16.xpose.msra.mxu0 0
        %1421 = vmatprep.subr.bf16.mxu0 0
        %1422 = vmatpush2.bf16.xpose.msra.mxu0 0
        %1423 = vmatprep.subr.bf16.mxu0 0
        %1424 = vmatpush2.bf16.xpose.msra.mxu0 0
        %1425 = vmatprep.mubr.bf16.mxu0 0
        %1426 = vmatmul.mubr.bf16.gmra.mxu0 %v1370
        %v1427 = vpop.f32.mrf.mxu0
        %v1428 = vadd.f32 %v1247, %v1427
        %v1429 = vpop.f32.mrf.mxu0
        %v1430 = vpop.f32.mrf.mxu0
        %v1431 = vadd.f32 %v1248, %v1430
        %v1432 = vpop.f32.mrf.mxu0
        %1433 = vmatprep.mubr.bf16.mxu0 0
        %1434 = vmatmul.mubr.bf16.gmra.mxu0 %v1373
        %v1435 = vpop.f32.mrf.mxu0
        %v1436 = vadd.f32 %v1249, %v1435
        %v1437 = vpop.f32.mrf.mxu0
        %v1438 = vpop.f32.mrf.mxu0
        %v1439 = vadd.f32 %v1250, %v1438
        %v1440 = vpop.f32.mrf.mxu0
        %1441 = vmatprep.mubr.bf16.mxu0 0
        %1442 = vmatmul.mubr.bf16.gmra.mxu0 %v1376
        %v1443 = vpop.f32.mrf.mxu0
        %v1444 = vadd.f32 %v1251, %v1443
        %v1445 = vpop.f32.mrf.mxu0
        %v1446 = vpop.f32.mrf.mxu0
        %v1447 = vadd.f32 %v1252, %v1446
        %v1448 = vpop.f32.mrf.mxu0
        %1449 = vmatprep.mubr.bf16.mxu0 0
        %1450 = vmatmul.mubr.bf16.gmra.mxu0 %v1379
        %v1451 = vpop.f32.mrf.mxu0
        %v1452 = vadd.f32 %v1253, %v1451
        %v1453 = vpop.f32.mrf.mxu0
        %v1454 = vpop.f32.mrf.mxu0
        %v1455 = vadd.f32 %v1254, %v1454
        %v1456 = vpop.f32.mrf.mxu0
        %1457 = vdwg.mxu0
        %1462 = vrot.lane.b32.xlu0 %v1231, 96
        %v1463 = vpop.permute.xlu0 %1462
        %1464 = vrot.lane.b32.xlu0 %v1233, 96
        %v1465 = vpop.permute.xlu0 %1464
        %1466 = vrot.lane.b32.xlu0 %v1235, 96
        %v1467 = vpop.permute.xlu0 %1466
        %1468 = vrot.lane.b32.xlu0 %v1237, 96
        %v1469 = vpop.permute.xlu0 %1468
        %v1471 = vsel %vm1267, %v1231, 0
        %v1474 = vsel %vm1267, %v1233, 0
        %v1477 = vsel %vm1267, %v1235, 0
        %v1480 = vsel %vm1267, %v1237, 0
        %v1483 = vsel %vm1267, %v1463, 0
        %v1486 = vsel %vm1267, %v1465, 0
        %v1489 = vsel %vm1267, %v1467, 0
        %v1492 = vsel %vm1267, %v1469, 0
        %1494 = vmatprep.subr.bf16.mxu0 0
        %1495 = vmatpush1.bf16.xpose.msra.mxu0 0
        %1496 = vmatprep.subr.bf16.mxu0 0
        %1497 = vmatpush1.bf16.xpose.msra.mxu0 0
        %1498 = vmatprep.subr.bf16.mxu0 0
        %1499 = vmatpush1.bf16.xpose.msra.mxu0 0
        %1500 = vmatprep.subr.bf16.mxu0 0
        %1501 = vmatpush1.bf16.xpose.msra.mxu0 0
        %1502 = vmatprep.subr.bf16.mxu0 0
        %1503 = vmatpush1.bf16.xpose.msra.mxu0 %v1492
        %1504 = vmatprep.subr.bf16.mxu0 0
        %1505 = vmatpush1.bf16.xpose.msra.mxu0 %v1489
        %1506 = vmatprep.subr.bf16.mxu0 0
        %1507 = vmatpush1.bf16.xpose.msra.mxu0 %v1486
        %1508 = vmatprep.subr.bf16.mxu0 0
        %1509 = vmatpush1.bf16.xpose.msra.mxu0 %v1483
        %1510 = vmatprep.subr.bf16.mxu0 0
        %1511 = vmatpush2.bf16.xpose.msra.mxu0 0
        %1512 = vmatprep.subr.bf16.mxu0 0
        %1513 = vmatpush2.bf16.xpose.msra.mxu0 0
        %1514 = vmatprep.subr.bf16.mxu0 0
        %1515 = vmatpush2.bf16.xpose.msra.mxu0 0
        %1516 = vmatprep.subr.bf16.mxu0 0
        %1517 = vmatpush2.bf16.xpose.msra.mxu0 0
        %1518 = vmatprep.subr.bf16.mxu0 0
        %1519 = vmatpush2.bf16.xpose.msra.mxu0 0
        %1520 = vmatprep.subr.bf16.mxu0 0
        %1521 = vmatpush2.bf16.xpose.msra.mxu0 0
        %1522 = vmatprep.subr.bf16.mxu0 0
        %1523 = vmatpush2.bf16.xpose.msra.mxu0 0
        %1524 = vmatprep.subr.bf16.mxu0 0
        %1525 = vmatpush2.bf16.xpose.msra.mxu0 0
        %1526 = vmatprep.mubr.bf16.mxu0 0
        %1527 = vmatmul.mubr.bf16.gmra.mxu0 %v1471
        %v1528 = vpop.f32.mrf.mxu0
        %v1529 = vadd.f32 %v1247, %v1528
        %v1530 = vpop.f32.mrf.mxu0
        %v1531 = vpop.f32.mrf.mxu0
        %v1532 = vadd.f32 %v1248, %v1531
        %v1533 = vpop.f32.mrf.mxu0
        %1534 = vmatprep.mubr.bf16.mxu0 0
        %1535 = vmatmul.mubr.bf16.gmra.mxu0 %v1474
        %v1536 = vpop.f32.mrf.mxu0
        %v1537 = vadd.f32 %v1249, %v1536
        %v1538 = vpop.f32.mrf.mxu0
        %v1539 = vpop.f32.mrf.mxu0
        %v1540 = vadd.f32 %v1250, %v1539
        %v1541 = vpop.f32.mrf.mxu0
        %1542 = vmatprep.mubr.bf16.mxu0 0
        %1543 = vmatmul.mubr.bf16.gmra.mxu0 %v1477
        %v1544 = vpop.f32.mrf.mxu0
        %v1545 = vadd.f32 %v1251, %v1544
        %v1546 = vpop.f32.mrf.mxu0
        %v1547 = vpop.f32.mrf.mxu0
        %v1548 = vadd.f32 %v1252, %v1547
        %v1549 = vpop.f32.mrf.mxu0
        %1550 = vmatprep.mubr.bf16.mxu0 0
        %1551 = vmatmul.mubr.bf16.gmra.mxu0 %v1480
        %v1552 = vpop.f32.mrf.mxu0
        %v1553 = vadd.f32 %v1253, %v1552
        %v1554 = vpop.f32.mrf.mxu0
        %v1555 = vpop.f32.mrf.mxu0
        %v1556 = vadd.f32 %v1254, %v1555
        %v1557 = vpop.f32.mrf.mxu0
        %1558 = vdwg.mxu0
        %1563 = vrot.lane.b32.xlu0 %v1239, 96
        %v1564 = vpop.permute.xlu0 %1563
        %1565 = vrot.lane.b32.xlu0 %v1241, 96
        %v1566 = vpop.permute.xlu0 %1565
        %1567 = vrot.lane.b32.xlu0 %v1243, 96
        %v1568 = vpop.permute.xlu0 %1567
        %1569 = vrot.lane.b32.xlu0 %v1245, 96
        %v1570 = vpop.permute.xlu0 %1569
        %v1572 = vsel %vm1267, %v1239, 0
        %v1575 = vsel %vm1267, %v1241, 0
        %v1578 = vsel %vm1267, %v1243, 0
        %v1581 = vsel %vm1267, %v1245, 0
        %v1584 = vsel %vm1267, %v1564, 0
        %v1587 = vsel %vm1267, %v1566, 0
        %v1590 = vsel %vm1267, %v1568, 0
        %v1593 = vsel %vm1267, %v1570, 0
        %1595 = vmatprep.subr.bf16.mxu0 0
        %1596 = vmatpush1.bf16.xpose.msra.mxu0 0
        %1597 = vmatprep.subr.bf16.mxu0 0
        %1598 = vmatpush1.bf16.xpose.msra.mxu0 0
        %1599 = vmatprep.subr.bf16.mxu0 0
        %1600 = vmatpush1.bf16.xpose.msra.mxu0 0
        %1601 = vmatprep.subr.bf16.mxu0 0
        %1602 = vmatpush1.bf16.xpose.msra.mxu0 0
        %1603 = vmatprep.subr.bf16.mxu0 0
        %1604 = vmatpush1.bf16.xpose.msra.mxu0 %v1593
        %1605 = vmatprep.subr.bf16.mxu0 0
        %1606 = vmatpush1.bf16.xpose.msra.mxu0 %v1590
        %1607 = vmatprep.subr.bf16.mxu0 0
        %1608 = vmatpush1.bf16.xpose.msra.mxu0 %v1587
        %1609 = vmatprep.subr.bf16.mxu0 0
        %1610 = vmatpush1.bf16.xpose.msra.mxu0 %v1584
        %1611 = vmatprep.subr.bf16.mxu0 0
        %1612 = vmatpush2.bf16.xpose.msra.mxu0 0
        %1613 = vmatprep.subr.bf16.mxu0 0
        %1614 = vmatpush2.bf16.xpose.msra.mxu0 0
        %1615 = vmatprep.subr.bf16.mxu0 0
        %1616 = vmatpush2.bf16.xpose.msra.mxu0 0
        %1617 = vmatprep.subr.bf16.mxu0 0
        %1618 = vmatpush2.bf16.xpose.msra.mxu0 0
        %1619 = vmatprep.subr.bf16.mxu0 0
        %1620 = vmatpush2.bf16.xpose.msra.mxu0 0
        %1621 = vmatprep.subr.bf16.mxu0 0
        %1622 = vmatpush2.bf16.xpose.msra.mxu0 0
        %1623 = vmatprep.subr.bf16.mxu0 0
        %1624 = vmatpush2.bf16.xpose.msra.mxu0 0
        %1625 = vmatprep.subr.bf16.mxu0 0
        %1626 = vmatpush2.bf16.xpose.msra.mxu0 0
        %1627 = vmatprep.mubr.bf16.mxu0 0
        %1628 = vmatmul.mubr.bf16.gmra.mxu0 %v1572
        %v1629 = vpop.f32.mrf.mxu0
        %v1630 = vadd.f32 %v1247, %v1629
        %v1631 = vpop.f32.mrf.mxu0
        %v1632 = vpop.f32.mrf.mxu0
        %v1633 = vadd.f32 %v1248, %v1632
        %v1634 = vpop.f32.mrf.mxu0
        %1635 = vmatprep.mubr.bf16.mxu0 0
        %1636 = vmatmul.mubr.bf16.gmra.mxu0 %v1575
        %v1637 = vpop.f32.mrf.mxu0
        %v1638 = vadd.f32 %v1249, %v1637
        %v1639 = vpop.f32.mrf.mxu0
        %v1640 = vpop.f32.mrf.mxu0
        %v1641 = vadd.f32 %v1250, %v1640
        %v1642 = vpop.f32.mrf.mxu0
        %1643 = vmatprep.mubr.bf16.mxu0 0
        %1644 = vmatmul.mubr.bf16.gmra.mxu0 %v1578
        %v1645 = vpop.f32.mrf.mxu0
        %v1646 = vadd.f32 %v1251, %v1645
        %v1647 = vpop.f32.mrf.mxu0
        %v1648 = vpop.f32.mrf.mxu0
        %v1649 = vadd.f32 %v1252, %v1648
        %v1650 = vpop.f32.mrf.mxu0
        %1651 = vmatprep.mubr.bf16.mxu0 0
        %1652 = vmatmul.mubr.bf16.gmra.mxu0 %v1581
        %v1653 = vpop.f32.mrf.mxu0
        %v1654 = vadd.f32 %v1253, %v1653
        %v1655 = vpop.f32.mrf.mxu0
        %v1656 = vpop.f32.mrf.mxu0
        %v1657 = vadd.f32 %v1254, %v1656
        %v1658 = vpop.f32.mrf.mxu0
        %1659 = vdwg.mxu0
        %v1660 = vsel %vm350, %v1327, -inf
        %1661 = vmax.xlane.f32.xlu0 %v1660
        %v1662 = vpop.xlane.xlu0 %1661
        %v1663 = vsel %vm350, %v1330, -inf
        %1664 = vmax.xlane.f32.xlu0 %v1663
        %v1665 = vpop.xlane.xlu0 %1664
        %v1666 = vsel %vm350, %v1335, -inf
        %1667 = vmax.xlane.f32.xlu0 %v1666
        %v1668 = vpop.xlane.xlu0 %1667
        %v1669 = vsel %vm350, %v1338, -inf
        %1670 = vmax.xlane.f32.xlu0 %v1669
        %v1671 = vpop.xlane.xlu0 %1670
        %v1672 = vsel %vm350, %v1343, -inf
        %1673 = vmax.xlane.f32.xlu0 %v1672
        %v1674 = vpop.xlane.xlu0 %1673
        %v1675 = vsel %vm350, %v1346, -inf
        %1676 = vmax.xlane.f32.xlu0 %v1675
        %v1677 = vpop.xlane.xlu0 %1676
        %v1678 = vsel %vm350, %v1351, -inf
        %1679 = vmax.xlane.f32.xlu0 %v1678
        %v1680 = vpop.xlane.xlu0 %1679
        %v1681 = vsel %vm350, %v1354, -inf
        %1682 = vmax.xlane.f32.xlu0 %v1681
        %v1683 = vpop.xlane.xlu0 %1682
        %v1684 = vsel %vm350, %v1428, -inf
        %1685 = vmax.xlane.f32.xlu0 %v1684
        %v1686 = vpop.xlane.xlu0 %1685
        %v1687 = vsel %vm350, %v1431, -inf
        %1688 = vmax.xlane.f32.xlu0 %v1687
        %v1689 = vpop.xlane.xlu0 %1688
        %v1690 = vsel %vm350, %v1436, -inf
        %1691 = vmax.xlane.f32.xlu0 %v1690
        %v1692 = vpop.xlane.xlu0 %1691
        %v1693 = vsel %vm350, %v1439, -inf
        %1694 = vmax.xlane.f32.xlu0 %v1693
        %v1695 = vpop.xlane.xlu0 %1694
        %v1696 = vsel %vm350, %v1444, -inf
        %1697 = vmax.xlane.f32.xlu0 %v1696
        %v1698 = vpop.xlane.xlu0 %1697
        %v1699 = vsel %vm350, %v1447, -inf
        %1700 = vmax.xlane.f32.xlu0 %v1699
        %v1701 = vpop.xlane.xlu0 %1700
        %v1702 = vsel %vm350, %v1452, -inf
        %1703 = vmax.xlane.f32.xlu0 %v1702
        %v1704 = vpop.xlane.xlu0 %1703
        %v1705 = vsel %vm350, %v1455, -inf
        %1706 = vmax.xlane.f32.xlu0 %v1705
        %v1707 = vpop.xlane.xlu0 %1706
        %v1708 = vsel %vm350, %v1529, -inf
        %1709 = vmax.xlane.f32.xlu0 %v1708
        %v1710 = vpop.xlane.xlu0 %1709
        %v1711 = vsel %vm350, %v1532, -inf
        %1712 = vmax.xlane.f32.xlu0 %v1711
        %v1713 = vpop.xlane.xlu0 %1712
        %v1714 = vsel %vm350, %v1537, -inf
        %1715 = vmax.xlane.f32.xlu0 %v1714
        %v1716 = vpop.xlane.xlu0 %1715
        %v1717 = vsel %vm350, %v1540, -inf
        %1718 = vmax.xlane.f32.xlu0 %v1717
        %v1719 = vpop.xlane.xlu0 %1718
        %v1720 = vsel %vm350, %v1545, -inf
        %1721 = vmax.xlane.f32.xlu0 %v1720
        %v1722 = vpop.xlane.xlu0 %1721
        %v1723 = vsel %vm350, %v1548, -inf
        %1724 = vmax.xlane.f32.xlu0 %v1723
        %v1725 = vpop.xlane.xlu0 %1724
        %v1726 = vsel %vm350, %v1553, -inf
        %1727 = vmax.xlane.f32.xlu0 %v1726
        %v1728 = vpop.xlane.xlu0 %1727
        %v1729 = vsel %vm350, %v1556, -inf
        %1730 = vmax.xlane.f32.xlu0 %v1729
        %v1731 = vpop.xlane.xlu0 %1730
        %v1732 = vsel %vm350, %v1630, -inf
        %1733 = vmax.xlane.f32.xlu0 %v1732
        %v1734 = vpop.xlane.xlu0 %1733
        %v1735 = vsel %vm350, %v1633, -inf
        %1736 = vmax.xlane.f32.xlu0 %v1735
        %v1737 = vpop.xlane.xlu0 %1736
        %v1738 = vsel %vm350, %v1638, -inf
        %1739 = vmax.xlane.f32.xlu0 %v1738
        %v1740 = vpop.xlane.xlu0 %1739
        %v1741 = vsel %vm350, %v1641, -inf
        %1742 = vmax.xlane.f32.xlu0 %v1741
        %v1743 = vpop.xlane.xlu0 %1742
        %v1744 = vsel %vm350, %v1646, -inf
        %1745 = vmax.xlane.f32.xlu0 %v1744
        %v1746 = vpop.xlane.xlu0 %1745
        %v1747 = vsel %vm350, %v1649, -inf
        %1748 = vmax.xlane.f32.xlu0 %v1747
        %v1749 = vpop.xlane.xlu0 %1748
        %v1750 = vsel %vm350, %v1654, -inf
        %1751 = vmax.xlane.f32.xlu0 %v1750
        %v1752 = vpop.xlane.xlu0 %1751
        %v1753 = vsel %vm350, %v1657, -inf
        %1754 = vmax.xlane.f32.xlu0 %v1753
        %v1755 = vpop.xlane.xlu0 %1754
        %v1756 = vsub.f32 %v1327, %v1662
        %v1757 = vsub.f32 %v1330, %v1665
        %v1758 = vsub.f32 %v1335, %v1668
        %v1759 = vsub.f32 %v1338, %v1671
        %v1760 = vsub.f32 %v1343, %v1674
        %v1761 = vsub.f32 %v1346, %v1677
        %v1762 = vsub.f32 %v1351, %v1680
        %v1763 = vsub.f32 %v1354, %v1683
        %v1764 = vsub.f32 %v1428, %v1686
        %v1765 = vsub.f32 %v1431, %v1689
        %v1766 = vsub.f32 %v1436, %v1692
        %v1767 = vsub.f32 %v1439, %v1695
        %v1768 = vsub.f32 %v1444, %v1698
        %v1769 = vsub.f32 %v1447, %v1701
        %v1770 = vsub.f32 %v1452, %v1704
        %v1771 = vsub.f32 %v1455, %v1707
        %v1772 = vsub.f32 %v1529, %v1710
        %v1773 = vsub.f32 %v1532, %v1713
        %v1774 = vsub.f32 %v1537, %v1716
        %v1775 = vsub.f32 %v1540, %v1719
        %v1776 = vsub.f32 %v1545, %v1722
        %v1777 = vsub.f32 %v1548, %v1725
        %v1778 = vsub.f32 %v1553, %v1728
        %v1779 = vsub.f32 %v1556, %v1731
        %v1780 = vsub.f32 %v1630, %v1734
        %v1781 = vsub.f32 %v1633, %v1737
        %v1782 = vsub.f32 %v1638, %v1740
        %v1783 = vsub.f32 %v1641, %v1743
        %v1784 = vsub.f32 %v1646, %v1746
        %v1785 = vsub.f32 %v1649, %v1749
        %v1786 = vsub.f32 %v1654, %v1752
        %v1787 = vsub.f32 %v1657, %v1755
        %v1788 = vmul.f32 %v1756, 1.442695
        %v1789 = vpow.pop %v1788
        %v1790 = vmul.f32 %v1757, 1.442695
        %v1791 = vpow.pop %v1790
        %v1792 = vmul.f32 %v1758, 1.442695
        %v1793 = vpow.pop %v1792
        %v1794 = vmul.f32 %v1759, 1.442695
        %v1795 = vpow.pop %v1794
        %v1796 = vmul.f32 %v1760, 1.442695
        %v1797 = vpow.pop %v1796
        %v1798 = vmul.f32 %v1761, 1.442695
        %v1799 = vpow.pop %v1798
        %v1800 = vmul.f32 %v1762, 1.442695
        %v1801 = vpow.pop %v1800
        %v1802 = vmul.f32 %v1763, 1.442695
        %v1803 = vpow.pop %v1802
        %v1804 = vmul.f32 %v1764, 1.442695
        %v1805 = vpow.pop %v1804
        %v1806 = vmul.f32 %v1765, 1.442695
        %v1807 = vpow.pop %v1806
        %v1808 = vmul.f32 %v1766, 1.442695
        %v1809 = vpow.pop %v1808
        %v1810 = vmul.f32 %v1767, 1.442695
        %v1811 = vpow.pop %v1810
        %v1812 = vmul.f32 %v1768, 1.442695
        %v1813 = vpow.pop %v1812
        %v1814 = vmul.f32 %v1769, 1.442695
        %v1815 = vpow.pop %v1814
        %v1816 = vmul.f32 %v1770, 1.442695
        %v1817 = vpow.pop %v1816
        %v1818 = vmul.f32 %v1771, 1.442695
        %v1819 = vpow.pop %v1818
        %v1820 = vmul.f32 %v1772, 1.442695
        %v1821 = vpow.pop %v1820
        %v1822 = vmul.f32 %v1773, 1.442695
        %v1823 = vpow.pop %v1822
        %v1824 = vmul.f32 %v1774, 1.442695
        %v1825 = vpow.pop %v1824
        %v1826 = vmul.f32 %v1775, 1.442695
        %v1827 = vpow.pop %v1826
        %v1828 = vmul.f32 %v1776, 1.442695
        %v1829 = vpow.pop %v1828
        %v1830 = vmul.f32 %v1777, 1.442695
        %v1831 = vpow.pop %v1830
        %v1832 = vmul.f32 %v1778, 1.442695
        %v1833 = vpow.pop %v1832
        %v1834 = vmul.f32 %v1779, 1.442695
        %v1835 = vpow.pop %v1834
        %v1836 = vmul.f32 %v1780, 1.442695
        %v1837 = vpow.pop %v1836
        %v1838 = vmul.f32 %v1781, 1.442695
        %v1839 = vpow.pop %v1838
        %v1840 = vmul.f32 %v1782, 1.442695
        %v1841 = vpow.pop %v1840
        %v1842 = vmul.f32 %v1783, 1.442695
        %v1843 = vpow.pop %v1842
        %v1844 = vmul.f32 %v1784, 1.442695
        %v1845 = vpow.pop %v1844
        %v1846 = vmul.f32 %v1785, 1.442695
        %v1847 = vpow.pop %v1846
        %v1848 = vmul.f32 %v1786, 1.442695
        %v1849 = vpow.pop %v1848
        %v1850 = vmul.f32 %v1787, 1.442695
        %v1851 = vpow.pop %v1850
        %v1852 = vsel %vm350, %v1789, 0.0
        %1853 = vadd.xlane.f32.xlu0 %v1852
        %v1854 = vpop.xlane.xlu0 %1853
        %v1855 = vsel %vm350, %v1791, 0.0
        %1856 = vadd.xlane.f32.xlu0 %v1855
        %v1857 = vpop.xlane.xlu0 %1856
        %v1858 = vsel %vm350, %v1793, 0.0
        %1859 = vadd.xlane.f32.xlu0 %v1858
        %v1860 = vpop.xlane.xlu0 %1859
        %v1861 = vsel %vm350, %v1795, 0.0
        %1862 = vadd.xlane.f32.xlu0 %v1861
        %v1863 = vpop.xlane.xlu0 %1862
        %v1864 = vsel %vm350, %v1797, 0.0
        %1865 = vadd.xlane.f32.xlu0 %v1864
        %v1866 = vpop.xlane.xlu0 %1865
        %v1867 = vsel %vm350, %v1799, 0.0
        %1868 = vadd.xlane.f32.xlu0 %v1867
        %v1869 = vpop.xlane.xlu0 %1868
        %v1870 = vsel %vm350, %v1801, 0.0
        %1871 = vadd.xlane.f32.xlu0 %v1870
        %v1872 = vpop.xlane.xlu0 %1871
        %v1873 = vsel %vm350, %v1803, 0.0
        %1874 = vadd.xlane.f32.xlu0 %v1873
        %v1875 = vpop.xlane.xlu0 %1874
        %v1876 = vsel %vm350, %v1805, 0.0
        %1877 = vadd.xlane.f32.xlu0 %v1876
        %v1878 = vpop.xlane.xlu0 %1877
        %v1879 = vsel %vm350, %v1807, 0.0
        %1880 = vadd.xlane.f32.xlu0 %v1879
        %v1881 = vpop.xlane.xlu0 %1880
        %v1882 = vsel %vm350, %v1809, 0.0
        %1883 = vadd.xlane.f32.xlu0 %v1882
        %v1884 = vpop.xlane.xlu0 %1883
        %v1885 = vsel %vm350, %v1811, 0.0
        %1886 = vadd.xlane.f32.xlu0 %v1885
        %v1887 = vpop.xlane.xlu0 %1886
        %v1888 = vsel %vm350, %v1813, 0.0
        %1889 = vadd.xlane.f32.xlu0 %v1888
        %v1890 = vpop.xlane.xlu0 %1889
        %v1891 = vsel %vm350, %v1815, 0.0
        %1892 = vadd.xlane.f32.xlu0 %v1891
        %v1893 = vpop.xlane.xlu0 %1892
        %v1894 = vsel %vm350, %v1817, 0.0
        %1895 = vadd.xlane.f32.xlu0 %v1894
        %v1896 = vpop.xlane.xlu0 %1895
        %v1897 = vsel %vm350, %v1819, 0.0
        %1898 = vadd.xlane.f32.xlu0 %v1897
        %v1899 = vpop.xlane.xlu0 %1898
        %v1900 = vsel %vm350, %v1821, 0.0
        %1901 = vadd.xlane.f32.xlu0 %v1900
        %v1902 = vpop.xlane.xlu0 %1901
        %v1903 = vsel %vm350, %v1823, 0.0
        %1904 = vadd.xlane.f32.xlu0 %v1903
        %v1905 = vpop.xlane.xlu0 %1904
        %v1906 = vsel %vm350, %v1825, 0.0
        %1907 = vadd.xlane.f32.xlu0 %v1906
        %v1908 = vpop.xlane.xlu0 %1907
        %v1909 = vsel %vm350, %v1827, 0.0
        %1910 = vadd.xlane.f32.xlu0 %v1909
        %v1911 = vpop.xlane.xlu0 %1910
        %v1912 = vsel %vm350, %v1829, 0.0
        %1913 = vadd.xlane.f32.xlu0 %v1912
        %v1914 = vpop.xlane.xlu0 %1913
        %v1915 = vsel %vm350, %v1831, 0.0
        %1916 = vadd.xlane.f32.xlu0 %v1915
        %v1917 = vpop.xlane.xlu0 %1916
        %v1918 = vsel %vm350, %v1833, 0.0
        %1919 = vadd.xlane.f32.xlu0 %v1918
        %v1920 = vpop.xlane.xlu0 %1919
        %v1921 = vsel %vm350, %v1835, 0.0
        %1922 = vadd.xlane.f32.xlu0 %v1921
        %v1923 = vpop.xlane.xlu0 %1922
        %v1924 = vsel %vm350, %v1837, 0.0
        %1925 = vadd.xlane.f32.xlu0 %v1924
        %v1926 = vpop.xlane.xlu0 %1925
        %v1927 = vsel %vm350, %v1839, 0.0
        %1928 = vadd.xlane.f32.xlu0 %v1927
        %v1929 = vpop.xlane.xlu0 %1928
        %v1930 = vsel %vm350, %v1841, 0.0
        %1931 = vadd.xlane.f32.xlu0 %v1930
        %v1932 = vpop.xlane.xlu0 %1931
        %v1933 = vsel %vm350, %v1843, 0.0
        %1934 = vadd.xlane.f32.xlu0 %v1933
        %v1935 = vpop.xlane.xlu0 %1934
        %v1936 = vsel %vm350, %v1845, 0.0
        %1937 = vadd.xlane.f32.xlu0 %v1936
        %v1938 = vpop.xlane.xlu0 %1937
        %v1939 = vsel %vm350, %v1847, 0.0
        %1940 = vadd.xlane.f32.xlu0 %v1939
        %v1941 = vpop.xlane.xlu0 %1940
        %v1942 = vsel %vm350, %v1849, 0.0
        %1943 = vadd.xlane.f32.xlu0 %v1942
        %v1944 = vpop.xlane.xlu0 %1943
        %v1945 = vsel %vm350, %v1851, 0.0
        %1946 = vadd.xlane.f32.xlu0 %v1945
        %v1947 = vpop.xlane.xlu0 %1946
        %v1948 = vpack.c.bf16 %v1791, %v1789
        %v1949 = vpack.c.bf16 %v1795, %v1793
        %v1950 = vpack.c.bf16 %v1799, %v1797
        %v1951 = vpack.c.bf16 %v1803, %v1801
        %v1952 = vpack.c.bf16 %v1807, %v1805
        %v1953 = vpack.c.bf16 %v1811, %v1809
        %v1954 = vpack.c.bf16 %v1815, %v1813
        %v1955 = vpack.c.bf16 %v1819, %v1817
        %v1956 = vpack.c.bf16 %v1823, %v1821
        %v1957 = vpack.c.bf16 %v1827, %v1825
        %v1958 = vpack.c.bf16 %v1831, %v1829
        %v1959 = vpack.c.bf16 %v1835, %v1833
        %v1960 = vpack.c.bf16 %v1839, %v1837
        %v1961 = vpack.c.bf16 %v1843, %v1841
        %v1962 = vpack.c.bf16 %v1847, %v1845
        %v1963 = vpack.c.bf16 %v1851, %v1849
        %1964 = vrot.lane.b32.xlu0 %v1215, 64
        %v1965 = vpop.permute.xlu0 %1964
        %1966 = vrot.lane.b32.xlu0 %v1217, 64
        %v1967 = vpop.permute.xlu0 %1966
        %1968 = vrot.lane.b32.xlu0 %v1219, 64
        %v1969 = vpop.permute.xlu0 %1968
        %1970 = vrot.lane.b32.xlu0 %v1221, 64
        %v1971 = vpop.permute.xlu0 %1970
        %v1977 = vsel %vm350, %v1948, 0
        %v1980 = vsel %vm350, %v1949, 0
        %v1983 = vsel %vm350, %v1950, 0
        %v1986 = vsel %vm350, %v1951, 0
        %1988 = vmatprep.subr.bf16.mxu0 0
        %1989 = vmatpush1.bf16.msra.mxu0 0
        %1990 = vmatprep.subr.bf16.mxu0 0
        %1991 = vmatpush1.bf16.msra.mxu0 0
        %1992 = vmatprep.subr.bf16.mxu0 0
        %1993 = vmatpush1.bf16.msra.mxu0 0
        %1994 = vmatprep.subr.bf16.mxu0 0
        %1995 = vmatpush1.bf16.msra.mxu0 0
        %1996 = vmatprep.subr.bf16.mxu0 0
        %1997 = vmatpush1.bf16.msra.mxu0 %v1971
        %1998 = vmatprep.subr.bf16.mxu0 0
        %1999 = vmatpush1.bf16.msra.mxu0 %v1969
        %2000 = vmatprep.subr.bf16.mxu0 0
        %2001 = vmatpush1.bf16.msra.mxu0 %v1967
        %2002 = vmatprep.subr.bf16.mxu0 0
        %2003 = vmatpush1.bf16.msra.mxu0 %v1965
        %2004 = vmatprep.subr.bf16.mxu0 0
        %2005 = vmatpush2.bf16.msra.mxu0 0
        %2006 = vmatprep.subr.bf16.mxu0 0
        %2007 = vmatpush2.bf16.msra.mxu0 0
        %2008 = vmatprep.subr.bf16.mxu0 0
        %2009 = vmatpush2.bf16.msra.mxu0 0
        %2010 = vmatprep.subr.bf16.mxu0 0
        %2011 = vmatpush2.bf16.msra.mxu0 0
        %2012 = vmatprep.subr.bf16.mxu0 0
        %2013 = vmatpush2.bf16.msra.mxu0 0
        %2014 = vmatprep.subr.bf16.mxu0 0
        %2015 = vmatpush2.bf16.msra.mxu0 0
        %2016 = vmatprep.subr.bf16.mxu0 0
        %2017 = vmatpush2.bf16.msra.mxu0 0
        %2018 = vmatprep.subr.bf16.mxu0 0
        %2019 = vmatpush2.bf16.msra.mxu0 0
        %2020 = vmatprep.mubr.bf16.mxu0 0
        %2021 = vmatmul.mubr.bf16.gmra.mxu0 %v1977
        %v2022 = vpop.f32.mrf.mxu0
        %v2023 = vadd.f32 0.0, %v2022
        %v2024 = vpop.f32.mrf.mxu0
        %v2025 = vpop.f32.mrf.mxu0
        %v2026 = vadd.f32 0.0, %v2025
        %v2027 = vpop.f32.mrf.mxu0
        %2028 = vmatprep.mubr.bf16.mxu0 0
        %2029 = vmatmul.mubr.bf16.gmra.mxu0 %v1980
        %v2030 = vpop.f32.mrf.mxu0
        %v2031 = vadd.f32 0.0, %v2030
        %v2032 = vpop.f32.mrf.mxu0
        %v2033 = vpop.f32.mrf.mxu0
        %v2034 = vadd.f32 0.0, %v2033
        %v2035 = vpop.f32.mrf.mxu0
        %2036 = vmatprep.mubr.bf16.mxu0 0
        %2037 = vmatmul.mubr.bf16.gmra.mxu0 %v1983
        %v2038 = vpop.f32.mrf.mxu0
        %v2039 = vadd.f32 0.0, %v2038
        %v2040 = vpop.f32.mrf.mxu0
        %v2041 = vpop.f32.mrf.mxu0
        %v2042 = vadd.f32 0.0, %v2041
        %v2043 = vpop.f32.mrf.mxu0
        %2044 = vmatprep.mubr.bf16.mxu0 0
        %2045 = vmatmul.mubr.bf16.gmra.mxu0 %v1986
        %v2046 = vpop.f32.mrf.mxu0
        %v2047 = vadd.f32 0.0, %v2046
        %v2048 = vpop.f32.mrf.mxu0
        %v2049 = vpop.f32.mrf.mxu0
        %v2050 = vadd.f32 0.0, %v2049
        %v2051 = vpop.f32.mrf.mxu0
        %2052 = vdwg.mxu0
        %2053 = vrot.lane.b32.xlu0 %v1223, 64
        %v2054 = vpop.permute.xlu0 %2053
        %2055 = vrot.lane.b32.xlu0 %v1225, 64
        %v2056 = vpop.permute.xlu0 %2055
        %2057 = vrot.lane.b32.xlu0 %v1227, 64
        %v2058 = vpop.permute.xlu0 %2057
        %2059 = vrot.lane.b32.xlu0 %v1229, 64
        %v2060 = vpop.permute.xlu0 %2059
        %v2066 = vsel %vm350, %v1952, 0
        %v2069 = vsel %vm350, %v1953, 0
        %v2072 = vsel %vm350, %v1954, 0
        %v2075 = vsel %vm350, %v1955, 0
        %2077 = vmatprep.subr.bf16.mxu0 0
        %2078 = vmatpush1.bf16.msra.mxu0 0
        %2079 = vmatprep.subr.bf16.mxu0 0
        %2080 = vmatpush1.bf16.msra.mxu0 0
        %2081 = vmatprep.subr.bf16.mxu0 0
        %2082 = vmatpush1.bf16.msra.mxu0 0
        %2083 = vmatprep.subr.bf16.mxu0 0
        %2084 = vmatpush1.bf16.msra.mxu0 0
        %2085 = vmatprep.subr.bf16.mxu0 0
        %2086 = vmatpush1.bf16.msra.mxu0 %v2060
        %2087 = vmatprep.subr.bf16.mxu0 0
        %2088 = vmatpush1.bf16.msra.mxu0 %v2058
        %2089 = vmatprep.subr.bf16.mxu0 0
        %2090 = vmatpush1.bf16.msra.mxu0 %v2056
        %2091 = vmatprep.subr.bf16.mxu0 0
        %2092 = vmatpush1.bf16.msra.mxu0 %v2054
        %2093 = vmatprep.subr.bf16.mxu0 0
        %2094 = vmatpush2.bf16.msra.mxu0 0
        %2095 = vmatprep.subr.bf16.mxu0 0
        %2096 = vmatpush2.bf16.msra.mxu0 0
        %2097 = vmatprep.subr.bf16.mxu0 0
        %2098 = vmatpush2.bf16.msra.mxu0 0
        %2099 = vmatprep.subr.bf16.mxu0 0
        %2100 = vmatpush2.bf16.msra.mxu0 0
        %2101 = vmatprep.subr.bf16.mxu0 0
        %2102 = vmatpush2.bf16.msra.mxu0 0
        %2103 = vmatprep.subr.bf16.mxu0 0
        %2104 = vmatpush2.bf16.msra.mxu0 0
        %2105 = vmatprep.subr.bf16.mxu0 0
        %2106 = vmatpush2.bf16.msra.mxu0 0
        %2107 = vmatprep.subr.bf16.mxu0 0
        %2108 = vmatpush2.bf16.msra.mxu0 0
        %2109 = vmatprep.mubr.bf16.mxu0 0
        %2110 = vmatmul.mubr.bf16.gmra.mxu0 %v2066
        %v2111 = vpop.f32.mrf.mxu0
        %v2112 = vadd.f32 0.0, %v2111
        %v2113 = vpop.f32.mrf.mxu0
        %v2114 = vpop.f32.mrf.mxu0
        %v2115 = vadd.f32 0.0, %v2114
        %v2116 = vpop.f32.mrf.mxu0
        %2117 = vmatprep.mubr.bf16.mxu0 0
        %2118 = vmatmul.mubr.bf16.gmra.mxu0 %v2069
        %v2119 = vpop.f32.mrf.mxu0
        %v2120 = vadd.f32 0.0, %v2119
        %v2121 = vpop.f32.mrf.mxu0
        %v2122 = vpop.f32.mrf.mxu0
        %v2123 = vadd.f32 0.0, %v2122
        %v2124 = vpop.f32.mrf.mxu0
        %2125 = vmatprep.mubr.bf16.mxu0 0
        %2126 = vmatmul.mubr.bf16.gmra.mxu0 %v2072
        %v2127 = vpop.f32.mrf.mxu0
        %v2128 = vadd.f32 0.0, %v2127
        %v2129 = vpop.f32.mrf.mxu0
        %v2130 = vpop.f32.mrf.mxu0
        %v2131 = vadd.f32 0.0, %v2130
        %v2132 = vpop.f32.mrf.mxu0
        %2133 = vmatprep.mubr.bf16.mxu0 0
        %2134 = vmatmul.mubr.bf16.gmra.mxu0 %v2075
        %v2135 = vpop.f32.mrf.mxu0
        %v2136 = vadd.f32 0.0, %v2135
        %v2137 = vpop.f32.mrf.mxu0
        %v2138 = vpop.f32.mrf.mxu0
        %v2139 = vadd.f32 0.0, %v2138
        %v2140 = vpop.f32.mrf.mxu0
        %2141 = vdwg.mxu0
        %2142 = vrot.lane.b32.xlu0 %v1231, 64
        %v2143 = vpop.permute.xlu0 %2142
        %2144 = vrot.lane.b32.xlu0 %v1233, 64
        %v2145 = vpop.permute.xlu0 %2144
        %2146 = vrot.lane.b32.xlu0 %v1235, 64
        %v2147 = vpop.permute.xlu0 %2146
        %2148 = vrot.lane.b32.xlu0 %v1237, 64
        %v2149 = vpop.permute.xlu0 %2148
        %v2155 = vsel %vm350, %v1956, 0
        %v2158 = vsel %vm350, %v1957, 0
        %v2161 = vsel %vm350, %v1958, 0
        %v2164 = vsel %vm350, %v1959, 0
        %2166 = vmatprep.subr.bf16.mxu0 0
        %2167 = vmatpush1.bf16.msra.mxu0 0
        %2168 = vmatprep.subr.bf16.mxu0 0
        %2169 = vmatpush1.bf16.msra.mxu0 0
        %2170 = vmatprep.subr.bf16.mxu0 0
        %2171 = vmatpush1.bf16.msra.mxu0 0
        %2172 = vmatprep.subr.bf16.mxu0 0
        %2173 = vmatpush1.bf16.msra.mxu0 0
        %2174 = vmatprep.subr.bf16.mxu0 0
        %2175 = vmatpush1.bf16.msra.mxu0 %v2149
        %2176 = vmatprep.subr.bf16.mxu0 0
        %2177 = vmatpush1.bf16.msra.mxu0 %v2147
        %2178 = vmatprep.subr.bf16.mxu0 0
        %2179 = vmatpush1.bf16.msra.mxu0 %v2145
        %2180 = vmatprep.subr.bf16.mxu0 0
        %2181 = vmatpush1.bf16.msra.mxu0 %v2143
        %2182 = vmatprep.subr.bf16.mxu0 0
        %2183 = vmatpush2.bf16.msra.mxu0 0
        %2184 = vmatprep.subr.bf16.mxu0 0
        %2185 = vmatpush2.bf16.msra.mxu0 0
        %2186 = vmatprep.subr.bf16.mxu0 0
        %2187 = vmatpush2.bf16.msra.mxu0 0
        %2188 = vmatprep.subr.bf16.mxu0 0
        %2189 = vmatpush2.bf16.msra.mxu0 0
        %2190 = vmatprep.subr.bf16.mxu0 0
        %2191 = vmatpush2.bf16.msra.mxu0 0
        %2192 = vmatprep.subr.bf16.mxu0 0
        %2193 = vmatpush2.bf16.msra.mxu0 0
        %2194 = vmatprep.subr.bf16.mxu0 0
        %2195 = vmatpush2.bf16.msra.mxu0 0
        %2196 = vmatprep.subr.bf16.mxu0 0
        %2197 = vmatpush2.bf16.msra.mxu0 0
        %2198 = vmatprep.mubr.bf16.mxu0 0
        %2199 = vmatmul.mubr.bf16.gmra.mxu0 %v2155
        %v2200 = vpop.f32.mrf.mxu0
        %v2201 = vadd.f32 0.0, %v2200
        %v2202 = vpop.f32.mrf.mxu0
        %v2203 = vpop.f32.mrf.mxu0
        %v2204 = vadd.f32 0.0, %v2203
        %v2205 = vpop.f32.mrf.mxu0
        %2206 = vmatprep.mubr.bf16.mxu0 0
        %2207 = vmatmul.mubr.bf16.gmra.mxu0 %v2158
        %v2208 = vpop.f32.mrf.mxu0
        %v2209 = vadd.f32 0.0, %v2208
        %v2210 = vpop.f32.mrf.mxu0
        %v2211 = vpop.f32.mrf.mxu0
        %v2212 = vadd.f32 0.0, %v2211
        %v2213 = vpop.f32.mrf.mxu0
        %2214 = vmatprep.mubr.bf16.mxu0 0
        %2215 = vmatmul.mubr.bf16.gmra.mxu0 %v2161
        %v2216 = vpop.f32.mrf.mxu0
        %v2217 = vadd.f32 0.0, %v2216
        %v2218 = vpop.f32.mrf.mxu0
        %v2219 = vpop.f32.mrf.mxu0
        %v2220 = vadd.f32 0.0, %v2219
        %v2221 = vpop.f32.mrf.mxu0
        %2222 = vmatprep.mubr.bf16.mxu0 0
        %2223 = vmatmul.mubr.bf16.gmra.mxu0 %v2164
        %v2224 = vpop.f32.mrf.mxu0
        %v2225 = vadd.f32 0.0, %v2224
        %v2226 = vpop.f32.mrf.mxu0
        %v2227 = vpop.f32.mrf.mxu0
        %v2228 = vadd.f32 0.0, %v2227
        %v2229 = vpop.f32.mrf.mxu0
        %2230 = vdwg.mxu0
        %2231 = vrot.lane.b32.xlu0 %v1239, 64
        %v2232 = vpop.permute.xlu0 %2231
        %2233 = vrot.lane.b32.xlu0 %v1241, 64
        %v2234 = vpop.permute.xlu0 %2233
        %2235 = vrot.lane.b32.xlu0 %v1243, 64
        %v2236 = vpop.permute.xlu0 %2235
        %2237 = vrot.lane.b32.xlu0 %v1245, 64
        %v2238 = vpop.permute.xlu0 %2237
        %v2244 = vsel %vm350, %v1960, 0
        %v2247 = vsel %vm350, %v1961, 0
        %v2250 = vsel %vm350, %v1962, 0
        %v2253 = vsel %vm350, %v1963, 0
        %2255 = vmatprep.subr.bf16.mxu0 0
        %2256 = vmatpush1.bf16.msra.mxu0 0
        %2257 = vmatprep.subr.bf16.mxu0 0
        %2258 = vmatpush1.bf16.msra.mxu0 0
        %2259 = vmatprep.subr.bf16.mxu0 0
        %2260 = vmatpush1.bf16.msra.mxu0 0
        %2261 = vmatprep.subr.bf16.mxu0 0
        %2262 = vmatpush1.bf16.msra.mxu0 0
        %2263 = vmatprep.subr.bf16.mxu0 0
        %2264 = vmatpush1.bf16.msra.mxu0 %v2238
        %2265 = vmatprep.subr.bf16.mxu0 0
        %2266 = vmatpush1.bf16.msra.mxu0 %v2236
        %2267 = vmatprep.subr.bf16.mxu0 0
        %2268 = vmatpush1.bf16.msra.mxu0 %v2234
        %2269 = vmatprep.subr.bf16.mxu0 0
        %2270 = vmatpush1.bf16.msra.mxu0 %v2232
        %2271 = vmatprep.subr.bf16.mxu0 0
        %2272 = vmatpush2.bf16.msra.mxu0 0
        %2273 = vmatprep.subr.bf16.mxu0 0
        %2274 = vmatpush2.bf16.msra.mxu0 0
        %2275 = vmatprep.subr.bf16.mxu0 0
        %2276 = vmatpush2.bf16.msra.mxu0 0
        %2277 = vmatprep.subr.bf16.mxu0 0
        %2278 = vmatpush2.bf16.msra.mxu0 0
        %2279 = vmatprep.subr.bf16.mxu0 0
        %2280 = vmatpush2.bf16.msra.mxu0 0
        %2281 = vmatprep.subr.bf16.mxu0 0
        %2282 = vmatpush2.bf16.msra.mxu0 0
        %2283 = vmatprep.subr.bf16.mxu0 0
        %2284 = vmatpush2.bf16.msra.mxu0 0
        %2285 = vmatprep.subr.bf16.mxu0 0
        %2286 = vmatpush2.bf16.msra.mxu0 0
        %2287 = vmatprep.mubr.bf16.mxu0 0
        %2288 = vmatmul.mubr.bf16.gmra.mxu0 %v2244
        %v2289 = vpop.f32.mrf.mxu0
        %v2290 = vadd.f32 0.0, %v2289
        %v2291 = vpop.f32.mrf.mxu0
        %v2292 = vpop.f32.mrf.mxu0
        %v2293 = vadd.f32 0.0, %v2292
        %v2294 = vpop.f32.mrf.mxu0
        %2295 = vmatprep.mubr.bf16.mxu0 0
        %2296 = vmatmul.mubr.bf16.gmra.mxu0 %v2247
        %v2297 = vpop.f32.mrf.mxu0
        %v2298 = vadd.f32 0.0, %v2297
        %v2299 = vpop.f32.mrf.mxu0
        %v2300 = vpop.f32.mrf.mxu0
        %v2301 = vadd.f32 0.0, %v2300
        %v2302 = vpop.f32.mrf.mxu0
        %2303 = vmatprep.mubr.bf16.mxu0 0
        %2304 = vmatmul.mubr.bf16.gmra.mxu0 %v2250
        %v2305 = vpop.f32.mrf.mxu0
        %v2306 = vadd.f32 0.0, %v2305
        %v2307 = vpop.f32.mrf.mxu0
        %v2308 = vpop.f32.mrf.mxu0
        %v2309 = vadd.f32 0.0, %v2308
        %v2310 = vpop.f32.mrf.mxu0
        %2311 = vmatprep.mubr.bf16.mxu0 0
        %2312 = vmatmul.mubr.bf16.gmra.mxu0 %v2253
        %v2313 = vpop.f32.mrf.mxu0
        %v2314 = vadd.f32 0.0, %v2313
        %v2315 = vpop.f32.mrf.mxu0
        %v2316 = vpop.f32.mrf.mxu0
        %v2317 = vadd.f32 0.0, %v2316
        %v2318 = vpop.f32.mrf.mxu0
        %2319 = vdwg.mxu0
        %v2320 = vrcp.pop %v1854
        %v2321 = vrcp.pop %v1857
        %v2322 = vrcp.pop %v1860
        %v2323 = vrcp.pop %v1863
        %v2324 = vrcp.pop %v1866
        %v2325 = vrcp.pop %v1869
        %v2326 = vrcp.pop %v1872
        %v2327 = vrcp.pop %v1875
        %v2328 = vrcp.pop %v1878
        %v2329 = vrcp.pop %v1881
        %v2330 = vrcp.pop %v1884
        %v2331 = vrcp.pop %v1887
        %v2332 = vrcp.pop %v1890
        %v2333 = vrcp.pop %v1893
        %v2334 = vrcp.pop %v1896
        %v2335 = vrcp.pop %v1899
        %v2336 = vrcp.pop %v1902
        %v2337 = vrcp.pop %v1905
        %v2338 = vrcp.pop %v1908
        %v2339 = vrcp.pop %v1911
        %v2340 = vrcp.pop %v1914
        %v2341 = vrcp.pop %v1917
        %v2342 = vrcp.pop %v1920
        %v2343 = vrcp.pop %v1923
        %v2344 = vrcp.pop %v1926
        %v2345 = vrcp.pop %v1929
        %v2346 = vrcp.pop %v1932
        %v2347 = vrcp.pop %v1935
        %v2348 = vrcp.pop %v1938
        %v2349 = vrcp.pop %v1941
        %v2350 = vrcp.pop %v1944
        %v2351 = vrcp.pop %v1947
        %v2352 = vmul.f32 %v2023, %v2320
        %v2353 = vmul.f32 %v2026, %v2321
        %v2354 = vmul.f32 %v2031, %v2322
        %v2355 = vmul.f32 %v2034, %v2323
        %v2356 = vmul.f32 %v2039, %v2324
        %v2357 = vmul.f32 %v2042, %v2325
        %v2358 = vmul.f32 %v2047, %v2326
        %v2359 = vmul.f32 %v2050, %v2327
        %v2360 = vmul.f32 %v2112, %v2328
        %v2361 = vmul.f32 %v2115, %v2329
        %v2362 = vmul.f32 %v2120, %v2330
        %v2363 = vmul.f32 %v2123, %v2331
        %v2364 = vmul.f32 %v2128, %v2332
        %v2365 = vmul.f32 %v2131, %v2333
        %v2366 = vmul.f32 %v2136, %v2334
        %v2367 = vmul.f32 %v2139, %v2335
        %v2368 = vmul.f32 %v2201, %v2336
        %v2369 = vmul.f32 %v2204, %v2337
        %v2370 = vmul.f32 %v2209, %v2338
        %v2371 = vmul.f32 %v2212, %v2339
        %v2372 = vmul.f32 %v2217, %v2340
        %v2373 = vmul.f32 %v2220, %v2341
        %v2374 = vmul.f32 %v2225, %v2342
        %v2375 = vmul.f32 %v2228, %v2343
        %v2376 = vmul.f32 %v2290, %v2344
        %v2377 = vmul.f32 %v2293, %v2345
        %v2378 = vmul.f32 %v2298, %v2346
        %v2379 = vmul.f32 %v2301, %v2347
        %v2380 = vmul.f32 %v2306, %v2348
        %v2381 = vmul.f32 %v2309, %v2349
        %v2382 = vmul.f32 %v2314, %v2350
        %v2383 = vmul.f32 %v2317, %v2351
        %s2384 = scalar_lea.vmem [#allocation7], 64
        %v2385 = vld [vmem:[%s2384] sm:$0xff]
        %v2386 = vld [vmem:[%s2384 + $0x8] sm:$0xff]
        %v2387 = vld [vmem:[%s2384 + $0x10] sm:$0xff]
        %v2388 = vld [vmem:[%s2384 + $0x18] sm:$0xff]
        %v2389 = vld [vmem:[%s2384 + $0x20] sm:$0xff]
        %v2390 = vld [vmem:[%s2384 + $0x28] sm:$0xff]
        %v2391 = vld [vmem:[%s2384 + $0x30] sm:$0xff]
        %v2392 = vld [vmem:[%s2384 + $0x38] sm:$0xff]
        %2393 = vrot.lane.b32.xlu0 %v1215, 32
        %v2394 = vpop.permute.xlu0 %2393
        %2395 = vrot.lane.b32.xlu0 %v1217, 32
        %v2396 = vpop.permute.xlu0 %2395
        %2397 = vrot.lane.b32.xlu0 %v1219, 32
        %v2398 = vpop.permute.xlu0 %2397
        %2399 = vrot.lane.b32.xlu0 %v1221, 32
        %v2400 = vpop.permute.xlu0 %2399
        %v2402 = vsel %vm1267, %v2394, 0
        %v2405 = vsel %vm1267, %v2396, 0
        %v2408 = vsel %vm1267, %v2398, 0
        %v2411 = vsel %vm1267, %v2400, 0
        %v2414 = vsel %vm1267, %v1216, 0
        %v2417 = vsel %vm1267, %v1218, 0
        %v2420 = vsel %vm1267, %v1220, 0
        %v2423 = vsel %vm1267, %v1222, 0
        %2425 = vmatprep.subr.bf16.mxu0 0
        %2426 = vmatpush1.bf16.xpose.msra.mxu0 0
        %2427 = vmatprep.subr.bf16.mxu0 0
        %2428 = vmatpush1.bf16.xpose.msra.mxu0 0
        %2429 = vmatprep.subr.bf16.mxu0 0
        %2430 = vmatpush1.bf16.xpose.msra.mxu0 0
        %2431 = vmatprep.subr.bf16.mxu0 0
        %2432 = vmatpush1.bf16.xpose.msra.mxu0 0
        %2433 = vmatprep.subr.bf16.mxu0 0
        %2434 = vmatpush1.bf16.xpose.msra.mxu0 %v2423
        %2435 = vmatprep.subr.bf16.mxu0 0
        %2436 = vmatpush1.bf16.xpose.msra.mxu0 %v2420
        %2437 = vmatprep.subr.bf16.mxu0 0
        %2438 = vmatpush1.bf16.xpose.msra.mxu0 %v2417
        %2439 = vmatprep.subr.bf16.mxu0 0
        %2440 = vmatpush1.bf16.xpose.msra.mxu0 %v2414
        %2441 = vmatprep.subr.bf16.mxu0 0
        %2442 = vmatpush2.bf16.xpose.msra.mxu0 0
        %2443 = vmatprep.subr.bf16.mxu0 0
        %2444 = vmatpush2.bf16.xpose.msra.mxu0 0
        %2445 = vmatprep.subr.bf16.mxu0 0
        %2446 = vmatpush2.bf16.xpose.msra.mxu0 0
        %2447 = vmatprep.subr.bf16.mxu0 0
        %2448 = vmatpush2.bf16.xpose.msra.mxu0 0
        %2449 = vmatprep.subr.bf16.mxu0 0
        %2450 = vmatpush2.bf16.xpose.msra.mxu0 0
        %2451 = vmatprep.subr.bf16.mxu0 0
        %2452 = vmatpush2.bf16.xpose.msra.mxu0 0
        %2453 = vmatprep.subr.bf16.mxu0 0
        %2454 = vmatpush2.bf16.xpose.msra.mxu0 0
        %2455 = vmatprep.subr.bf16.mxu0 0
        %2456 = vmatpush2.bf16.xpose.msra.mxu0 0
        %2457 = vmatprep.mubr.bf16.mxu0 0
        %2458 = vmatmul.mubr.bf16.gmra.mxu0 %v2402
        %v2459 = vpop.f32.mrf.mxu0
        %v2460 = vadd.f32 %v2385, %v2459
        %v2461 = vpop.f32.mrf.mxu0
        %v2462 = vpop.f32.mrf.mxu0
        %v2463 = vadd.f32 %v2386, %v2462
        %v2464 = vpop.f32.mrf.mxu0
        %2465 = vmatprep.mubr.bf16.mxu0 0
        %2466 = vmatmul.mubr.bf16.gmra.mxu0 %v2405
        %v2467 = vpop.f32.mrf.mxu0
        %v2468 = vadd.f32 %v2387, %v2467
        %v2469 = vpop.f32.mrf.mxu0
        %v2470 = vpop.f32.mrf.mxu0
        %v2471 = vadd.f32 %v2388, %v2470
        %v2472 = vpop.f32.mrf.mxu0
        %2473 = vmatprep.mubr.bf16.mxu0 0
        %2474 = vmatmul.mubr.bf16.gmra.mxu0 %v2408
        %v2475 = vpop.f32.mrf.mxu0
        %v2476 = vadd.f32 %v2389, %v2475
        %v2477 = vpop.f32.mrf.mxu0
        %v2478 = vpop.f32.mrf.mxu0
        %v2479 = vadd.f32 %v2390, %v2478
        %v2480 = vpop.f32.mrf.mxu0
        %2481 = vmatprep.mubr.bf16.mxu0 0
        %2482 = vmatmul.mubr.bf16.gmra.mxu0 %v2411
        %v2483 = vpop.f32.mrf.mxu0
        %v2484 = vadd.f32 %v2391, %v2483
        %v2485 = vpop.f32.mrf.mxu0
        %v2486 = vpop.f32.mrf.mxu0
        %v2487 = vadd.f32 %v2392, %v2486
        %v2488 = vpop.f32.mrf.mxu0
        %2489 = vdwg.mxu0
        %2490 = vrot.lane.b32.xlu0 %v1223, 32
        %v2491 = vpop.permute.xlu0 %2490
        %2492 = vrot.lane.b32.xlu0 %v1225, 32
        %v2493 = vpop.permute.xlu0 %2492
        %2494 = vrot.lane.b32.xlu0 %v1227, 32
        %v2495 = vpop.permute.xlu0 %2494
        %2496 = vrot.lane.b32.xlu0 %v1229, 32
        %v2497 = vpop.permute.xlu0 %2496
        %v2499 = vsel %vm1267, %v2491, 0
        %v2502 = vsel %vm1267, %v2493, 0
        %v2505 = vsel %vm1267, %v2495, 0
        %v2508 = vsel %vm1267, %v2497, 0
        %v2511 = vsel %vm1267, %v1224, 0
        %v2514 = vsel %vm1267, %v1226, 0
        %v2517 = vsel %vm1267, %v1228, 0
        %v2520 = vsel %vm1267, %v1230, 0
        %2522 = vmatprep.subr.bf16.mxu0 0
        %2523 = vmatpush1.bf16.xpose.msra.mxu0 0
        %2524 = vmatprep.subr.bf16.mxu0 0
        %2525 = vmatpush1.bf16.xpose.msra.mxu0 0
        %2526 = vmatprep.subr.bf16.mxu0 0
        %2527 = vmatpush1.bf16.xpose.msra.mxu0 0
        %2528 = vmatprep.subr.bf16.mxu0 0
        %2529 = vmatpush1.bf16.xpose.msra.mxu0 0
        %2530 = vmatprep.subr.bf16.mxu0 0
        %2531 = vmatpush1.bf16.xpose.msra.mxu0 %v2520
        %2532 = vmatprep.subr.bf16.mxu0 0
        %2533 = vmatpush1.bf16.xpose.msra.mxu0 %v2517
        %2534 = vmatprep.subr.bf16.mxu0 0
        %2535 = vmatpush1.bf16.xpose.msra.mxu0 %v2514
        %2536 = vmatprep.subr.bf16.mxu0 0
        %2537 = vmatpush1.bf16.xpose.msra.mxu0 %v2511
        %2538 = vmatprep.subr.bf16.mxu0 0
        %2539 = vmatpush2.bf16.xpose.msra.mxu0 0
        %2540 = vmatprep.subr.bf16.mxu0 0
        %2541 = vmatpush2.bf16.xpose.msra.mxu0 0
        %2542 = vmatprep.subr.bf16.mxu0 0
        %2543 = vmatpush2.bf16.xpose.msra.mxu0 0
        %2544 = vmatprep.subr.bf16.mxu0 0
        %2545 = vmatpush2.bf16.xpose.msra.mxu0 0
        %2546 = vmatprep.subr.bf16.mxu0 0
        %2547 = vmatpush2.bf16.xpose.msra.mxu0 0
        %2548 = vmatprep.subr.bf16.mxu0 0
        %2549 = vmatpush2.bf16.xpose.msra.mxu0 0
        %2550 = vmatprep.subr.bf16.mxu0 0
        %2551 = vmatpush2.bf16.xpose.msra.mxu0 0
        %2552 = vmatprep.subr.bf16.mxu0 0
        %2553 = vmatpush2.bf16.xpose.msra.mxu0 0
        %2554 = vmatprep.mubr.bf16.mxu0 0
        %2555 = vmatmul.mubr.bf16.gmra.mxu0 %v2499
        %v2556 = vpop.f32.mrf.mxu0
        %v2557 = vadd.f32 %v2385, %v2556
        %v2558 = vpop.f32.mrf.mxu0
        %v2559 = vpop.f32.mrf.mxu0
        %v2560 = vadd.f32 %v2386, %v2559
        %v2561 = vpop.f32.mrf.mxu0
        %2562 = vmatprep.mubr.bf16.mxu0 0
        %2563 = vmatmul.mubr.bf16.gmra.mxu0 %v2502
        %v2564 = vpop.f32.mrf.mxu0
        %v2565 = vadd.f32 %v2387, %v2564
        %v2566 = vpop.f32.mrf.mxu0
        %v2567 = vpop.f32.mrf.mxu0
        %v2568 = vadd.f32 %v2388, %v2567
        %v2569 = vpop.f32.mrf.mxu0
        %2570 = vmatprep.mubr.bf16.mxu0 0
        %2571 = vmatmul.mubr.bf16.gmra.mxu0 %v2505
        %v2572 = vpop.f32.mrf.mxu0
        %v2573 = vadd.f32 %v2389, %v2572
        %v2574 = vpop.f32.mrf.mxu0
        %v2575 = vpop.f32.mrf.mxu0
        %v2576 = vadd.f32 %v2390, %v2575
        %v2577 = vpop.f32.mrf.mxu0
        %2578 = vmatprep.mubr.bf16.mxu0 0
        %2579 = vmatmul.mubr.bf16.gmra.mxu0 %v2508
        %v2580 = vpop.f32.mrf.mxu0
        %v2581 = vadd.f32 %v2391, %v2580
        %v2582 = vpop.f32.mrf.mxu0
        %v2583 = vpop.f32.mrf.mxu0
        %v2584 = vadd.f32 %v2392, %v2583
        %v2585 = vpop.f32.mrf.mxu0
        %2586 = vdwg.mxu0
        %2587 = vrot.lane.b32.xlu0 %v1231, 32
        %v2588 = vpop.permute.xlu0 %2587
        %2589 = vrot.lane.b32.xlu0 %v1233, 32
        %v2590 = vpop.permute.xlu0 %2589
        %2591 = vrot.lane.b32.xlu0 %v1235, 32
        %v2592 = vpop.permute.xlu0 %2591
        %2593 = vrot.lane.b32.xlu0 %v1237, 32
        %v2594 = vpop.permute.xlu0 %2593
        %v2596 = vsel %vm1267, %v2588, 0
        %v2599 = vsel %vm1267, %v2590, 0
        %v2602 = vsel %vm1267, %v2592, 0
        %v2605 = vsel %vm1267, %v2594, 0
        %v2608 = vsel %vm1267, %v1232, 0
        %v2611 = vsel %vm1267, %v1234, 0
        %v2614 = vsel %vm1267, %v1236, 0
        %v2617 = vsel %vm1267, %v1238, 0
        %2619 = vmatprep.subr.bf16.mxu0 0
        %2620 = vmatpush1.bf16.xpose.msra.mxu0 0
        %2621 = vmatprep.subr.bf16.mxu0 0
        %2622 = vmatpush1.bf16.xpose.msra.mxu0 0
        %2623 = vmatprep.subr.bf16.mxu0 0
        %2624 = vmatpush1.bf16.xpose.msra.mxu0 0
        %2625 = vmatprep.subr.bf16.mxu0 0
        %2626 = vmatpush1.bf16.xpose.msra.mxu0 0
        %2627 = vmatprep.subr.bf16.mxu0 0
        %2628 = vmatpush1.bf16.xpose.msra.mxu0 %v2617
        %2629 = vmatprep.subr.bf16.mxu0 0
        %2630 = vmatpush1.bf16.xpose.msra.mxu0 %v2614
        %2631 = vmatprep.subr.bf16.mxu0 0
        %2632 = vmatpush1.bf16.xpose.msra.mxu0 %v2611
        %2633 = vmatprep.subr.bf16.mxu0 0
        %2634 = vmatpush1.bf16.xpose.msra.mxu0 %v2608
        %2635 = vmatprep.subr.bf16.mxu0 0
        %2636 = vmatpush2.bf16.xpose.msra.mxu0 0
        %2637 = vmatprep.subr.bf16.mxu0 0
        %2638 = vmatpush2.bf16.xpose.msra.mxu0 0
        %2639 = vmatprep.subr.bf16.mxu0 0
        %2640 = vmatpush2.bf16.xpose.msra.mxu0 0
        %2641 = vmatprep.subr.bf16.mxu0 0
        %2642 = vmatpush2.bf16.xpose.msra.mxu0 0
        %2643 = vmatprep.subr.bf16.mxu0 0
        %2644 = vmatpush2.bf16.xpose.msra.mxu0 0
        %2645 = vmatprep.subr.bf16.mxu0 0
        %2646 = vmatpush2.bf16.xpose.msra.mxu0 0
        %2647 = vmatprep.subr.bf16.mxu0 0
        %2648 = vmatpush2.bf16.xpose.msra.mxu0 0
        %2649 = vmatprep.subr.bf16.mxu0 0
        %2650 = vmatpush2.bf16.xpose.msra.mxu0 0
        %2651 = vmatprep.mubr.bf16.mxu0 0
        %2652 = vmatmul.mubr.bf16.gmra.mxu0 %v2596
        %v2653 = vpop.f32.mrf.mxu0
        %v2654 = vadd.f32 %v2385, %v2653
        %v2655 = vpop.f32.mrf.mxu0
        %v2656 = vpop.f32.mrf.mxu0
        %v2657 = vadd.f32 %v2386, %v2656
        %v2658 = vpop.f32.mrf.mxu0
        %2659 = vmatprep.mubr.bf16.mxu0 0
        %2660 = vmatmul.mubr.bf16.gmra.mxu0 %v2599
        %v2661 = vpop.f32.mrf.mxu0
        %v2662 = vadd.f32 %v2387, %v2661
        %v2663 = vpop.f32.mrf.mxu0
        %v2664 = vpop.f32.mrf.mxu0
        %v2665 = vadd.f32 %v2388, %v2664
        %v2666 = vpop.f32.mrf.mxu0
        %2667 = vmatprep.mubr.bf16.mxu0 0
        %2668 = vmatmul.mubr.bf16.gmra.mxu0 %v2602
        %v2669 = vpop.f32.mrf.mxu0
        %v2670 = vadd.f32 %v2389, %v2669
        %v2671 = vpop.f32.mrf.mxu0
        %v2672 = vpop.f32.mrf.mxu0
        %v2673 = vadd.f32 %v2390, %v2672
        %v2674 = vpop.f32.mrf.mxu0
        %2675 = vmatprep.mubr.bf16.mxu0 0
        %2676 = vmatmul.mubr.bf16.gmra.mxu0 %v2605
        %v2677 = vpop.f32.mrf.mxu0
        %v2678 = vadd.f32 %v2391, %v2677
        %v2679 = vpop.f32.mrf.mxu0
        %v2680 = vpop.f32.mrf.mxu0
        %v2681 = vadd.f32 %v2392, %v2680
        %v2682 = vpop.f32.mrf.mxu0
        %2683 = vdwg.mxu0
        %2684 = vrot.lane.b32.xlu0 %v1239, 32
        %v2685 = vpop.permute.xlu0 %2684
        %2686 = vrot.lane.b32.xlu0 %v1241, 32
        %v2687 = vpop.permute.xlu0 %2686
        %2688 = vrot.lane.b32.xlu0 %v1243, 32
        %v2689 = vpop.permute.xlu0 %2688
        %2690 = vrot.lane.b32.xlu0 %v1245, 32
        %v2691 = vpop.permute.xlu0 %2690
        %v2693 = vsel %vm1267, %v2685, 0
        %v2696 = vsel %vm1267, %v2687, 0
        %v2699 = vsel %vm1267, %v2689, 0
        %v2702 = vsel %vm1267, %v2691, 0
        %v2705 = vsel %vm1267, %v1240, 0
        %v2708 = vsel %vm1267, %v1242, 0
        %v2711 = vsel %vm1267, %v1244, 0
        %v2714 = vsel %vm1267, %v1246, 0
        %2716 = vmatprep.subr.bf16.mxu0 0
        %2717 = vmatpush1.bf16.xpose.msra.mxu0 0
        %2718 = vmatprep.subr.bf16.mxu0 0
        %2719 = vmatpush1.bf16.xpose.msra.mxu0 0
        %2720 = vmatprep.subr.bf16.mxu0 0
        %2721 = vmatpush1.bf16.xpose.msra.mxu0 0
        %2722 = vmatprep.subr.bf16.mxu0 0
        %2723 = vmatpush1.bf16.xpose.msra.mxu0 0
        %2724 = vmatprep.subr.bf16.mxu0 0
        %2725 = vmatpush1.bf16.xpose.msra.mxu0 %v2714
        %2726 = vmatprep.subr.bf16.mxu0 0
        %2727 = vmatpush1.bf16.xpose.msra.mxu0 %v2711
        %2728 = vmatprep.subr.bf16.mxu0 0
        %2729 = vmatpush1.bf16.xpose.msra.mxu0 %v2708
        %2730 = vmatprep.subr.bf16.mxu0 0
        %2731 = vmatpush1.bf16.xpose.msra.mxu0 %v2705
        %2732 = vmatprep.subr.bf16.mxu0 0
        %2733 = vmatpush2.bf16.xpose.msra.mxu0 0
        %2734 = vmatprep.subr.bf16.mxu0 0
        %2735 = vmatpush2.bf16.xpose.msra.mxu0 0
        %2736 = vmatprep.subr.bf16.mxu0 0
        %2737 = vmatpush2.bf16.xpose.msra.mxu0 0
        %2738 = vmatprep.subr.bf16.mxu0 0
        %2739 = vmatpush2.bf16.xpose.msra.mxu0 0
        %2740 = vmatprep.subr.bf16.mxu0 0
        %2741 = vmatpush2.bf16.xpose.msra.mxu0 0
        %2742 = vmatprep.subr.bf16.mxu0 0
        %2743 = vmatpush2.bf16.xpose.msra.mxu0 0
        %2744 = vmatprep.subr.bf16.mxu0 0
        %2745 = vmatpush2.bf16.xpose.msra.mxu0 0
        %2746 = vmatprep.subr.bf16.mxu0 0
        %2747 = vmatpush2.bf16.xpose.msra.mxu0 0
        %2748 = vmatprep.mubr.bf16.mxu0 0
        %2749 = vmatmul.mubr.bf16.gmra.mxu0 %v2693
        %v2750 = vpop.f32.mrf.mxu0
        %v2751 = vadd.f32 %v2385, %v2750
        %v2752 = vpop.f32.mrf.mxu0
        %v2753 = vpop.f32.mrf.mxu0
        %v2754 = vadd.f32 %v2386, %v2753
        %v2755 = vpop.f32.mrf.mxu0
        %2756 = vmatprep.mubr.bf16.mxu0 0
        %2757 = vmatmul.mubr.bf16.gmra.mxu0 %v2696
        %v2758 = vpop.f32.mrf.mxu0
        %v2759 = vadd.f32 %v2387, %v2758
        %v2760 = vpop.f32.mrf.mxu0
        %v2761 = vpop.f32.mrf.mxu0
        %v2762 = vadd.f32 %v2388, %v2761
        %v2763 = vpop.f32.mrf.mxu0
        %2764 = vmatprep.mubr.bf16.mxu0 0
        %2765 = vmatmul.mubr.bf16.gmra.mxu0 %v2699
        %v2766 = vpop.f32.mrf.mxu0
        %v2767 = vadd.f32 %v2389, %v2766
        %v2768 = vpop.f32.mrf.mxu0
        %v2769 = vpop.f32.mrf.mxu0
        %v2770 = vadd.f32 %v2390, %v2769
        %v2771 = vpop.f32.mrf.mxu0
        %2772 = vmatprep.mubr.bf16.mxu0 0
        %2773 = vmatmul.mubr.bf16.gmra.mxu0 %v2702
        %v2774 = vpop.f32.mrf.mxu0
        %v2775 = vadd.f32 %v2391, %v2774
        %v2776 = vpop.f32.mrf.mxu0
        %v2777 = vpop.f32.mrf.mxu0
        %v2778 = vadd.f32 %v2392, %v2777
        %v2779 = vpop.f32.mrf.mxu0
        %2780 = vdwg.mxu0
        %v2781 = vsel %vm350, %v2460, -inf
        %2782 = vmax.xlane.f32.xlu0 %v2781
        %v2783 = vpop.xlane.xlu0 %2782
        %v2784 = vsel %vm350, %v2463, -inf
        %2785 = vmax.xlane.f32.xlu0 %v2784
        %v2786 = vpop.xlane.xlu0 %2785
        %v2787 = vsel %vm350, %v2468, -inf
        %2788 = vmax.xlane.f32.xlu0 %v2787
        %v2789 = vpop.xlane.xlu0 %2788
        %v2790 = vsel %vm350, %v2471, -inf
        %2791 = vmax.xlane.f32.xlu0 %v2790
        %v2792 = vpop.xlane.xlu0 %2791
        %v2793 = vsel %vm350, %v2476, -inf
        %2794 = vmax.xlane.f32.xlu0 %v2793
        %v2795 = vpop.xlane.xlu0 %2794
        %v2796 = vsel %vm350, %v2479, -inf
        %2797 = vmax.xlane.f32.xlu0 %v2796
        %v2798 = vpop.xlane.xlu0 %2797
        %v2799 = vsel %vm350, %v2484, -inf
        %2800 = vmax.xlane.f32.xlu0 %v2799
        %v2801 = vpop.xlane.xlu0 %2800
        %v2802 = vsel %vm350, %v2487, -inf
        %2803 = vmax.xlane.f32.xlu0 %v2802
        %v2804 = vpop.xlane.xlu0 %2803
        %v2805 = vsel %vm350, %v2557, -inf
        %2806 = vmax.xlane.f32.xlu0 %v2805
        %v2807 = vpop.xlane.xlu0 %2806
        %v2808 = vsel %vm350, %v2560, -inf
        %2809 = vmax.xlane.f32.xlu0 %v2808
        %v2810 = vpop.xlane.xlu0 %2809
        %v2811 = vsel %vm350, %v2565, -inf
        %2812 = vmax.xlane.f32.xlu0 %v2811
        %v2813 = vpop.xlane.xlu0 %2812
        %v2814 = vsel %vm350, %v2568, -inf
        %2815 = vmax.xlane.f32.xlu0 %v2814
        %v2816 = vpop.xlane.xlu0 %2815
        %v2817 = vsel %vm350, %v2573, -inf
        %2818 = vmax.xlane.f32.xlu0 %v2817
        %v2819 = vpop.xlane.xlu0 %2818
        %v2820 = vsel %vm350, %v2576, -inf
        %2821 = vmax.xlane.f32.xlu0 %v2820
        %v2822 = vpop.xlane.xlu0 %2821
        %v2823 = vsel %vm350, %v2581, -inf
        %2824 = vmax.xlane.f32.xlu0 %v2823
        %v2825 = vpop.xlane.xlu0 %2824
        %v2826 = vsel %vm350, %v2584, -inf
        %2827 = vmax.xlane.f32.xlu0 %v2826
        %v2828 = vpop.xlane.xlu0 %2827
        %v2829 = vsel %vm350, %v2654, -inf
        %2830 = vmax.xlane.f32.xlu0 %v2829
        %v2831 = vpop.xlane.xlu0 %2830
        %v2832 = vsel %vm350, %v2657, -inf
        %2833 = vmax.xlane.f32.xlu0 %v2832
        %v2834 = vpop.xlane.xlu0 %2833
        %v2835 = vsel %vm350, %v2662, -inf
        %2836 = vmax.xlane.f32.xlu0 %v2835
        %v2837 = vpop.xlane.xlu0 %2836
        %v2838 = vsel %vm350, %v2665, -inf
        %2839 = vmax.xlane.f32.xlu0 %v2838
        %v2840 = vpop.xlane.xlu0 %2839
        %v2841 = vsel %vm350, %v2670, -inf
        %2842 = vmax.xlane.f32.xlu0 %v2841
        %v2843 = vpop.xlane.xlu0 %2842
        %v2844 = vsel %vm350, %v2673, -inf
        %2845 = vmax.xlane.f32.xlu0 %v2844
        %v2846 = vpop.xlane.xlu0 %2845
        %v2847 = vsel %vm350, %v2678, -inf
        %2848 = vmax.xlane.f32.xlu0 %v2847
        %v2849 = vpop.xlane.xlu0 %2848
        %v2850 = vsel %vm350, %v2681, -inf
        %2851 = vmax.xlane.f32.xlu0 %v2850
        %v2852 = vpop.xlane.xlu0 %2851
        %v2853 = vsel %vm350, %v2751, -inf
        %2854 = vmax.xlane.f32.xlu0 %v2853
        %v2855 = vpop.xlane.xlu0 %2854
        %v2856 = vsel %vm350, %v2754, -inf
        %2857 = vmax.xlane.f32.xlu0 %v2856
        %v2858 = vpop.xlane.xlu0 %2857
        %v2859 = vsel %vm350, %v2759, -inf
        %2860 = vmax.xlane.f32.xlu0 %v2859
        %v2861 = vpop.xlane.xlu0 %2860
        %v2862 = vsel %vm350, %v2762, -inf
        %2863 = vmax.xlane.f32.xlu0 %v2862
        %v2864 = vpop.xlane.xlu0 %2863
        %v2865 = vsel %vm350, %v2767, -inf
        %2866 = vmax.xlane.f32.xlu0 %v2865
        %v2867 = vpop.xlane.xlu0 %2866
        %v2868 = vsel %vm350, %v2770, -inf
        %2869 = vmax.xlane.f32.xlu0 %v2868
        %v2870 = vpop.xlane.xlu0 %2869
        %v2871 = vsel %vm350, %v2775, -inf
        %2872 = vmax.xlane.f32.xlu0 %v2871
        %v2873 = vpop.xlane.xlu0 %2872
        %v2874 = vsel %vm350, %v2778, -inf
        %2875 = vmax.xlane.f32.xlu0 %v2874
        %v2876 = vpop.xlane.xlu0 %2875
        %v2877 = vsub.f32 %v2460, %v2783
        %v2878 = vsub.f32 %v2463, %v2786
        %v2879 = vsub.f32 %v2468, %v2789
        %v2880 = vsub.f32 %v2471, %v2792
        %v2881 = vsub.f32 %v2476, %v2795
        %v2882 = vsub.f32 %v2479, %v2798
        %v2883 = vsub.f32 %v2484, %v2801
        %v2884 = vsub.f32 %v2487, %v2804
        %v2885 = vsub.f32 %v2557, %v2807
        %v2886 = vsub.f32 %v2560, %v2810
        %v2887 = vsub.f32 %v2565, %v2813
        %v2888 = vsub.f32 %v2568, %v2816
        %v2889 = vsub.f32 %v2573, %v2819
        %v2890 = vsub.f32 %v2576, %v2822
        %v2891 = vsub.f32 %v2581, %v2825
        %v2892 = vsub.f32 %v2584, %v2828
        %v2893 = vsub.f32 %v2654, %v2831
        %v2894 = vsub.f32 %v2657, %v2834
        %v2895 = vsub.f32 %v2662, %v2837
        %v2896 = vsub.f32 %v2665, %v2840
        %v2897 = vsub.f32 %v2670, %v2843
        %v2898 = vsub.f32 %v2673, %v2846
        %v2899 = vsub.f32 %v2678, %v2849
        %v2900 = vsub.f32 %v2681, %v2852
        %v2901 = vsub.f32 %v2751, %v2855
        %v2902 = vsub.f32 %v2754, %v2858
        %v2903 = vsub.f32 %v2759, %v2861
        %v2904 = vsub.f32 %v2762, %v2864
        %v2905 = vsub.f32 %v2767, %v2867
        %v2906 = vsub.f32 %v2770, %v2870
        %v2907 = vsub.f32 %v2775, %v2873
        %v2908 = vsub.f32 %v2778, %v2876
        %v2909 = vmul.f32 %v2877, 1.442695
        %v2910 = vpow.pop %v2909
        %v2911 = vmul.f32 %v2878, 1.442695
        %v2912 = vpow.pop %v2911
        %v2913 = vmul.f32 %v2879, 1.442695
        %v2914 = vpow.pop %v2913
        %v2915 = vmul.f32 %v2880, 1.442695
        %v2916 = vpow.pop %v2915
        %v2917 = vmul.f32 %v2881, 1.442695
        %v2918 = vpow.pop %v2917
        %v2919 = vmul.f32 %v2882, 1.442695
        %v2920 = vpow.pop %v2919
        %v2921 = vmul.f32 %v2883, 1.442695
        %v2922 = vpow.pop %v2921
        %v2923 = vmul.f32 %v2884, 1.442695
        %v2924 = vpow.pop %v2923
        %v2925 = vmul.f32 %v2885, 1.442695
        %v2926 = vpow.pop %v2925
        %v2927 = vmul.f32 %v2886, 1.442695
        %v2928 = vpow.pop %v2927
        %v2929 = vmul.f32 %v2887, 1.442695
        %v2930 = vpow.pop %v2929
        %v2931 = vmul.f32 %v2888, 1.442695
        %v2932 = vpow.pop %v2931
        %v2933 = vmul.f32 %v2889, 1.442695
        %v2934 = vpow.pop %v2933
        %v2935 = vmul.f32 %v2890, 1.442695
        %v2936 = vpow.pop %v2935
        %v2937 = vmul.f32 %v2891, 1.442695
        %v2938 = vpow.pop %v2937
        %v2939 = vmul.f32 %v2892, 1.442695
        %v2940 = vpow.pop %v2939
        %v2941 = vmul.f32 %v2893, 1.442695
        %v2942 = vpow.pop %v2941
        %v2943 = vmul.f32 %v2894, 1.442695
        %v2944 = vpow.pop %v2943
        %v2945 = vmul.f32 %v2895, 1.442695
        %v2946 = vpow.pop %v2945
        %v2947 = vmul.f32 %v2896, 1.442695
        %v2948 = vpow.pop %v2947
        %v2949 = vmul.f32 %v2897, 1.442695
        %v2950 = vpow.pop %v2949
        %v2951 = vmul.f32 %v2898, 1.442695
        %v2952 = vpow.pop %v2951
        %v2953 = vmul.f32 %v2899, 1.442695
        %v2954 = vpow.pop %v2953
        %v2955 = vmul.f32 %v2900, 1.442695
        %v2956 = vpow.pop %v2955
        %v2957 = vmul.f32 %v2901, 1.442695
        %v2958 = vpow.pop %v2957
        %v2959 = vmul.f32 %v2902, 1.442695
        %v2960 = vpow.pop %v2959
        %v2961 = vmul.f32 %v2903, 1.442695
        %v2962 = vpow.pop %v2961
        %v2963 = vmul.f32 %v2904, 1.442695
        %v2964 = vpow.pop %v2963
        %v2965 = vmul.f32 %v2905, 1.442695
        %v2966 = vpow.pop %v2965
        %v2967 = vmul.f32 %v2906, 1.442695
        %v2968 = vpow.pop %v2967
        %v2969 = vmul.f32 %v2907, 1.442695
        %v2970 = vpow.pop %v2969
        %v2971 = vmul.f32 %v2908, 1.442695
        %v2972 = vpow.pop %v2971
        %v2973 = vsel %vm350, %v2910, 0.0
        %2974 = vadd.xlane.f32.xlu0 %v2973
        %v2975 = vpop.xlane.xlu0 %2974
        %v2976 = vsel %vm350, %v2912, 0.0
        %2977 = vadd.xlane.f32.xlu0 %v2976
        %v2978 = vpop.xlane.xlu0 %2977
        %v2979 = vsel %vm350, %v2914, 0.0
        %2980 = vadd.xlane.f32.xlu0 %v2979
        %v2981 = vpop.xlane.xlu0 %2980
        %v2982 = vsel %vm350, %v2916, 0.0
        %2983 = vadd.xlane.f32.xlu0 %v2982
        %v2984 = vpop.xlane.xlu0 %2983
        %v2985 = vsel %vm350, %v2918, 0.0
        %2986 = vadd.xlane.f32.xlu0 %v2985
        %v2987 = vpop.xlane.xlu0 %2986
        %v2988 = vsel %vm350, %v2920, 0.0
        %2989 = vadd.xlane.f32.xlu0 %v2988
        %v2990 = vpop.xlane.xlu0 %2989
        %v2991 = vsel %vm350, %v2922, 0.0
        %2992 = vadd.xlane.f32.xlu0 %v2991
        %v2993 = vpop.xlane.xlu0 %2992
        %v2994 = vsel %vm350, %v2924, 0.0
        %2995 = vadd.xlane.f32.xlu0 %v2994
        %v2996 = vpop.xlane.xlu0 %2995
        %v2997 = vsel %vm350, %v2926, 0.0
        %2998 = vadd.xlane.f32.xlu0 %v2997
        %v2999 = vpop.xlane.xlu0 %2998
        %v3000 = vsel %vm350, %v2928, 0.0
        %3001 = vadd.xlane.f32.xlu0 %v3000
        %v3002 = vpop.xlane.xlu0 %3001
        %v3003 = vsel %vm350, %v2930, 0.0
        %3004 = vadd.xlane.f32.xlu0 %v3003
        %v3005 = vpop.xlane.xlu0 %3004
        %v3006 = vsel %vm350, %v2932, 0.0
        %3007 = vadd.xlane.f32.xlu0 %v3006
        %v3008 = vpop.xlane.xlu0 %3007
        %v3009 = vsel %vm350, %v2934, 0.0
        %3010 = vadd.xlane.f32.xlu0 %v3009
        %v3011 = vpop.xlane.xlu0 %3010
        %v3012 = vsel %vm350, %v2936, 0.0
        %3013 = vadd.xlane.f32.xlu0 %v3012
        %v3014 = vpop.xlane.xlu0 %3013
        %v3015 = vsel %vm350, %v2938, 0.0
        %3016 = vadd.xlane.f32.xlu0 %v3015
        %v3017 = vpop.xlane.xlu0 %3016
        %v3018 = vsel %vm350, %v2940, 0.0
        %3019 = vadd.xlane.f32.xlu0 %v3018
        %v3020 = vpop.xlane.xlu0 %3019
        %v3021 = vsel %vm350, %v2942, 0.0
        %3022 = vadd.xlane.f32.xlu0 %v3021
        %v3023 = vpop.xlane.xlu0 %3022
        %v3024 = vsel %vm350, %v2944, 0.0
        %3025 = vadd.xlane.f32.xlu0 %v3024
        %v3026 = vpop.xlane.xlu0 %3025
        %v3027 = vsel %vm350, %v2946, 0.0
        %3028 = vadd.xlane.f32.xlu0 %v3027
        %v3029 = vpop.xlane.xlu0 %3028
        %v3030 = vsel %vm350, %v2948, 0.0
        %3031 = vadd.xlane.f32.xlu0 %v3030
        %v3032 = vpop.xlane.xlu0 %3031
        %v3033 = vsel %vm350, %v2950, 0.0
        %3034 = vadd.xlane.f32.xlu0 %v3033
        %v3035 = vpop.xlane.xlu0 %3034
        %v3036 = vsel %vm350, %v2952, 0.0
        %3037 = vadd.xlane.f32.xlu0 %v3036
        %v3038 = vpop.xlane.xlu0 %3037
        %v3039 = vsel %vm350, %v2954, 0.0
        %3040 = vadd.xlane.f32.xlu0 %v3039
        %v3041 = vpop.xlane.xlu0 %3040
        %v3042 = vsel %vm350, %v2956, 0.0
        %3043 = vadd.xlane.f32.xlu0 %v3042
        %v3044 = vpop.xlane.xlu0 %3043
        %v3045 = vsel %vm350, %v2958, 0.0
        %3046 = vadd.xlane.f32.xlu0 %v3045
        %v3047 = vpop.xlane.xlu0 %3046
        %v3048 = vsel %vm350, %v2960, 0.0
        %3049 = vadd.xlane.f32.xlu0 %v3048
        %v3050 = vpop.xlane.xlu0 %3049
        %v3051 = vsel %vm350, %v2962, 0.0
        %3052 = vadd.xlane.f32.xlu0 %v3051
        %v3053 = vpop.xlane.xlu0 %3052
        %v3054 = vsel %vm350, %v2964, 0.0
        %3055 = vadd.xlane.f32.xlu0 %v3054
        %v3056 = vpop.xlane.xlu0 %3055
        %v3057 = vsel %vm350, %v2966, 0.0
        %3058 = vadd.xlane.f32.xlu0 %v3057
        %v3059 = vpop.xlane.xlu0 %3058
        %v3060 = vsel %vm350, %v2968, 0.0
        %3061 = vadd.xlane.f32.xlu0 %v3060
        %v3062 = vpop.xlane.xlu0 %3061
        %v3063 = vsel %vm350, %v2970, 0.0
        %3064 = vadd.xlane.f32.xlu0 %v3063
        %v3065 = vpop.xlane.xlu0 %3064
        %v3066 = vsel %vm350, %v2972, 0.0
        %3067 = vadd.xlane.f32.xlu0 %v3066
        %v3068 = vpop.xlane.xlu0 %3067
        %v3069 = vpack.c.bf16 %v2912, %v2910
        %v3070 = vpack.c.bf16 %v2916, %v2914
        %v3071 = vpack.c.bf16 %v2920, %v2918
        %v3072 = vpack.c.bf16 %v2924, %v2922
        %v3073 = vpack.c.bf16 %v2928, %v2926
        %v3074 = vpack.c.bf16 %v2932, %v2930
        %v3075 = vpack.c.bf16 %v2936, %v2934
        %v3076 = vpack.c.bf16 %v2940, %v2938
        %v3077 = vpack.c.bf16 %v2944, %v2942
        %v3078 = vpack.c.bf16 %v2948, %v2946
        %v3079 = vpack.c.bf16 %v2952, %v2950
        %v3080 = vpack.c.bf16 %v2956, %v2954
        %v3081 = vpack.c.bf16 %v2960, %v2958
        %v3082 = vpack.c.bf16 %v2964, %v2962
        %v3083 = vpack.c.bf16 %v2968, %v2966
        %v3084 = vpack.c.bf16 %v2972, %v2970
        %3089 = vrot.lane.b32.xlu0 %v1216, 96
        %v3090 = vpop.permute.xlu0 %3089
        %3091 = vrot.lane.b32.xlu0 %v1218, 96
        %v3092 = vpop.permute.xlu0 %3091
        %3093 = vrot.lane.b32.xlu0 %v1220, 96
        %v3094 = vpop.permute.xlu0 %3093
        %3095 = vrot.lane.b32.xlu0 %v1222, 96
        %v3096 = vpop.permute.xlu0 %3095
        %v3102 = vsel %vm350, %v3069, 0
        %v3105 = vsel %vm350, %v3070, 0
        %v3108 = vsel %vm350, %v3071, 0
        %v3111 = vsel %vm350, %v3072, 0
        %3113 = vmatprep.subr.bf16.mxu0 0
        %3114 = vmatpush1.bf16.msra.mxu0 0
        %3115 = vmatprep.subr.bf16.mxu0 0
        %3116 = vmatpush1.bf16.msra.mxu0 0
        %3117 = vmatprep.subr.bf16.mxu0 0
        %3118 = vmatpush1.bf16.msra.mxu0 0
        %3119 = vmatprep.subr.bf16.mxu0 0
        %3120 = vmatpush1.bf16.msra.mxu0 0
        %3121 = vmatprep.subr.bf16.mxu0 0
        %3122 = vmatpush1.bf16.msra.mxu0 %v3096
        %3123 = vmatprep.subr.bf16.mxu0 0
        %3124 = vmatpush1.bf16.msra.mxu0 %v3094
        %3125 = vmatprep.subr.bf16.mxu0 0
        %3126 = vmatpush1.bf16.msra.mxu0 %v3092
        %3127 = vmatprep.subr.bf16.mxu0 0
        %3128 = vmatpush1.bf16.msra.mxu0 %v3090
        %3129 = vmatprep.subr.bf16.mxu0 0
        %3130 = vmatpush2.bf16.msra.mxu0 0
        %3131 = vmatprep.subr.bf16.mxu0 0
        %3132 = vmatpush2.bf16.msra.mxu0 0
        %3133 = vmatprep.subr.bf16.mxu0 0
        %3134 = vmatpush2.bf16.msra.mxu0 0
        %3135 = vmatprep.subr.bf16.mxu0 0
        %3136 = vmatpush2.bf16.msra.mxu0 0
        %3137 = vmatprep.subr.bf16.mxu0 0
        %3138 = vmatpush2.bf16.msra.mxu0 0
        %3139 = vmatprep.subr.bf16.mxu0 0
        %3140 = vmatpush2.bf16.msra.mxu0 0
        %3141 = vmatprep.subr.bf16.mxu0 0
        %3142 = vmatpush2.bf16.msra.mxu0 0
        %3143 = vmatprep.subr.bf16.mxu0 0
        %3144 = vmatpush2.bf16.msra.mxu0 0
        %3145 = vmatprep.mubr.bf16.mxu0 0
        %3146 = vmatmul.mubr.bf16.gmra.mxu0 %v3102
        %v3147 = vpop.f32.mrf.mxu0
        %v3148 = vadd.f32 0.0, %v3147
        %v3149 = vpop.f32.mrf.mxu0
        %v3150 = vpop.f32.mrf.mxu0
        %v3151 = vadd.f32 0.0, %v3150
        %v3152 = vpop.f32.mrf.mxu0
        %3153 = vmatprep.mubr.bf16.mxu0 0
        %3154 = vmatmul.mubr.bf16.gmra.mxu0 %v3105
        %v3155 = vpop.f32.mrf.mxu0
        %v3156 = vadd.f32 0.0, %v3155
        %v3157 = vpop.f32.mrf.mxu0
        %v3158 = vpop.f32.mrf.mxu0
        %v3159 = vadd.f32 0.0, %v3158
        %v3160 = vpop.f32.mrf.mxu0
        %3161 = vmatprep.mubr.bf16.mxu0 0
        %3162 = vmatmul.mubr.bf16.gmra.mxu0 %v3108
        %v3163 = vpop.f32.mrf.mxu0
        %v3164 = vadd.f32 0.0, %v3163
        %v3165 = vpop.f32.mrf.mxu0
        %v3166 = vpop.f32.mrf.mxu0
        %v3167 = vadd.f32 0.0, %v3166
        %v3168 = vpop.f32.mrf.mxu0
        %3169 = vmatprep.mubr.bf16.mxu0 0
        %3170 = vmatmul.mubr.bf16.gmra.mxu0 %v3111
        %v3171 = vpop.f32.mrf.mxu0
        %v3172 = vadd.f32 0.0, %v3171
        %v3173 = vpop.f32.mrf.mxu0
        %v3174 = vpop.f32.mrf.mxu0
        %v3175 = vadd.f32 0.0, %v3174
        %v3176 = vpop.f32.mrf.mxu0
        %3177 = vdwg.mxu0
        %3182 = vrot.lane.b32.xlu0 %v1224, 96
        %v3183 = vpop.permute.xlu0 %3182
        %3184 = vrot.lane.b32.xlu0 %v1226, 96
        %v3185 = vpop.permute.xlu0 %3184
        %3186 = vrot.lane.b32.xlu0 %v1228, 96
        %v3187 = vpop.permute.xlu0 %3186
        %3188 = vrot.lane.b32.xlu0 %v1230, 96
        %v3189 = vpop.permute.xlu0 %3188
        %v3195 = vsel %vm350, %v3073, 0
        %v3198 = vsel %vm350, %v3074, 0
        %v3201 = vsel %vm350, %v3075, 0
        %v3204 = vsel %vm350, %v3076, 0
        %3206 = vmatprep.subr.bf16.mxu0 0
        %3207 = vmatpush1.bf16.msra.mxu0 0
        %3208 = vmatprep.subr.bf16.mxu0 0
        %3209 = vmatpush1.bf16.msra.mxu0 0
        %3210 = vmatprep.subr.bf16.mxu0 0
        %3211 = vmatpush1.bf16.msra.mxu0 0
        %3212 = vmatprep.subr.bf16.mxu0 0
        %3213 = vmatpush1.bf16.msra.mxu0 0
        %3214 = vmatprep.subr.bf16.mxu0 0
        %3215 = vmatpush1.bf16.msra.mxu0 %v3189
        %3216 = vmatprep.subr.bf16.mxu0 0
        %3217 = vmatpush1.bf16.msra.mxu0 %v3187
        %3218 = vmatprep.subr.bf16.mxu0 0
        %3219 = vmatpush1.bf16.msra.mxu0 %v3185
        %3220 = vmatprep.subr.bf16.mxu0 0
        %3221 = vmatpush1.bf16.msra.mxu0 %v3183
        %3222 = vmatprep.subr.bf16.mxu0 0
        %3223 = vmatpush2.bf16.msra.mxu0 0
        %3224 = vmatprep.subr.bf16.mxu0 0
        %3225 = vmatpush2.bf16.msra.mxu0 0
        %3226 = vmatprep.subr.bf16.mxu0 0
        %3227 = vmatpush2.bf16.msra.mxu0 0
        %3228 = vmatprep.subr.bf16.mxu0 0
        %3229 = vmatpush2.bf16.msra.mxu0 0
        %3230 = vmatprep.subr.bf16.mxu0 0
        %3231 = vmatpush2.bf16.msra.mxu0 0
        %3232 = vmatprep.subr.bf16.mxu0 0
        %3233 = vmatpush2.bf16.msra.mxu0 0
        %3234 = vmatprep.subr.bf16.mxu0 0
        %3235 = vmatpush2.bf16.msra.mxu0 0
        %3236 = vmatprep.subr.bf16.mxu0 0
        %3237 = vmatpush2.bf16.msra.mxu0 0
        %3238 = vmatprep.mubr.bf16.mxu0 0
        %3239 = vmatmul.mubr.bf16.gmra.mxu0 %v3195
        %v3240 = vpop.f32.mrf.mxu0
        %v3241 = vadd.f32 0.0, %v3240
        %v3242 = vpop.f32.mrf.mxu0
        %v3243 = vpop.f32.mrf.mxu0
        %v3244 = vadd.f32 0.0, %v3243
        %v3245 = vpop.f32.mrf.mxu0
        %3246 = vmatprep.mubr.bf16.mxu0 0
        %3247 = vmatmul.mubr.bf16.gmra.mxu0 %v3198
        %v3248 = vpop.f32.mrf.mxu0
        %v3249 = vadd.f32 0.0, %v3248
        %v3250 = vpop.f32.mrf.mxu0
        %v3251 = vpop.f32.mrf.mxu0
        %v3252 = vadd.f32 0.0, %v3251
        %v3253 = vpop.f32.mrf.mxu0
        %3254 = vmatprep.mubr.bf16.mxu0 0
        %3255 = vmatmul.mubr.bf16.gmra.mxu0 %v3201
        %v3256 = vpop.f32.mrf.mxu0
        %v3257 = vadd.f32 0.0, %v3256
        %v3258 = vpop.f32.mrf.mxu0
        %v3259 = vpop.f32.mrf.mxu0
        %v3260 = vadd.f32 0.0, %v3259
        %v3261 = vpop.f32.mrf.mxu0
        %3262 = vmatprep.mubr.bf16.mxu0 0
        %3263 = vmatmul.mubr.bf16.gmra.mxu0 %v3204
        %v3264 = vpop.f32.mrf.mxu0
        %v3265 = vadd.f32 0.0, %v3264
        %v3266 = vpop.f32.mrf.mxu0
        %v3267 = vpop.f32.mrf.mxu0
        %v3268 = vadd.f32 0.0, %v3267
        %v3269 = vpop.f32.mrf.mxu0
        %3270 = vdwg.mxu0
        %3275 = vrot.lane.b32.xlu0 %v1232, 96
        %v3276 = vpop.permute.xlu0 %3275
        %3277 = vrot.lane.b32.xlu0 %v1234, 96
        %v3278 = vpop.permute.xlu0 %3277
        %3279 = vrot.lane.b32.xlu0 %v1236, 96
        %v3280 = vpop.permute.xlu0 %3279
        %3281 = vrot.lane.b32.xlu0 %v1238, 96
        %v3282 = vpop.permute.xlu0 %3281
        %v3288 = vsel %vm350, %v3077, 0
        %v3291 = vsel %vm350, %v3078, 0
        %v3294 = vsel %vm350, %v3079, 0
        %v3297 = vsel %vm350, %v3080, 0
        %3299 = vmatprep.subr.bf16.mxu0 0
        %3300 = vmatpush1.bf16.msra.mxu0 0
        %3301 = vmatprep.subr.bf16.mxu0 0
        %3302 = vmatpush1.bf16.msra.mxu0 0
        %3303 = vmatprep.subr.bf16.mxu0 0
        %3304 = vmatpush1.bf16.msra.mxu0 0
        %3305 = vmatprep.subr.bf16.mxu0 0
        %3306 = vmatpush1.bf16.msra.mxu0 0
        %3307 = vmatprep.subr.bf16.mxu0 0
        %3308 = vmatpush1.bf16.msra.mxu0 %v3282
        %3309 = vmatprep.subr.bf16.mxu0 0
        %3310 = vmatpush1.bf16.msra.mxu0 %v3280
        %3311 = vmatprep.subr.bf16.mxu0 0
        %3312 = vmatpush1.bf16.msra.mxu0 %v3278
        %3313 = vmatprep.subr.bf16.mxu0 0
        %3314 = vmatpush1.bf16.msra.mxu0 %v3276
        %3315 = vmatprep.subr.bf16.mxu0 0
        %3316 = vmatpush2.bf16.msra.mxu0 0
        %3317 = vmatprep.subr.bf16.mxu0 0
        %3318 = vmatpush2.bf16.msra.mxu0 0
        %3319 = vmatprep.subr.bf16.mxu0 0
        %3320 = vmatpush2.bf16.msra.mxu0 0
        %3321 = vmatprep.subr.bf16.mxu0 0
        %3322 = vmatpush2.bf16.msra.mxu0 0
        %3323 = vmatprep.subr.bf16.mxu0 0
        %3324 = vmatpush2.bf16.msra.mxu0 0
        %3325 = vmatprep.subr.bf16.mxu0 0
        %3326 = vmatpush2.bf16.msra.mxu0 0
        %3327 = vmatprep.subr.bf16.mxu0 0
        %3328 = vmatpush2.bf16.msra.mxu0 0
        %3329 = vmatprep.subr.bf16.mxu0 0
        %3330 = vmatpush2.bf16.msra.mxu0 0
        %3331 = vmatprep.mubr.bf16.mxu0 0
        %3332 = vmatmul.mubr.bf16.gmra.mxu0 %v3288
        %v3333 = vpop.f32.mrf.mxu0
        %v3334 = vadd.f32 0.0, %v3333
        %v3335 = vpop.f32.mrf.mxu0
        %v3336 = vpop.f32.mrf.mxu0
        %v3337 = vadd.f32 0.0, %v3336
        %v3338 = vpop.f32.mrf.mxu0
        %3339 = vmatprep.mubr.bf16.mxu0 0
        %3340 = vmatmul.mubr.bf16.gmra.mxu0 %v3291
        %v3341 = vpop.f32.mrf.mxu0
        %v3342 = vadd.f32 0.0, %v3341
        %v3343 = vpop.f32.mrf.mxu0
        %v3344 = vpop.f32.mrf.mxu0
        %v3345 = vadd.f32 0.0, %v3344
        %v3346 = vpop.f32.mrf.mxu0
        %3347 = vmatprep.mubr.bf16.mxu0 0
        %3348 = vmatmul.mubr.bf16.gmra.mxu0 %v3294
        %v3349 = vpop.f32.mrf.mxu0
        %v3350 = vadd.f32 0.0, %v3349
        %v3351 = vpop.f32.mrf.mxu0
        %v3352 = vpop.f32.mrf.mxu0
        %v3353 = vadd.f32 0.0, %v3352
        %v3354 = vpop.f32.mrf.mxu0
        %3355 = vmatprep.mubr.bf16.mxu0 0
        %3356 = vmatmul.mubr.bf16.gmra.mxu0 %v3297
        %v3357 = vpop.f32.mrf.mxu0
        %v3358 = vadd.f32 0.0, %v3357
        %v3359 = vpop.f32.mrf.mxu0
        %v3360 = vpop.f32.mrf.mxu0
        %v3361 = vadd.f32 0.0, %v3360
        %v3362 = vpop.f32.mrf.mxu0
        %3363 = vdwg.mxu0
        %3368 = vrot.lane.b32.xlu0 %v1240, 96
        %v3369 = vpop.permute.xlu0 %3368
        %3370 = vrot.lane.b32.xlu0 %v1242, 96
        %v3371 = vpop.permute.xlu0 %3370
        %3372 = vrot.lane.b32.xlu0 %v1244, 96
        %v3373 = vpop.permute.xlu0 %3372
        %3374 = vrot.lane.b32.xlu0 %v1246, 96
        %v3375 = vpop.permute.xlu0 %3374
        %v3381 = vsel %vm350, %v3081, 0
        %v3384 = vsel %vm350, %v3082, 0
        %v3387 = vsel %vm350, %v3083, 0
        %v3390 = vsel %vm350, %v3084, 0
        %3392 = vmatprep.subr.bf16.mxu0 0
        %3393 = vmatpush1.bf16.msra.mxu0 0
        %3394 = vmatprep.subr.bf16.mxu0 0
        %3395 = vmatpush1.bf16.msra.mxu0 0
        %3396 = vmatprep.subr.bf16.mxu0 0
        %3397 = vmatpush1.bf16.msra.mxu0 0
        %3398 = vmatprep.subr.bf16.mxu0 0
        %3399 = vmatpush1.bf16.msra.mxu0 0
        %3400 = vmatprep.subr.bf16.mxu0 0
        %3401 = vmatpush1.bf16.msra.mxu0 %v3375
        %3402 = vmatprep.subr.bf16.mxu0 0
        %3403 = vmatpush1.bf16.msra.mxu0 %v3373
        %3404 = vmatprep.subr.bf16.mxu0 0
        %3405 = vmatpush1.bf16.msra.mxu0 %v3371
        %3406 = vmatprep.subr.bf16.mxu0 0
        %3407 = vmatpush1.bf16.msra.mxu0 %v3369
        %3408 = vmatprep.subr.bf16.mxu0 0
        %3409 = vmatpush2.bf16.msra.mxu0 0
        %3410 = vmatprep.subr.bf16.mxu0 0
        %3411 = vmatpush2.bf16.msra.mxu0 0
        %3412 = vmatprep.subr.bf16.mxu0 0
        %3413 = vmatpush2.bf16.msra.mxu0 0
        %3414 = vmatprep.subr.bf16.mxu0 0
        %3415 = vmatpush2.bf16.msra.mxu0 0
        %3416 = vmatprep.subr.bf16.mxu0 0
        %3417 = vmatpush2.bf16.msra.mxu0 0
        %3418 = vmatprep.subr.bf16.mxu0 0
        %3419 = vmatpush2.bf16.msra.mxu0 0
        %3420 = vmatprep.subr.bf16.mxu0 0
        %3421 = vmatpush2.bf16.msra.mxu0 0
        %3422 = vmatprep.subr.bf16.mxu0 0
        %3423 = vmatpush2.bf16.msra.mxu0 0
        %3424 = vmatprep.mubr.bf16.mxu0 0
        %3425 = vmatmul.mubr.bf16.gmra.mxu0 %v3381
        %v3426 = vpop.f32.mrf.mxu0
        %v3427 = vadd.f32 0.0, %v3426
        %v3428 = vpop.f32.mrf.mxu0
        %v3429 = vpop.f32.mrf.mxu0
        %v3430 = vadd.f32 0.0, %v3429
        %v3431 = vpop.f32.mrf.mxu0
        %3432 = vmatprep.mubr.bf16.mxu0 0
        %3433 = vmatmul.mubr.bf16.gmra.mxu0 %v3384
        %v3434 = vpop.f32.mrf.mxu0
        %v3435 = vadd.f32 0.0, %v3434
        %v3436 = vpop.f32.mrf.mxu0
        %v3437 = vpop.f32.mrf.mxu0
        %v3438 = vadd.f32 0.0, %v3437
        %v3439 = vpop.f32.mrf.mxu0
        %3440 = vmatprep.mubr.bf16.mxu0 0
        %3441 = vmatmul.mubr.bf16.gmra.mxu0 %v3387
        %v3442 = vpop.f32.mrf.mxu0
        %v3443 = vadd.f32 0.0, %v3442
        %v3444 = vpop.f32.mrf.mxu0
        %v3445 = vpop.f32.mrf.mxu0
        %v3446 = vadd.f32 0.0, %v3445
        %v3447 = vpop.f32.mrf.mxu0
        %3448 = vmatprep.mubr.bf16.mxu0 0
        %3449 = vmatmul.mubr.bf16.gmra.mxu0 %v3390
        %v3450 = vpop.f32.mrf.mxu0
        %v3451 = vadd.f32 0.0, %v3450
        %v3452 = vpop.f32.mrf.mxu0
        %v3453 = vpop.f32.mrf.mxu0
        %v3454 = vadd.f32 0.0, %v3453
        %v3455 = vpop.f32.mrf.mxu0
        %3456 = vdwg.mxu0
        %v3457 = vrcp.pop %v2975
        %v3458 = vrcp.pop %v2978
        %v3459 = vrcp.pop %v2981
        %v3460 = vrcp.pop %v2984
        %v3461 = vrcp.pop %v2987
        %v3462 = vrcp.pop %v2990
        %v3463 = vrcp.pop %v2993
        %v3464 = vrcp.pop %v2996
        %v3465 = vrcp.pop %v2999
        %v3466 = vrcp.pop %v3002
        %v3467 = vrcp.pop %v3005
        %v3468 = vrcp.pop %v3008
        %v3469 = vrcp.pop %v3011
        %v3470 = vrcp.pop %v3014
        %v3471 = vrcp.pop %v3017
        %v3472 = vrcp.pop %v3020
        %v3473 = vrcp.pop %v3023
        %v3474 = vrcp.pop %v3026
        %v3475 = vrcp.pop %v3029
        %v3476 = vrcp.pop %v3032
        %v3477 = vrcp.pop %v3035
        %v3478 = vrcp.pop %v3038
        %v3479 = vrcp.pop %v3041
        %v3480 = vrcp.pop %v3044
        %v3481 = vrcp.pop %v3047
        %v3482 = vrcp.pop %v3050
        %v3483 = vrcp.pop %v3053
        %v3484 = vrcp.pop %v3056
        %v3485 = vrcp.pop %v3059
        %v3486 = vrcp.pop %v3062
        %v3487 = vrcp.pop %v3065
        %v3488 = vrcp.pop %v3068
        %v3489 = vmul.f32 %v3148, %v3457
        %v3490 = vmul.f32 %v3151, %v3458
        %v3491 = vmul.f32 %v3156, %v3459
        %v3492 = vmul.f32 %v3159, %v3460
        %v3493 = vmul.f32 %v3164, %v3461
        %v3494 = vmul.f32 %v3167, %v3462
        %v3495 = vmul.f32 %v3172, %v3463
        %v3496 = vmul.f32 %v3175, %v3464
        %v3497 = vmul.f32 %v3241, %v3465
        %v3498 = vmul.f32 %v3244, %v3466
        %v3499 = vmul.f32 %v3249, %v3467
        %v3500 = vmul.f32 %v3252, %v3468
        %v3501 = vmul.f32 %v3257, %v3469
        %v3502 = vmul.f32 %v3260, %v3470
        %v3503 = vmul.f32 %v3265, %v3471
        %v3504 = vmul.f32 %v3268, %v3472
        %v3505 = vmul.f32 %v3334, %v3473
        %v3506 = vmul.f32 %v3337, %v3474
        %v3507 = vmul.f32 %v3342, %v3475
        %v3508 = vmul.f32 %v3345, %v3476
        %v3509 = vmul.f32 %v3350, %v3477
        %v3510 = vmul.f32 %v3353, %v3478
        %v3511 = vmul.f32 %v3358, %v3479
        %v3512 = vmul.f32 %v3361, %v3480
        %v3513 = vmul.f32 %v3427, %v3481
        %v3514 = vmul.f32 %v3430, %v3482
        %v3515 = vmul.f32 %v3435, %v3483
        %v3516 = vmul.f32 %v3438, %v3484
        %v3517 = vmul.f32 %v3443, %v3485
        %v3518 = vmul.f32 %v3446, %v3486
        %v3519 = vmul.f32 %v3451, %v3487
        %v3520 = vmul.f32 %v3454, %v3488
        %3553 = vrot.lane.b32.xlu0 %v3489, 32
        %v3554 = vpop.permute.xlu0 %3553
        %3555 = vrot.lane.b32.xlu0 %v3490, 32
        %v3556 = vpop.permute.xlu0 %3555
        %3557 = vrot.lane.b32.xlu0 %v3491, 32
        %v3558 = vpop.permute.xlu0 %3557
        %3559 = vrot.lane.b32.xlu0 %v3492, 32
        %v3560 = vpop.permute.xlu0 %3559
        %3561 = vrot.lane.b32.xlu0 %v3493, 32
        %v3562 = vpop.permute.xlu0 %3561
        %3563 = vrot.lane.b32.xlu0 %v3494, 32
        %v3564 = vpop.permute.xlu0 %3563
        %3565 = vrot.lane.b32.xlu0 %v3495, 32
        %v3566 = vpop.permute.xlu0 %3565
        %3567 = vrot.lane.b32.xlu0 %v3496, 32
        %v3568 = vpop.permute.xlu0 %3567
        %3569 = vrot.lane.b32.xlu0 %v3497, 32
        %v3570 = vpop.permute.xlu0 %3569
        %3571 = vrot.lane.b32.xlu0 %v3498, 32
        %v3572 = vpop.permute.xlu0 %3571
        %3573 = vrot.lane.b32.xlu0 %v3499, 32
        %v3574 = vpop.permute.xlu0 %3573
        %3575 = vrot.lane.b32.xlu0 %v3500, 32
        %v3576 = vpop.permute.xlu0 %3575
        %3577 = vrot.lane.b32.xlu0 %v3501, 32
        %v3578 = vpop.permute.xlu0 %3577
        %3579 = vrot.lane.b32.xlu0 %v3502, 32
        %v3580 = vpop.permute.xlu0 %3579
        %3581 = vrot.lane.b32.xlu0 %v3503, 32
        %v3582 = vpop.permute.xlu0 %3581
        %3583 = vrot.lane.b32.xlu0 %v3504, 32
        %v3584 = vpop.permute.xlu0 %3583
        %3585 = vrot.lane.b32.xlu0 %v3505, 32
        %v3586 = vpop.permute.xlu0 %3585
        %3587 = vrot.lane.b32.xlu0 %v3506, 32
        %v3588 = vpop.permute.xlu0 %3587
        %3589 = vrot.lane.b32.xlu0 %v3507, 32
        %v3590 = vpop.permute.xlu0 %3589
        %3591 = vrot.lane.b32.xlu0 %v3508, 32
        %v3592 = vpop.permute.xlu0 %3591
        %3593 = vrot.lane.b32.xlu0 %v3509, 32
        %v3594 = vpop.permute.xlu0 %3593
        %3595 = vrot.lane.b32.xlu0 %v3510, 32
        %v3596 = vpop.permute.xlu0 %3595
        %3597 = vrot.lane.b32.xlu0 %v3511, 32
        %v3598 = vpop.permute.xlu0 %3597
        %3599 = vrot.lane.b32.xlu0 %v3512, 32
        %v3600 = vpop.permute.xlu0 %3599
        %3601 = vrot.lane.b32.xlu0 %v3513, 32
        %v3602 = vpop.permute.xlu0 %3601
        %3603 = vrot.lane.b32.xlu0 %v3514, 32
        %v3604 = vpop.permute.xlu0 %3603
        %3605 = vrot.lane.b32.xlu0 %v3515, 32
        %v3606 = vpop.permute.xlu0 %3605
        %3607 = vrot.lane.b32.xlu0 %v3516, 32
        %v3608 = vpop.permute.xlu0 %3607
        %3609 = vrot.lane.b32.xlu0 %v3517, 32
        %v3610 = vpop.permute.xlu0 %3609
        %3611 = vrot.lane.b32.xlu0 %v3518, 32
        %v3612 = vpop.permute.xlu0 %3611
        %3613 = vrot.lane.b32.xlu0 %v3519, 32
        %v3614 = vpop.permute.xlu0 %3613
        %3615 = vrot.lane.b32.xlu0 %v3520, 32
        %v3616 = vpop.permute.xlu0 %3615
        %v3649 = vsel %vm1267, %v2352, %v3554
        %v3650 = vsel %vm1267, %v2353, %v3556
        %v3651 = vsel %vm1267, %v2354, %v3558
        %v3652 = vsel %vm1267, %v2355, %v3560
        %v3653 = vsel %vm1267, %v2356, %v3562
        %v3654 = vsel %vm1267, %v2357, %v3564
        %v3655 = vsel %vm1267, %v2358, %v3566
        %v3656 = vsel %vm1267, %v2359, %v3568
        %v3657 = vsel %vm1267, %v2360, %v3570
        %v3658 = vsel %vm1267, %v2361, %v3572
        %v3659 = vsel %vm1267, %v2362, %v3574
        %v3660 = vsel %vm1267, %v2363, %v3576
        %v3661 = vsel %vm1267, %v2364, %v3578
        %v3662 = vsel %vm1267, %v2365, %v3580
        %v3663 = vsel %vm1267, %v2366, %v3582
        %v3664 = vsel %vm1267, %v2367, %v3584
        %v3665 = vsel %vm1267, %v2368, %v3586
        %v3666 = vsel %vm1267, %v2369, %v3588
        %v3667 = vsel %vm1267, %v2370, %v3590
        %v3668 = vsel %vm1267, %v2371, %v3592
        %v3669 = vsel %vm1267, %v2372, %v3594
        %v3670 = vsel %vm1267, %v2373, %v3596
        %v3671 = vsel %vm1267, %v2374, %v3598
        %v3672 = vsel %vm1267, %v2375, %v3600
        %v3673 = vsel %vm1267, %v2376, %v3602
        %v3674 = vsel %vm1267, %v2377, %v3604
        %v3675 = vsel %vm1267, %v2378, %v3606
        %v3676 = vsel %vm1267, %v2379, %v3608
        %v3677 = vsel %vm1267, %v2380, %v3610
        %v3678 = vsel %vm1267, %v2381, %v3612
        %v3679 = vsel %vm1267, %v2382, %v3614
        %v3680 = vsel %vm1267, %v2383, %v3616
        %v3681 = vpack.c.bf16 %v3650, %v3649
        %v3682 = vpack.c.bf16 %v3652, %v3651
        %v3683 = vpack.c.bf16 %v3654, %v3653
        %v3684 = vpack.c.bf16 %v3656, %v3655
        %v3685 = vpack.c.bf16 %v3658, %v3657
        %v3686 = vpack.c.bf16 %v3660, %v3659
        %v3687 = vpack.c.bf16 %v3662, %v3661
        %v3688 = vpack.c.bf16 %v3664, %v3663
        %v3689 = vpack.c.bf16 %v3666, %v3665
        %v3690 = vpack.c.bf16 %v3668, %v3667
        %v3691 = vpack.c.bf16 %v3670, %v3669
        %v3692 = vpack.c.bf16 %v3672, %v3671
        %v3693 = vpack.c.bf16 %v3674, %v3673
        %v3694 = vpack.c.bf16 %v3676, %v3675
        %v3695 = vpack.c.bf16 %v3678, %v3677
        %v3696 = vpack.c.bf16 %v3680, %v3679
        %v3697 = vld [vmem:[#allocation8] sm:$0xf]
        %v3698 = vld [vmem:[#allocation8 + $0x4] sm:$0xf]
        %v3699 = vld [vmem:[#allocation8 + $0x8] sm:$0xf]
        %v3700 = vld [vmem:[#allocation8 + $0xc] sm:$0xf]
        %v3701 = vld [vmem:[#allocation8 + $0x10] sm:$0xf]
        %v3702 = vld [vmem:[#allocation8 + $0x14] sm:$0xf]
        %v3703 = vld [vmem:[#allocation8 + $0x18] sm:$0xf]
        %v3704 = vld [vmem:[#allocation8 + $0x1c] sm:$0xf]
        %v3713 = vunpack.c.l.b16 %v3697
        %v3714 = vunpack.c.l.b16 %v3698
        %v3715 = vunpack.c.l.b16 %v3699
        %v3716 = vunpack.c.l.b16 %v3700
        %v3717 = vunpack.c.l.b16 %v3701
        %v3718 = vunpack.c.l.b16 %v3702
        %v3719 = vunpack.c.l.b16 %v3703
        %v3720 = vunpack.c.l.b16 %v3704
        %v3721 = vpack.c.b16 %v3714, %v3713
        %v3722 = vpack.c.b16 %v3716, %v3715
        %v3723 = vpack.c.b16 %v3718, %v3717
        %v3724 = vpack.c.b16 %v3720, %v3719
        %v3730 = vsel %vm350, %v3681, 0
        %v3733 = vsel %vm350, %v3682, 0
        %v3736 = vsel %vm350, %v3683, 0
        %v3739 = vsel %vm350, %v3684, 0
        %v3742 = vsel %vm350, %v3685, 0
        %v3745 = vsel %vm350, %v3686, 0
        %v3748 = vsel %vm350, %v3687, 0
        %v3751 = vsel %vm350, %v3688, 0
        %v3754 = vsel %vm350, %v3689, 0
        %v3757 = vsel %vm350, %v3690, 0
        %v3760 = vsel %vm350, %v3691, 0
        %v3763 = vsel %vm350, %v3692, 0
        %v3766 = vsel %vm350, %v3693, 0
        %v3769 = vsel %vm350, %v3694, 0
        %v3772 = vsel %vm350, %v3695, 0
        %v3775 = vsel %vm350, %v3696, 0
        %3777 = vmatprep.subr.bf16.mxu0 0
        %3778 = vmatpush1.bf16.msra.mxu0 0
        %3779 = vmatprep.subr.bf16.mxu0 0
        %3780 = vmatpush1.bf16.msra.mxu0 0
        %3781 = vmatprep.subr.bf16.mxu0 0
        %3782 = vmatpush1.bf16.msra.mxu0 0
        %3783 = vmatprep.subr.bf16.mxu0 0
        %3784 = vmatpush1.bf16.msra.mxu0 0
        %3785 = vmatprep.subr.bf16.mxu0 0
        %3786 = vmatpush1.bf16.msra.mxu0 %v3724
        %3787 = vmatprep.subr.bf16.mxu0 0
        %3788 = vmatpush1.bf16.msra.mxu0 %v3723
        %3789 = vmatprep.subr.bf16.mxu0 0
        %3790 = vmatpush1.bf16.msra.mxu0 %v3722
        %3791 = vmatprep.subr.bf16.mxu0 0
        %3792 = vmatpush1.bf16.msra.mxu0 %v3721
        %3793 = vmatprep.subr.bf16.mxu0 0
        %3794 = vmatpush2.bf16.msra.mxu0 0
        %3795 = vmatprep.subr.bf16.mxu0 0
        %3796 = vmatpush2.bf16.msra.mxu0 0
        %3797 = vmatprep.subr.bf16.mxu0 0
        %3798 = vmatpush2.bf16.msra.mxu0 0
        %3799 = vmatprep.subr.bf16.mxu0 0
        %3800 = vmatpush2.bf16.msra.mxu0 0
        %3801 = vmatprep.subr.bf16.mxu0 0
        %3802 = vmatpush2.bf16.msra.mxu0 0
        %3803 = vmatprep.subr.bf16.mxu0 0
        %3804 = vmatpush2.bf16.msra.mxu0 0
        %3805 = vmatprep.subr.bf16.mxu0 0
        %3806 = vmatpush2.bf16.msra.mxu0 0
        %3807 = vmatprep.subr.bf16.mxu0 0
        %3808 = vmatpush2.bf16.msra.mxu0 0
        %3809 = vmatprep.mubr.bf16.mxu0 0
        %3810 = vmatmul.mubr.bf16.gmra.mxu0 %v3730
        %v3811 = vpop.f32.mrf.mxu0
        %v3812 = vadd.f32 0.0, %v3811
        %v3813 = vpop.f32.mrf.mxu0
        %v3814 = vpop.f32.mrf.mxu0
        %v3815 = vadd.f32 0.0, %v3814
        %v3816 = vpop.f32.mrf.mxu0
        %3817 = vmatprep.mubr.bf16.mxu0 0
        %3818 = vmatmul.mubr.bf16.gmra.mxu0 %v3733
        %v3819 = vpop.f32.mrf.mxu0
        %v3820 = vadd.f32 0.0, %v3819
        %v3821 = vpop.f32.mrf.mxu0
        %v3822 = vpop.f32.mrf.mxu0
        %v3823 = vadd.f32 0.0, %v3822
        %v3824 = vpop.f32.mrf.mxu0
        %3825 = vmatprep.mubr.bf16.mxu0 0
        %3826 = vmatmul.mubr.bf16.gmra.mxu0 %v3736
        %v3827 = vpop.f32.mrf.mxu0
        %v3828 = vadd.f32 0.0, %v3827
        %v3829 = vpop.f32.mrf.mxu0
        %v3830 = vpop.f32.mrf.mxu0
        %v3831 = vadd.f32 0.0, %v3830
        %v3832 = vpop.f32.mrf.mxu0
        %3833 = vmatprep.mubr.bf16.mxu0 0
        %3834 = vmatmul.mubr.bf16.gmra.mxu0 %v3739
        %v3835 = vpop.f32.mrf.mxu0
        %v3836 = vadd.f32 0.0, %v3835
        %v3837 = vpop.f32.mrf.mxu0
        %v3838 = vpop.f32.mrf.mxu0
        %v3839 = vadd.f32 0.0, %v3838
        %v3840 = vpop.f32.mrf.mxu0
        %3841 = vmatprep.mubr.bf16.mxu0 0
        %3842 = vmatmul.mubr.bf16.gmra.mxu0 %v3742
        %v3843 = vpop.f32.mrf.mxu0
        %v3844 = vadd.f32 0.0, %v3843
        %v3845 = vpop.f32.mrf.mxu0
        %v3846 = vpop.f32.mrf.mxu0
        %v3847 = vadd.f32 0.0, %v3846
        %v3848 = vpop.f32.mrf.mxu0
        %3849 = vmatprep.mubr.bf16.mxu0 0
        %3850 = vmatmul.mubr.bf16.gmra.mxu0 %v3745
        %v3851 = vpop.f32.mrf.mxu0
        %v3852 = vadd.f32 0.0, %v3851
        %v3853 = vpop.f32.mrf.mxu0
        %v3854 = vpop.f32.mrf.mxu0
        %v3855 = vadd.f32 0.0, %v3854
        %v3856 = vpop.f32.mrf.mxu0
        %3857 = vmatprep.mubr.bf16.mxu0 0
        %3858 = vmatmul.mubr.bf16.gmra.mxu0 %v3748
        %v3859 = vpop.f32.mrf.mxu0
        %v3860 = vadd.f32 0.0, %v3859
        %v3861 = vpop.f32.mrf.mxu0
        %v3862 = vpop.f32.mrf.mxu0
        %v3863 = vadd.f32 0.0, %v3862
        %v3864 = vpop.f32.mrf.mxu0
        %3865 = vmatprep.mubr.bf16.mxu0 0
        %3866 = vmatmul.mubr.bf16.gmra.mxu0 %v3751
        %v3867 = vpop.f32.mrf.mxu0
        %v3868 = vadd.f32 0.0, %v3867
        %v3869 = vpop.f32.mrf.mxu0
        %v3870 = vpop.f32.mrf.mxu0
        %v3871 = vadd.f32 0.0, %v3870
        %v3872 = vpop.f32.mrf.mxu0
        %3873 = vmatprep.mubr.bf16.mxu0 0
        %3874 = vmatmul.mubr.bf16.gmra.mxu0 %v3754
        %v3875 = vpop.f32.mrf.mxu0
        %v3876 = vadd.f32 0.0, %v3875
        %v3877 = vpop.f32.mrf.mxu0
        %v3878 = vpop.f32.mrf.mxu0
        %v3879 = vadd.f32 0.0, %v3878
        %v3880 = vpop.f32.mrf.mxu0
        %3881 = vmatprep.mubr.bf16.mxu0 0
        %3882 = vmatmul.mubr.bf16.gmra.mxu0 %v3757
        %v3883 = vpop.f32.mrf.mxu0
        %v3884 = vadd.f32 0.0, %v3883
        %v3885 = vpop.f32.mrf.mxu0
        %v3886 = vpop.f32.mrf.mxu0
        %v3887 = vadd.f32 0.0, %v3886
        %v3888 = vpop.f32.mrf.mxu0
        %3889 = vmatprep.mubr.bf16.mxu0 0
        %3890 = vmatmul.mubr.bf16.gmra.mxu0 %v3760
        %v3891 = vpop.f32.mrf.mxu0
        %v3892 = vadd.f32 0.0, %v3891
        %v3893 = vpop.f32.mrf.mxu0
        %v3894 = vpop.f32.mrf.mxu0
        %v3895 = vadd.f32 0.0, %v3894
        %v3896 = vpop.f32.mrf.mxu0
        %3897 = vmatprep.mubr.bf16.mxu0 0
        %3898 = vmatmul.mubr.bf16.gmra.mxu0 %v3763
        %v3899 = vpop.f32.mrf.mxu0
        %v3900 = vadd.f32 0.0, %v3899
        %v3901 = vpop.f32.mrf.mxu0
        %v3902 = vpop.f32.mrf.mxu0
        %v3903 = vadd.f32 0.0, %v3902
        %v3904 = vpop.f32.mrf.mxu0
        %3905 = vmatprep.mubr.bf16.mxu0 0
        %3906 = vmatmul.mubr.bf16.gmra.mxu0 %v3766
        %v3907 = vpop.f32.mrf.mxu0
        %v3908 = vadd.f32 0.0, %v3907
        %v3909 = vpop.f32.mrf.mxu0
        %v3910 = vpop.f32.mrf.mxu0
        %v3911 = vadd.f32 0.0, %v3910
        %v3912 = vpop.f32.mrf.mxu0
        %3913 = vmatprep.mubr.bf16.mxu0 0
        %3914 = vmatmul.mubr.bf16.gmra.mxu0 %v3769
        %v3915 = vpop.f32.mrf.mxu0
        %v3916 = vadd.f32 0.0, %v3915
        %v3917 = vpop.f32.mrf.mxu0
        %v3918 = vpop.f32.mrf.mxu0
        %v3919 = vadd.f32 0.0, %v3918
        %v3920 = vpop.f32.mrf.mxu0
        %3921 = vmatprep.mubr.bf16.mxu0 0
        %3922 = vmatmul.mubr.bf16.gmra.mxu0 %v3772
        %v3923 = vpop.f32.mrf.mxu0
        %v3924 = vadd.f32 0.0, %v3923
        %v3925 = vpop.f32.mrf.mxu0
        %v3926 = vpop.f32.mrf.mxu0
        %v3927 = vadd.f32 0.0, %v3926
        %v3928 = vpop.f32.mrf.mxu0
        %3929 = vmatprep.mubr.bf16.mxu0 0
        %3930 = vmatmul.mubr.bf16.gmra.mxu0 %v3775
        %v3931 = vpop.f32.mrf.mxu0
        %v3932 = vadd.f32 0.0, %v3931
        %v3933 = vpop.f32.mrf.mxu0
        %v3934 = vpop.f32.mrf.mxu0
        %v3935 = vadd.f32 0.0, %v3934
        %v3936 = vpop.f32.mrf.mxu0
        %3937 = vdwg.mxu0
        %3938 = vst.msk [vmem:[%s314] sm:$0xff] %vm350, %v3812
        %3939 = vst.msk [vmem:[%s314 + $0x8] sm:$0xff] %vm350, %v3815
        %3940 = vst.msk [vmem:[%s314 + $0x10] sm:$0xff] %vm350, %v3820
        %3941 = vst.msk [vmem:[%s314 + $0x18] sm:$0xff] %vm350, %v3823
        %3942 = vst.msk [vmem:[%s314 + $0x20] sm:$0xff] %vm350, %v3828
        %3943 = vst.msk [vmem:[%s314 + $0x28] sm:$0xff] %vm350, %v3831
        %3944 = vst.msk [vmem:[%s314 + $0x30] sm:$0xff] %vm350, %v3836
        %3945 = vst.msk [vmem:[%s314 + $0x38] sm:$0xff] %vm350, %v3839
        %3946 = vst.msk [vmem:[%s314 + $0x40] sm:$0xff] %vm350, %v3844
        %3947 = vst.msk [vmem:[%s314 + $0x48] sm:$0xff] %vm350, %v3847
        %3948 = vst.msk [vmem:[%s314 + $0x50] sm:$0xff] %vm350, %v3852
        %3949 = vst.msk [vmem:[%s314 + $0x58] sm:$0xff] %vm350, %v3855
        %3950 = vst.msk [vmem:[%s314 + $0x60] sm:$0xff] %vm350, %v3860
        %3951 = vst.msk [vmem:[%s314 + $0x68] sm:$0xff] %vm350, %v3863
        %3952 = vst.msk [vmem:[%s314 + $0x70] sm:$0xff] %vm350, %v3868
        %3953 = vst.msk [vmem:[%s314 + $0x78] sm:$0xff] %vm350, %v3871
        %3954 = vst.msk [vmem:[%s314 + $0x80] sm:$0xff] %vm350, %v3876
        %3955 = vst.msk [vmem:[%s314 + $0x88] sm:$0xff] %vm350, %v3879
        %3956 = vst.msk [vmem:[%s314 + $0x90] sm:$0xff] %vm350, %v3884
        %3957 = vst.msk [vmem:[%s314 + $0x98] sm:$0xff] %vm350, %v3887
        %3958 = vst.msk [vmem:[%s314 + $0xa0] sm:$0xff] %vm350, %v3892
        %3959 = vst.msk [vmem:[%s314 + $0xa8] sm:$0xff] %vm350, %v3895
        %3960 = vst.msk [vmem:[%s314 + $0xb0] sm:$0xff] %vm350, %v3900
        %3961 = vst.msk [vmem:[%s314 + $0xb8] sm:$0xff] %vm350, %v3903
        %3962 = vst.msk [vmem:[%s314 + $0xc0] sm:$0xff] %vm350, %v3908
        %3963 = vst.msk [vmem:[%s314 + $0xc8] sm:$0xff] %vm350, %v3911
        %3964 = vst.msk [vmem:[%s314 + $0xd0] sm:$0xff] %vm350, %v3916
        %3965 = vst.msk [vmem:[%s314 + $0xd8] sm:$0xff] %vm350, %v3919
        %3966 = vst.msk [vmem:[%s314 + $0xe0] sm:$0xff] %vm350, %v3924
        %3967 = vst.msk [vmem:[%s314 + $0xe8] sm:$0xff] %vm350, %v3927
        %3968 = vst.msk [vmem:[%s314 + $0xf0] sm:$0xff] %vm350, %v3932
        %3969 = vst.msk [vmem:[%s314 + $0xf8] sm:$0xff] %vm350, %v3935
        %s3970 = sand.u32 %s164, 1
        %s3971 = scalar_lea.sflag [#allocation4], %s3970
        %s3972 = sand.u32 %s164, 1
        %s3973 = smul.addr %s3972, 256
        %s3974 = scalar_lea.vmem [#allocation10], %s3973
        // Predicated region
        $region61: #{tpu_custom_call.1} parent=43 // pred_check
          %p3975 = pneg %p174
        $region62: #{tpu_custom_call.1} parent=43 // pred_check_branch
          %3977 = sbr.rel (%p3975) target = $region64
        $region63: #{tpu_custom_call.1} parent=43 // pred_region
          %s3978 = smul.u32 4, %s25
          %s3980 = ssub.s32 4096, 4096
          %3981 = vsyncadd %s3971, %s3980
          %s3982 = smul.addr %s3978, 8
          %s3983 = smul.addr %s3982, 128
          %s3984 = scalar_lea.hbm %s6, %s3983
          %s3985 = sshll.u32 %s3974, 4
          %s3986 = int_to_ptr.vmem [resolvable:$true] %s3985
          %3991 = dma.vmem_to_hbm [thread:$0]  %s3986, 4096, %s3984, %s3971, 128, 128, 8
        $region64: #{tpu_custom_call.1} parent=43 // pred_fallthru
          _
      $region44: #{tpu_custom_call.1} parent=5 // pred_fallthru
        _
      %p3992 = scmp.le.s32.totalorder 2, %s20
      // Predicated region
      $region65: #{tpu_custom_call.1} parent=5 // pred_check
        %p3993 = pneg %p3992
      $region66: #{tpu_custom_call.1} parent=5 // pred_check_branch
        %3995 = sbr.rel (%p3993) target = $region68
      $region67: #{tpu_custom_call.1} parent=5 // pred_region
        %s3996 = ssub.s32 %s20, 2
        // Predicated region
        $region69: #{tpu_custom_call.1} parent=67 // pred_check
          %p3997 = pneg %p180
        $region70: #{tpu_custom_call.1} parent=67 // pred_check_branch
          %3999 = sbr.rel (%p3997) target = $region72
        $region71: #{tpu_custom_call.1} parent=67 // pred_region
          %s4000 = sand.u32 %s165, 1
          %s4001 = scalar_lea.sflag [#allocation4], %s4000
          %s4002 = sand.u32 %s165, 1
          %s4003 = smul.addr %s4002, 256
          %s4004 = scalar_lea.vmem [#allocation10], %s4003
          %4005 = dma.done %s4001, 4096
        $region72: #{tpu_custom_call.1} parent=67 // pred_fallthru
          _
      $region68: #{tpu_custom_call.1} parent=5 // pred_fallthru
        _
    $region6: #{tpu_custom_call.1} parent=1 // loop_footer
      %s24 = sadd.s32 1, %s20
    $region7: #{tpu_custom_call.1} parent=1 // loop_footer_branch
      %19 = sbr.rel target = $region3
    $region8: #{tpu_custom_call.1} parent=1 // loop_exit
      _
    %4006 = vsyncpa [#allocation3], 1
    %s4007 = scalar_lea.sflag [#allocation3], 1
    %4008 = vsyncpa %s4007, 1
    %4009 = vsyncpa [#allocation6], 1
    %4010 = vsyncpa [#allocation9], 1
    %4011 = vsyncpa [#allocation4], 1
    %s4012 = scalar_lea.sflag [#allocation4], 1
    %4013 = vsyncpa %s4012, 1

</llo_original>
